<compile_context>
chip_gen: v7x
topology: tpu7x:2x2x1
jax: 0.10.0
libtpu: 0.0.40
codegen_flags: <defaults>
</compile_context>

<pallas_src>
import math

import jax
import jax.numpy as jnp
import numpy as np
from jax.experimental import pallas as pl
from jax.experimental.pallas import tpu as pltpu


def _attnpool_kernel(x_ref, pos_kv_ref, wq_ref, qb_ref, wkv_ref, hmask_ref,
                     hmaskt_ref, wc_ref, bc_ref, o_ref, xf_ref):
    B, HW, C = x_ref.shape
    L = HW + 1                       # spatial tokens + mean token
    L_pad = xf_ref.shape[1]          # L rounded up to a multiple of 8
    H = hmask_ref.shape[1]           # num_heads
    cdt = xf_ref.dtype               # compute dtype (bf16 by default)

    # Token scratch: rows [0, HW) = spatial tokens, row HW = mean token (the
    # only query), rows [L, L_pad) = zero pad.  Pad rows are re-zeroed every
    # step (cheap) so the scratch is always valid even when grid steps are
    # split across TensorCores (per-core scratch; program_id 0 may never run
    # on core 1, so a zero-once guard would be unsafe there).
    x = x_ref[...]
    xf_ref[:, :HW, :] = x.astype(cdt)

    mean3 = jnp.mean(x.astype(jnp.float32), axis=1, keepdims=True)   # (B, 1, C)
    xf_ref[:, HW:L, :] = mean3.astype(cdt)
    if L_pad > L:
        xf_ref[:, L:, :] = jnp.zeros((B, L_pad - L, C), cdt)

    # Fused K/V projection of all tokens: one (B*L_pad, C) x (C, 2C) MXU matmul
    # with f32 accumulation.  Positional embedding and the k/v biases enter as
    # the precomputed per-token constant pos_kv = pos @ Wkv + bkv.  Q is NOT
    # projected here: only the mean row is ever used as a query.
    xt = xf_ref[...].reshape(B * L_pad, C)
    kv = jnp.dot(xt, wkv_ref[...], preferred_element_type=jnp.float32)
    kv = kv.reshape(B, L_pad, 2 * C) + pos_kv_ref[...]

    k = kv[:, :, :C].astype(cdt)     # (B, L_pad, C)
    v = kv[:, :, C:]                 # (B, L_pad, C), kept f32 for the weighted sum

    # Query: mean-token rows only; 1/sqrt(head_dim) is folded into wq / qb.
    mean2 = mean3.reshape(B, C)
    q = jnp.dot(mean2.astype(cdt), wq_ref[...],
                preferred_element_type=jnp.float32) + qb_ref[...]
    q = q.astype(cdt)                # (B, C)

    # Per-head scores without per-head matmuls: VPU q*k, then per-head
    # lane-group reduction with a constant 0/1 (C, H) matrix on the MXU.
    prod = (q[:, None, :] * k).reshape(B * L_pad, C)
    s = jnp.dot(prod, hmask_ref[...],
                preferred_element_type=jnp.float32).reshape(B, L_pad, H)

    # Softmax over tokens; padded token rows masked out.
    tok = jax.lax.broadcasted_iota(jnp.int32, (B, L_pad, H), 1)
    s = jnp.where(tok < L, s, -1e30)
    p = jnp.exp(s - jnp.max(s, axis=1, keepdims=True))
    denom = jnp.sum(p, axis=1, keepdims=True)
    # TODO(synk): approx reciprocal (EUP) carries ~2^-12 rel error; switch to an
    # exact divide if a bit-faithful softmax is ever required.
    p = p * pl.reciprocal(denom, approx=True)                    # (B, L_pad, H)

    # Broadcast head probabilities back across each head's lanes (MXU), weight
    # V, and reduce over tokens with f32 accumulation.
    p_full = jnp.dot(p.reshape(B * L_pad, H).astype(cdt), hmaskt_ref[...],
                     preferred_element_type=jnp.float32).reshape(B, L_pad, C)
    attn = jnp.sum(p_full * v, axis=1)                           # (B, C) f32

    # Output projection.
    out = jnp.dot(attn.astype(cdt), wc_ref[...],
                  preferred_element_type=jnp.float32) + bc_ref[...]
    o_ref[...] = out.astype(o_ref.dtype)


def attention_pool_2d(x, params, num_heads, *, block_b=8,
                      compute_dtype=jnp.bfloat16):
    """x: (N, C, H, W) float32 (NCHW, like PyTorch). Returns (N, output_dim) f32."""
    N, C, Hs, Ws = x.shape
    HW = Hs * Ws
    L = HW + 1
    L_pad = -(-L // 8) * 8
    assert C % num_heads == 0
    head_dim = C // num_heads
    scale = 1.0 / math.sqrt(head_dim)
    out_dim = params["wc"].shape[0]
    f32 = jnp.float32

    # See module TODO: one XLA pass to get (N, HW, C); fused with the bf16 cast.
    x_seq = jnp.transpose(x.reshape(N, C, HW), (0, 2, 1)).astype(compute_dtype)

    n_pad = -(-N // block_b) * block_b
    if n_pad != N:
        x_seq = jnp.pad(x_seq, ((0, n_pad - N), (0, 0), (0, 0)))

    # Positional embedding reordered (spatial tokens first, mean token at row
    # HW), zero-padded to L_pad rows.
    pos = params["pos"].astype(f32)
    pos_r = jnp.concatenate(
        [pos[1:], pos[:1], jnp.zeros((L_pad - L, C), f32)], axis=0)

    # K/V-only fused weight; pos + biases folded into a per-token constant.
    wkv = jnp.concatenate([params["wk"].T, params["wv"].T], axis=1)        # (C, 2C)
    bkv = jnp.concatenate([params["bk"], params["bv"]])[None, :]           # (1, 2C)
    pos_kv = (pos_r @ wkv + bkv).astype(f32)                               # (L_pad, 2C)
    wkv_c = wkv.astype(compute_dtype)

    # Q projection (mean token only); 1/sqrt(head_dim) folded into weight/bias.
    wq_s = (params["wq"].T * scale).astype(compute_dtype)                  # (C, C)
    qb = ((pos[:1] @ params["wq"].T + params["bq"][None, :]) * scale).astype(f32)

    wc = params["wc"].T.astype(compute_dtype)                              # (C, out_dim)
    bc = params["bc"][None, :].astype(f32)                                 # (1, out_dim)

    # Per-head lane-group reduce / broadcast matrices (0/1 -> exact in bf16).
    hmask = jnp.asarray(
        np.arange(C)[:, None] // head_dim == np.arange(num_heads)[None, :],
        compute_dtype)                                                     # (C, H)
    hmask_t = hmask.T                                                      # (H, C)

    # VMEM limit: 3/4 of the per-core capacity (48 MiB on v7x, 96 MiB on
    # v5e/v6e), capped at 100 MiB; fall back to a v7x-safe 48 MiB.
    try:
        vmem_cap = int(pltpu.get_tpu_info().vmem_capacity_bytes)
    except Exception:
        vmem_cap = 64 * 1024 * 1024
    vmem_limit = min((vmem_cap * 3) // 4, 100 * 1024 * 1024)

    steps = n_pad // block_b
    flops_per_step = (2 * block_b * L_pad * C * (2 * C)        # K/V projection
                      + 2 * block_b * C * C                    # Q projection
                      + 4 * block_b * L_pad * C * num_heads    # head reduce + bcast
                      + 2 * block_b * C * out_dim)             # output projection
    cost = pl.CostEstimate(
        flops=steps * flops_per_step,
        transcendentals=steps * block_b * L_pad * num_heads,
        bytes_accessed=(x_seq.size * x_seq.dtype.itemsize
                        + n_pad * out_dim * 4
                        + wkv_c.size * wkv_c.dtype.itemsize
                        + wq_s.size * wq_s.dtype.itemsize
                        + wc.size * wc.dtype.itemsize
                        + pos_kv.size * 4))

    # Grid-invariant operands: whole-array VMEM residency (no per-step DMA).
    vmem_full = lambda: pl.BlockSpec(memory_space=pltpu.MemorySpace.VMEM)

    out = pl.pallas_call(
        _attnpool_kernel,
        out_shape=jax.ShapeDtypeStruct((n_pad, out_dim), jnp.float32),
        grid=(steps,),
        in_specs=[
            # Activations; if the input DMA ever becomes exposed at larger
            # block_b, add pipeline_mode=pl.Buffered(3) here.
            pl.BlockSpec((block_b, HW, C), lambda n: (n, 0, 0)),
            vmem_full(),   # pos_kv  (L_pad, 2C) f32
            vmem_full(),   # wq_s    (C, C)
            vmem_full(),   # qb      (1, C) f32
            vmem_full(),   # wkv     (C, 2C)
            vmem_full(),   # hmask   (C, H)
            vmem_full(),   # hmask_t (H, C)
            vmem_full(),   # wc      (C, out_dim)
            vmem_full(),   # bc      (1, out_dim) f32
        ],
        out_specs=pl.BlockSpec((block_b, out_dim), lambda n: (n, 0)),
        scratch_shapes=[pltpu.VMEM((block_b, L_pad, C), compute_dtype)],
        compiler_params=pltpu.CompilerParams(
            dimension_semantics=("parallel",),
            vmem_limit_bytes=int(vmem_limit),
        ),
        cost_estimate=cost,
    )(x_seq, pos_kv, wq_s, qb, wkv_c, hmask, hmask_t, wc, bc)

    return out[:N]


def reference(x, params, num_heads):
    """Pure-JAX f32 reference mirroring F.multi_head_attention_forward semantics."""
    N, C, H, W = x.shape
    xs = x.reshape(N, C, H * W).transpose(0, 2, 1)           # (N, HW, C)
    mean = xs.mean(axis=1, keepdims=True)
    xf = jnp.concatenate([mean, xs], axis=1) + params["pos"][None]
    d = C // num_heads
    q = (xf[:, :1] @ params["wq"].T + params["bq"]) * (d ** -0.5)
    k = xf @ params["wk"].T + params["bk"]
    v = xf @ params["wv"].T + params["bv"]
    qh = q.reshape(N, 1, num_heads, d).transpose(0, 2, 1, 3)
    kh = k.reshape(N, -1, num_heads, d).transpose(0, 2, 1, 3)
    vh = v.reshape(N, -1, num_heads, d).transpose(0, 2, 1, 3)
    s = jnp.einsum("bhqd,bhld->bhql", qh, kh)
    p = jax.nn.softmax(s, axis=-1)
    o = jnp.einsum("bhql,bhld->bhqd", p, vh).transpose(0, 2, 1, 3).reshape(N, 1, C)
    return (o @ params["wc"].T + params["bc"])[:, 0]


def init_params(key, spacial_dim, embed_dim, output_dim):
    L = spacial_dim ** 2 + 1
    ks = jax.random.split(key, 9)
    return {
        "pos": jax.random.normal(ks[0], (L, embed_dim), jnp.float32) / math.sqrt(embed_dim),
        "wq": jax.random.normal(ks[1], (embed_dim, embed_dim), jnp.float32) * 0.05,
        "bq": jax.random.normal(ks[2], (embed_dim,), jnp.float32) * 0.05,
        "wk": jax.random.normal(ks[3], (embed_dim, embed_dim), jnp.float32) * 0.05,
        "bk": jax.random.normal(ks[4], (embed_dim,), jnp.float32) * 0.05,
        "wv": jax.random.normal(ks[5], (embed_dim, embed_dim), jnp.float32) * 0.05,
        "bv": jax.random.normal(ks[6], (embed_dim,), jnp.float32) * 0.05,
        "wc": jax.random.normal(ks[7], (output_dim, embed_dim), jnp.float32) * 0.05,
        "bc": jax.random.normal(ks[8], (output_dim,), jnp.float32) * 0.05,
    }


if __name__ == "__main__":
    # CLIP-like 7x7 spatial grid; batch=16 with block_b=8 -> grid of 2 steps
    # (both v7x TensorCores busy), lane-dense C and out_dim.
    batch, embed_dim, spacial_dim, num_heads, output_dim = 16, 128, 7, 4, 128

    key = jax.random.PRNGKey(0)
    kx, kp = jax.random.split(key)
    x = jax.random.normal(kx, (batch, embed_dim, spacial_dim, spacial_dim), jnp.float32)
    params = init_params(kp, spacial_dim, embed_dim, output_dim)

    ref = reference(x, params, num_heads)

    # f32 compute path (use on v5e; tolerance covers the EUP approx reciprocal).
    out_f32 = jax.block_until_ready(
        attention_pool_2d(x, params, num_heads, block_b=8, compute_dtype=jnp.float32))
    np.testing.assert_allclose(np.asarray(out_f32), np.asarray(ref), atol=5e-3, rtol=5e-3)

    # bf16 compute path (v6e/v7x production dtype), looser tolerance vs f32 ref.
    out_bf16 = jax.block_until_ready(
        attention_pool_2d(x, params, num_heads, block_b=8, compute_dtype=jnp.bfloat16))
    np.testing.assert_allclose(np.asarray(out_bf16), np.asarray(ref), atol=3e-2, rtol=3e-2)

    print("KERNEL_OK")
</pallas_src>

<mosaic_0001>
module attributes {stable_mosaic.version = 11 : i64} {
  func.func @_attnpool_kernel(%arg0: i32, %arg1: memref<8x49x128xf32, #tpu.memory_space<vmem>>, %arg2: memref<56x256xf32, #tpu.memory_space<vmem>>, %arg3: memref<128x128xf32, #tpu.memory_space<vmem>>, %arg4: memref<1x128xf32, #tpu.memory_space<vmem>>, %arg5: memref<128x256xf32, #tpu.memory_space<vmem>>, %arg6: memref<128x4xf32, #tpu.memory_space<vmem>>, %arg7: memref<4x128xf32, #tpu.memory_space<vmem>>, %arg8: memref<128x128xf32, #tpu.memory_space<vmem>>, %arg9: memref<1x128xf32, #tpu.memory_space<vmem>>, %arg10: memref<8x128xf32, #tpu.memory_space<vmem>>, %arg11: memref<8x56x128xf32, #tpu.memory_space<vmem>>) attributes {dimension_semantics = [#tpu.dimension_semantics<parallel>], iteration_bounds = array<i64: 2>, scalar_prefetch = 0 : i64, scratch_operands = 1 : i64, tpu.core_type = #tpu.core_type<tc>, window_params = [{transform_indices = @transform_0, window_bounds = array<i64: 8, 49, 128>}, {pipeline_mode = #tpu.pipeline_mode<synchronous>, transform_indices = @transform_1, window_bounds = array<i64: 56, 256>}, {pipeline_mode = #tpu.pipeline_mode<synchronous>, transform_indices = @transform_2, window_bounds = array<i64: 128, 128>}, {pipeline_mode = #tpu.pipeline_mode<synchronous>, transform_indices = @transform_3, window_bounds = array<i64: 1, 128>}, {pipeline_mode = #tpu.pipeline_mode<synchronous>, transform_indices = @transform_4, window_bounds = array<i64: 128, 256>}, {pipeline_mode = #tpu.pipeline_mode<synchronous>, transform_indices = @transform_5, window_bounds = array<i64: 128, 4>}, {pipeline_mode = #tpu.pipeline_mode<synchronous>, transform_indices = @transform_6, window_bounds = array<i64: 4, 128>}, {pipeline_mode = #tpu.pipeline_mode<synchronous>, transform_indices = @transform_7, window_bounds = array<i64: 128, 128>}, {pipeline_mode = #tpu.pipeline_mode<synchronous>, transform_indices = @transform_8, window_bounds = array<i64: 1, 128>}, {transform_indices = @transform_9, window_bounds = array<i64: 8, 128>}]} {
    %c0 = arith.constant 0 : index
    %c0_0 = arith.constant 0 : index
    %c0_1 = arith.constant 0 : index
    %0 = vector.load %arg1[%c0, %c0_0, %c0_1] : memref<8x49x128xf32, #tpu.memory_space<vmem>>, vector<8x49x128xf32>
    %c0_2 = arith.constant 0 : index
    %c0_3 = arith.constant 0 : index
    %c0_4 = arith.constant 0 : index
    %1 = vector.load %arg11[%c0_2, %c0_3, %c0_4] : memref<8x56x128xf32, #tpu.memory_space<vmem>>, vector<8x49x128xf32>
    tpu.vector_store %arg11[%c0_2, %c0_3, %c0_4], %0 {strides = array<i32>} : memref<8x56x128xf32, #tpu.memory_space<vmem>>, vector<8x49x128xf32>,
    %cst = arith.constant dense<0.000000e+00> : vector<8x128xf32>
    %2 = vector.multi_reduction <add>, %0, %cst [1] : vector<8x49x128xf32> to vector<8x128xf32>
    %3 = vector.shape_cast %2 : vector<8x128xf32> to vector<8x1x128xf32>
    %cst_5 = arith.constant 4.900000e+01 : f32
    %4 = vector.broadcast %cst_5 : f32 to vector<8x1x128xf32>
    %5 = arith.divf %3, %4 : vector<8x1x128xf32>
    %c0_6 = arith.constant 0 : index
    %c49 = arith.constant 49 : index
    %c0_7 = arith.constant 0 : index
    %6 = vector.load %arg11[%c0_6, %c49, %c0_7] : memref<8x56x128xf32, #tpu.memory_space<vmem>>, vector<8x1x128xf32>
    tpu.vector_store %arg11[%c0_6, %c49, %c0_7], %5 {strides = array<i32>} : memref<8x56x128xf32, #tpu.memory_space<vmem>>, vector<8x1x128xf32>,
    %cst_8 = arith.constant 0.000000e+00 : f32
    %7 = vector.broadcast %cst_8 : f32 to vector<8x6x128xf32>
    %c0_9 = arith.constant 0 : index
    %c50 = arith.constant 50 : index
    %c0_10 = arith.constant 0 : index
    %8 = vector.load %arg11[%c0_9, %c50, %c0_10] : memref<8x56x128xf32, #tpu.memory_space<vmem>>, vector<8x6x128xf32>
    tpu.vector_store %arg11[%c0_9, %c50, %c0_10], %7 {strides = array<i32>} : memref<8x56x128xf32, #tpu.memory_space<vmem>>, vector<8x6x128xf32>,
    %c0_11 = arith.constant 0 : index
    %c0_12 = arith.constant 0 : index
    %c0_13 = arith.constant 0 : index
    %9 = vector.load %arg11[%c0_11, %c0_12, %c0_13] : memref<8x56x128xf32, #tpu.memory_space<vmem>>, vector<8x56x128xf32>
    %10 = vector.shape_cast %9 : vector<8x56x128xf32> to vector<448x128xf32>
    %c0_14 = arith.constant 0 : index
    %c0_15 = arith.constant 0 : index
    %11 = vector.load %arg5[%c0_14, %c0_15] : memref<128x256xf32, #tpu.memory_space<vmem>>, vector<128x256xf32>
    %cst_16 = arith.constant dense<0.000000e+00> : vector<448x256xf32>
    %12 = tpu.matmul %10, %11, %cst_16 {dimension_numbers = #tpu.dot_dimension_numbers<[1], [0], [0], [1], [0, 0, 1, 1], [], []>} : vector<448x128xf32>, vector<128x256xf32>, vector<448x256xf32> -> vector<448x256xf32>
    %13 = vector.shape_cast %12 : vector<448x256xf32> to vector<8x56x256xf32>
    %c0_17 = arith.constant 0 : index
    %c0_18 = arith.constant 0 : index
    %14 = vector.load %arg2[%c0_17, %c0_18] : memref<56x256xf32, #tpu.memory_space<vmem>>, vector<56x256xf32>
    %15 = vector.shape_cast %14 : vector<56x256xf32> to vector<1x56x256xf32>
    %16 = vector.broadcast %15 : vector<1x56x256xf32> to vector<8x56x256xf32>
    %17 = arith.addf %13, %16 : vector<8x56x256xf32>
    %18 = vector.extract_strided_slice %17 {offsets = [0, 0, 0], sizes = [8, 56, 128], strides = [1, 1, 1]} : vector<8x56x256xf32> to vector<8x56x128xf32>
    %19 = vector.extract_strided_slice %17 {offsets = [0, 0, 128], sizes = [8, 56, 128], strides = [1, 1, 1]} : vector<8x56x256xf32> to vector<8x56x128xf32>
    %20 = vector.shape_cast %5 : vector<8x1x128xf32> to vector<8x128xf32>
    %c0_19 = arith.constant 0 : index
    %c0_20 = arith.constant 0 : index
    %21 = vector.load %arg3[%c0_19, %c0_20] : memref<128x128xf32, #tpu.memory_space<vmem>>, vector<128x128xf32>
    %cst_21 = arith.constant dense<0.000000e+00> : vector<8x128xf32>
    %22 = tpu.matmul %20, %21, %cst_21 {dimension_numbers = #tpu.dot_dimension_numbers<[1], [0], [0], [1], [0, 0, 1, 1], [], []>} : vector<8x128xf32>, vector<128x128xf32>, vector<8x128xf32> -> vector<8x128xf32>
    %c0_22 = arith.constant 0 : index
    %c0_23 = arith.constant 0 : index
    %23 = vector.load %arg4[%c0_22, %c0_23] : memref<1x128xf32, #tpu.memory_space<vmem>>, vector<1x128xf32>
    %24 = vector.broadcast %23 : vector<1x128xf32> to vector<8x128xf32>
    %25 = arith.addf %22, %24 : vector<8x128xf32>
    %26 = vector.shape_cast %25 : vector<8x128xf32> to vector<8x1x128xf32>
    %27 = vector.broadcast %26 : vector<8x1x128xf32> to vector<8x56x128xf32>
    %28 = arith.mulf %27, %18 : vector<8x56x128xf32>
    %29 = vector.shape_cast %28 : vector<8x56x128xf32> to vector<448x128xf32>
    %c0_24 = arith.constant 0 : index
    %c0_25 = arith.constant 0 : index
    %30 = vector.load %arg6[%c0_24, %c0_25] : memref<128x4xf32, #tpu.memory_space<vmem>>, vector<128x4xf32>
    %cst_26 = arith.constant dense<0.000000e+00> : vector<448x4xf32>
    %31 = tpu.matmul %29, %30, %cst_26 {dimension_numbers = #tpu.dot_dimension_numbers<[1], [0], [0], [1], [0, 0, 1, 1], [], []>} : vector<448x128xf32>, vector<128x4xf32>, vector<448x4xf32> -> vector<448x4xf32>
    %32 = vector.shape_cast %31 : vector<448x4xf32> to vector<8x56x4xf32>
    %33 = tpu.iota {dimensions = array<i32: 1>} : vector<8x56x4xi32>
    %c50_i32 = arith.constant 50 : i32
    %34 = vector.broadcast %c50_i32 : i32 to vector<8x56x4xi32>
    %35 = arith.cmpi slt, %33, %34 : vector<8x56x4xi32>
    %cst_27 = arith.constant -1.000000e+30 : f32
    %36 = vector.broadcast %cst_27 : f32 to vector<8x56x4xf32>
    %37 = arith.select %35, %32, %36 : vector<8x56x4xi1>, vector<8x56x4xf32>
    %cst_28 = arith.constant dense<0xFF800000> : vector<8x4xf32>
    %38 = vector.multi_reduction <maximumf>, %37, %cst_28 [1] : vector<8x56x4xf32> to vector<8x4xf32>
    %39 = vector.shape_cast %38 : vector<8x4xf32> to vector<8x1x4xf32>
    %40 = vector.broadcast %39 : vector<8x1x4xf32> to vector<8x56x4xf32>
    %41 = arith.subf %37, %40 : vector<8x56x4xf32>
    %42 = math.exp %41 : vector<8x56x4xf32>
    %cst_29 = arith.constant dense<0.000000e+00> : vector<8x4xf32>
    %43 = vector.multi_reduction <add>, %42, %cst_29 [1] : vector<8x56x4xf32> to vector<8x4xf32>
    %44 = vector.shape_cast %43 : vector<8x4xf32> to vector<8x1x4xf32>
    %45 = tpu.reciprocal %44 {approx = true} : vector<8x1x4xf32> -> vector<8x1x4xf32>
    %46 = vector.broadcast %45 : vector<8x1x4xf32> to vector<8x56x4xf32>
    %47 = arith.mulf %42, %46 : vector<8x56x4xf32>
    %48 = vector.shape_cast %47 : vector<8x56x4xf32> to vector<448x4xf32>
    %c0_30 = arith.constant 0 : index
    %c0_31 = arith.constant 0 : index
    %49 = vector.load %arg7[%c0_30, %c0_31] : memref<4x128xf32, #tpu.memory_space<vmem>>, vector<4x128xf32>
    %cst_32 = arith.constant dense<0.000000e+00> : vector<448x128xf32>
    %50 = tpu.matmul %48, %49, %cst_32 {dimension_numbers = #tpu.dot_dimension_numbers<[1], [0], [0], [1], [0, 0, 1, 1], [], []>} : vector<448x4xf32>, vector<4x128xf32>, vector<448x128xf32> -> vector<448x128xf32>
    %51 = vector.shape_cast %50 : vector<448x128xf32> to vector<8x56x128xf32>
    %52 = arith.mulf %51, %19 : vector<8x56x128xf32>
    %cst_33 = arith.constant dense<0.000000e+00> : vector<8x128xf32>
    %53 = vector.multi_reduction <add>, %52, %cst_33 [1] : vector<8x56x128xf32> to vector<8x128xf32>
    %c0_34 = arith.constant 0 : index
    %c0_35 = arith.constant 0 : index
    %54 = vector.load %arg8[%c0_34, %c0_35] : memref<128x128xf32, #tpu.memory_space<vmem>>, vector<128x128xf32>
    %cst_36 = arith.constant dense<0.000000e+00> : vector<8x128xf32>
    %55 = tpu.matmul %53, %54, %cst_36 {dimension_numbers = #tpu.dot_dimension_numbers<[1], [0], [0], [1], [0, 0, 1, 1], [], []>} : vector<8x128xf32>, vector<128x128xf32>, vector<8x128xf32> -> vector<8x128xf32>
    %c0_37 = arith.constant 0 : index
    %c0_38 = arith.constant 0 : index
    %56 = vector.load %arg9[%c0_37, %c0_38] : memref<1x128xf32, #tpu.memory_space<vmem>>, vector<1x128xf32>
    %57 = vector.broadcast %56 : vector<1x128xf32> to vector<8x128xf32>
    %58 = arith.addf %55, %57 : vector<8x128xf32>
    %c0_39 = arith.constant 0 : index
    %c0_40 = arith.constant 0 : index
    %59 = vector.load %arg10[%c0_39, %c0_40] : memref<8x128xf32, #tpu.memory_space<vmem>>, vector<8x128xf32>
    tpu.vector_store %arg10[%c0_39, %c0_40], %58 {strides = array<i32>} : memref<8x128xf32, #tpu.memory_space<vmem>>, vector<8x128xf32>,
    return
  }
  func.func @transform_0(%arg0: i32) -> (i32, i32, i32) {
    %c0_i32 = arith.constant 0 : i32
    %c0_i32_0 = arith.constant 0 : i32
    %c0_i32_1 = arith.constant 0 : i32
    return %arg0, %c0_i32, %c0_i32_0 : i32, i32, i32
  }
  func.func @transform_1(%arg0: i32) -> (i32, i32) {
    %c0_i32 = arith.constant 0 : i32
    %c0_i32_0 = arith.constant 0 : i32
    %c0_i32_1 = arith.constant 0 : i32
    return %c0_i32, %c0_i32_0 : i32, i32
  }
  func.func @transform_2(%arg0: i32) -> (i32, i32) {
    %c0_i32 = arith.constant 0 : i32
    %c0_i32_0 = arith.constant 0 : i32
    %c0_i32_1 = arith.constant 0 : i32
    return %c0_i32, %c0_i32_0 : i32, i32
  }
  func.func @transform_3(%arg0: i32) -> (i32, i32) {
    %c0_i32 = arith.constant 0 : i32
    %c0_i32_0 = arith.constant 0 : i32
    %c0_i32_1 = arith.constant 0 : i32
    return %c0_i32, %c0_i32_0 : i32, i32
  }
  func.func @transform_4(%arg0: i32) -> (i32, i32) {
    %c0_i32 = arith.constant 0 : i32
    %c0_i32_0 = arith.constant 0 : i32
    %c0_i32_1 = arith.constant 0 : i32
    return %c0_i32, %c0_i32_0 : i32, i32
  }
  func.func @transform_5(%arg0: i32) -> (i32, i32) {
    %c0_i32 = arith.constant 0 : i32
    %c0_i32_0 = arith.constant 0 : i32
    %c0_i32_1 = arith.constant 0 : i32
    return %c0_i32, %c0_i32_0 : i32, i32
  }
  func.func @transform_6(%arg0: i32) -> (i32, i32) {
    %c0_i32 = arith.constant 0 : i32
    %c0_i32_0 = arith.constant 0 : i32
    %c0_i32_1 = arith.constant 0 : i32
    return %c0_i32, %c0_i32_0 : i32, i32
  }
  func.func @transform_7(%arg0: i32) -> (i32, i32) {
    %c0_i32 = arith.constant 0 : i32
    %c0_i32_0 = arith.constant 0 : i32
    %c0_i32_1 = arith.constant 0 : i32
    return %c0_i32, %c0_i32_0 : i32, i32
  }
  func.func @transform_8(%arg0: i32) -> (i32, i32) {
    %c0_i32 = arith.constant 0 : i32
    %c0_i32_0 = arith.constant 0 : i32
    %c0_i32_1 = arith.constant 0 : i32
    return %c0_i32, %c0_i32_0 : i32, i32
  }
  func.func @transform_9(%arg0: i32) -> (i32, i32) {
    %c0_i32 = arith.constant 0 : i32
    %c0_i32_0 = arith.constant 0 : i32
    return %arg0, %c0_i32 : i32, i32
  }
}

</mosaic_0001>

<llo_original>
// kernel: tpu_custom_call.1
$region0: #{tpu_custom_call.1}
  #allocation0 [shape = 'u32[]', space=smem, size = 0x4, offset = 0x4, fixed_abs, tag = 'smem constant byte address 0x4 - core index']
  #allocation1 [shape = 'u32[144,128]{1,0:T(1,128)}', space=vmem, size = 0x12000, scoped, tag = 'internal scratch']
  #allocation2 [shape = 'f32[8,56,128]{2,1,0:T(8,128)}', space=vmem, size = 0x38000, scoped, tag = 'scratch operand']
  %s0 = inlined_call_operand.vmem [shape: f32[16,49,128], index: 0, kind: input, shape index: {}]
  %s1 = inlined_call_operand.vmem [shape: f32[56,256], index: 1, kind: input, shape index: {}]
  %s2 = inlined_call_operand.vmem [shape: f32[128,128], index: 2, kind: input, shape index: {}]
  %s3 = inlined_call_operand.vmem [shape: f32[1,128], index: 3, kind: input, shape index: {}]
  %s4 = inlined_call_operand.vmem [shape: f32[128,256], index: 4, kind: input, shape index: {}]
  %s5 = inlined_call_operand.vmem [shape: f32[128,4], index: 5, kind: input, shape index: {}]
  %s6 = inlined_call_operand.vmem [shape: f32[4,128], index: 6, kind: input, shape index: {}]
  %s7 = inlined_call_operand.vmem [shape: f32[128,128], index: 7, kind: input, shape index: {}]
  %s8 = inlined_call_operand.vmem [shape: f32[1,128], index: 8, kind: input, shape index: {}]
  %s9 = inlined_call_operand.hbm [shape: f32[16,128], index: 9, kind: output, shape index: {}]
  %s10 = sld [smem:[#allocation0]]
  $region69: #{tpu_custom_call.1} parent=0
    _
  %s12 = ssub.s32 1, %s10
  %s13 = scalar_select 0, %s12, %s10
  $region1: #{tpu_custom_call.1} parent=0
    #allocation3 [shape = 'u8[8192]{0}', space=vmem, size = 0x2000, scoped, tag = 'output window, operand 0']
    #allocation4 [shape = 's32[2]{0}', space=sflag, size = 0x8, scoped, tag = 'scoped memory for tpu_custom_call.1']
    %14 = vsyncpa [#allocation4], 0
    %s15 = scalar_lea.sflag [#allocation4], 1
    %16 = vsyncpa %s15, 0
    loop: start=0, step=1, limit=4
    $region2: #{tpu_custom_call.1} parent=1 // loop_pre_header
      _
    $region3: #{tpu_custom_call.1} parent=1 // loop_header
      %s18 = sphi 0, %s22
      %p19 = scmp.ge.s32.totalorder %s18, 4
      %s28 = sphi 0, %s30
      %s31 = sphi 0, %s28
      %s32 = sphi 0, %s31
      %s48 = sphi 0, %s32
      %s52 = sphi 0, %s52
      %s54 = sphi 0, %s52
      %s55 = sphi 0, %s54
      %s69 = sphi 0, %s55
      %s73 = sphi 0, %s73
      %s75 = sphi 0, %s73
      %s76 = sphi 0, %s75
      %s90 = sphi 0, %s76
      %s94 = sphi 0, %s94
      %s96 = sphi 0, %s94
      %s97 = sphi 0, %s96
      %s111 = sphi 0, %s97
      %s115 = sphi 0, %s115
      %s117 = sphi 0, %s115
      %s118 = sphi 0, %s117
      %s132 = sphi 0, %s118
      %s136 = sphi 0, %s136
      %s138 = sphi 0, %s136
      %s139 = sphi 0, %s138
      %s153 = sphi 0, %s139
      %s157 = sphi 0, %s157
      %s159 = sphi 0, %s157
      %s160 = sphi 0, %s159
      %s174 = sphi 0, %s160
      %s178 = sphi 0, %s178
      %s180 = sphi 0, %s178
      %s181 = sphi 0, %s180
      %s195 = sphi 0, %s181
      %s199 = sphi 0, %s199
      %s201 = sphi 0, %s199
      %s202 = sphi 0, %s201
      %s216 = sphi 0, %s202
      %s222 = sphi 0, %s224
      %s225 = sphi 0, %s222
      %s226 = sphi 0, %s225
      %s242 = sphi 0, %s226
    $region4: #{tpu_custom_call.1} parent=1 // loop_header_branch
      %21 = sbr.rel (%p19) target = $region8
    $region5: #{tpu_custom_call.1} parent=1 // loop_body
      %s23 = ssub.s32 %s18, 1
      %s24 = ssub.s32 %s18, 2
      %s25 = sadd.s32 %s18, 1
      %s26 = ssub.s32 %s18, %s25
      %p27 = scmp.eq.s32.totalorder %s26, 0
      %s29 = sadd.s32 %s28, 1
      %s30 = scalar_select %p27, %s28, %s29
      %p33 = pneg %p27
      %p34 = scmp.eq.s32.totalorder %s18, 1
      %p35 = por %p33, %p34
      %p36 = scmp.ne.s32.totalorder %s28, %s31
      %p37 = scmp.eq.s32.totalorder %s18, 0
      %p38 = por %p36, %p37
      %p39 = scmp.ne.s32.totalorder %s28, %s31
      %p40 = scmp.eq.s32.totalorder %s23, 1
      %p41 = por %p39, %p40
      %p42 = scmp.ne.s32.totalorder %s31, %s32
      %p43 = scmp.eq.s32.totalorder %s23, 0
      %p44 = por %p42, %p43
      %p45 = scmp.ne.s32.totalorder %s31, %s32
      %p46 = scmp.eq.s32.totalorder %s24, 1
      %p47 = por %p45, %p46
      %p49 = scmp.ne.s32.totalorder %s32, %s48
      %p50 = scmp.eq.s32.totalorder %s24, 0
      %p51 = por %p49, %p50
      %s53 = sadd.s32 %s52, 1
      %p56 = scmp.eq.s32.totalorder %s18, 1
      %p57 = scmp.ne.s32.totalorder %s52, %s54
      %p58 = scmp.eq.s32.totalorder %s18, 0
      %p59 = por %p57, %p58
      %p60 = scmp.ne.s32.totalorder %s52, %s54
      %p61 = scmp.eq.s32.totalorder %s23, 1
      %p62 = por %p60, %p61
      %p63 = scmp.ne.s32.totalorder %s54, %s55
      %p64 = scmp.eq.s32.totalorder %s23, 0
      %p65 = por %p63, %p64
      %p66 = scmp.ne.s32.totalorder %s54, %s55
      %p67 = scmp.eq.s32.totalorder %s24, 1
      %p68 = por %p66, %p67
      %p70 = scmp.ne.s32.totalorder %s55, %s69
      %p71 = scmp.eq.s32.totalorder %s24, 0
      %p72 = por %p70, %p71
      %s74 = sadd.s32 %s73, 1
      %p77 = scmp.eq.s32.totalorder %s18, 1
      %p78 = scmp.ne.s32.totalorder %s73, %s75
      %p79 = scmp.eq.s32.totalorder %s18, 0
      %p80 = por %p78, %p79
      %p81 = scmp.ne.s32.totalorder %s73, %s75
      %p82 = scmp.eq.s32.totalorder %s23, 1
      %p83 = por %p81, %p82
      %p84 = scmp.ne.s32.totalorder %s75, %s76
      %p85 = scmp.eq.s32.totalorder %s23, 0
      %p86 = por %p84, %p85
      %p87 = scmp.ne.s32.totalorder %s75, %s76
      %p88 = scmp.eq.s32.totalorder %s24, 1
      %p89 = por %p87, %p88
      %p91 = scmp.ne.s32.totalorder %s76, %s90
      %p92 = scmp.eq.s32.totalorder %s24, 0
      %p93 = por %p91, %p92
      %s95 = sadd.s32 %s94, 1
      %p98 = scmp.eq.s32.totalorder %s18, 1
      %p99 = scmp.ne.s32.totalorder %s94, %s96
      %p100 = scmp.eq.s32.totalorder %s18, 0
      %p101 = por %p99, %p100
      %p102 = scmp.ne.s32.totalorder %s94, %s96
      %p103 = scmp.eq.s32.totalorder %s23, 1
      %p104 = por %p102, %p103
      %p105 = scmp.ne.s32.totalorder %s96, %s97
      %p106 = scmp.eq.s32.totalorder %s23, 0
      %p107 = por %p105, %p106
      %p108 = scmp.ne.s32.totalorder %s96, %s97
      %p109 = scmp.eq.s32.totalorder %s24, 1
      %p110 = por %p108, %p109
      %p112 = scmp.ne.s32.totalorder %s97, %s111
      %p113 = scmp.eq.s32.totalorder %s24, 0
      %p114 = por %p112, %p113
      %s116 = sadd.s32 %s115, 1
      %p119 = scmp.eq.s32.totalorder %s18, 1
      %p120 = scmp.ne.s32.totalorder %s115, %s117
      %p121 = scmp.eq.s32.totalorder %s18, 0
      %p122 = por %p120, %p121
      %p123 = scmp.ne.s32.totalorder %s115, %s117
      %p124 = scmp.eq.s32.totalorder %s23, 1
      %p125 = por %p123, %p124
      %p126 = scmp.ne.s32.totalorder %s117, %s118
      %p127 = scmp.eq.s32.totalorder %s23, 0
      %p128 = por %p126, %p127
      %p129 = scmp.ne.s32.totalorder %s117, %s118
      %p130 = scmp.eq.s32.totalorder %s24, 1
      %p131 = por %p129, %p130
      %p133 = scmp.ne.s32.totalorder %s118, %s132
      %p134 = scmp.eq.s32.totalorder %s24, 0
      %p135 = por %p133, %p134
      %s137 = sadd.s32 %s136, 1
      %p140 = scmp.eq.s32.totalorder %s18, 1
      %p141 = scmp.ne.s32.totalorder %s136, %s138
      %p142 = scmp.eq.s32.totalorder %s18, 0
      %p143 = por %p141, %p142
      %p144 = scmp.ne.s32.totalorder %s136, %s138
      %p145 = scmp.eq.s32.totalorder %s23, 1
      %p146 = por %p144, %p145
      %p147 = scmp.ne.s32.totalorder %s138, %s139
      %p148 = scmp.eq.s32.totalorder %s23, 0
      %p149 = por %p147, %p148
      %p150 = scmp.ne.s32.totalorder %s138, %s139
      %p151 = scmp.eq.s32.totalorder %s24, 1
      %p152 = por %p150, %p151
      %p154 = scmp.ne.s32.totalorder %s139, %s153
      %p155 = scmp.eq.s32.totalorder %s24, 0
      %p156 = por %p154, %p155
      %s158 = sadd.s32 %s157, 1
      %p161 = scmp.eq.s32.totalorder %s18, 1
      %p162 = scmp.ne.s32.totalorder %s157, %s159
      %p163 = scmp.eq.s32.totalorder %s18, 0
      %p164 = por %p162, %p163
      %p165 = scmp.ne.s32.totalorder %s157, %s159
      %p166 = scmp.eq.s32.totalorder %s23, 1
      %p167 = por %p165, %p166
      %p168 = scmp.ne.s32.totalorder %s159, %s160
      %p169 = scmp.eq.s32.totalorder %s23, 0
      %p170 = por %p168, %p169
      %p171 = scmp.ne.s32.totalorder %s159, %s160
      %p172 = scmp.eq.s32.totalorder %s24, 1
      %p173 = por %p171, %p172
      %p175 = scmp.ne.s32.totalorder %s160, %s174
      %p176 = scmp.eq.s32.totalorder %s24, 0
      %p177 = por %p175, %p176
      %s179 = sadd.s32 %s178, 1
      %p182 = scmp.eq.s32.totalorder %s18, 1
      %p183 = scmp.ne.s32.totalorder %s178, %s180
      %p184 = scmp.eq.s32.totalorder %s18, 0
      %p185 = por %p183, %p184
      %p186 = scmp.ne.s32.totalorder %s178, %s180
      %p187 = scmp.eq.s32.totalorder %s23, 1
      %p188 = por %p186, %p187
      %p189 = scmp.ne.s32.totalorder %s180, %s181
      %p190 = scmp.eq.s32.totalorder %s23, 0
      %p191 = por %p189, %p190
      %p192 = scmp.ne.s32.totalorder %s180, %s181
      %p193 = scmp.eq.s32.totalorder %s24, 1
      %p194 = por %p192, %p193
      %p196 = scmp.ne.s32.totalorder %s181, %s195
      %p197 = scmp.eq.s32.totalorder %s24, 0
      %p198 = por %p196, %p197
      %s200 = sadd.s32 %s199, 1
      %p203 = scmp.eq.s32.totalorder %s18, 1
      %p204 = scmp.ne.s32.totalorder %s199, %s201
      %p205 = scmp.eq.s32.totalorder %s18, 0
      %p206 = por %p204, %p205
      %p207 = scmp.ne.s32.totalorder %s199, %s201
      %p208 = scmp.eq.s32.totalorder %s23, 1
      %p209 = por %p207, %p208
      %p210 = scmp.ne.s32.totalorder %s201, %s202
      %p211 = scmp.eq.s32.totalorder %s23, 0
      %p212 = por %p210, %p211
      %p213 = scmp.ne.s32.totalorder %s201, %s202
      %p214 = scmp.eq.s32.totalorder %s24, 1
      %p215 = por %p213, %p214
      %p217 = scmp.ne.s32.totalorder %s202, %s216
      %p218 = scmp.eq.s32.totalorder %s24, 0
      %p219 = por %p217, %p218
      %s220 = ssub.s32 %s18, %s25
      %p221 = scmp.eq.s32.totalorder %s220, 0
      %s223 = sadd.s32 %s222, 1
      %s224 = scalar_select %p221, %s222, %s223
      %p227 = pneg %p221
      %p228 = scmp.eq.s32.totalorder %s18, 1
      %p229 = por %p227, %p228
      %p230 = scmp.ne.s32.totalorder %s222, %s225
      %p231 = scmp.eq.s32.totalorder %s18, 0
      %p232 = por %p230, %p231
      %p233 = scmp.ne.s32.totalorder %s222, %s225
      %p234 = scmp.eq.s32.totalorder %s23, 1
      %p235 = por %p233, %p234
      %p236 = scmp.ne.s32.totalorder %s225, %s226
      %p237 = scmp.eq.s32.totalorder %s23, 0
      %p238 = por %p236, %p237
      %p239 = scmp.ne.s32.totalorder %s225, %s226
      %p240 = scmp.eq.s32.totalorder %s24, 1
      %p241 = por %p239, %p240
      %p243 = scmp.ne.s32.totalorder %s226, %s242
      %p244 = scmp.eq.s32.totalorder %s24, 0
      %p245 = por %p243, %p244
      %p246 = scmp.le.s32.totalorder 1, %s18
      %p247 = scmp.lt.s32.totalorder %s18, 3
      %p248 = pnand %p246, %p247
      %p249 = pneg %p248
      // Predicated region
      $region9: #{tpu_custom_call.1} parent=5 // pred_check
        _
      $region10: #{tpu_custom_call.1} parent=5 // pred_check_branch
        %251 = sbr.rel (%p248) target = $region12
      $region11: #{tpu_custom_call.1} parent=5 // pred_region
        %s252 = ssub.s32 %s18, 1
        // Predicated region
        $region13: #{tpu_custom_call.1} parent=11 // pred_check
          %p253 = pneg %p65
        $region14: #{tpu_custom_call.1} parent=11 // pred_check_branch
          %255 = sbr.rel (%p253) target = $region16
        $region15: #{tpu_custom_call.1} parent=11 // pred_region
          _
        $region16: #{tpu_custom_call.1} parent=11 // pred_fallthru
          _
        // Predicated region
        $region17: #{tpu_custom_call.1} parent=11 // pred_check
          %p256 = pneg %p86
        $region18: #{tpu_custom_call.1} parent=11 // pred_check_branch
          %258 = sbr.rel (%p256) target = $region20
        $region19: #{tpu_custom_call.1} parent=11 // pred_region
          _
        $region20: #{tpu_custom_call.1} parent=11 // pred_fallthru
          _
        // Predicated region
        $region21: #{tpu_custom_call.1} parent=11 // pred_check
          %p259 = pneg %p107
        $region22: #{tpu_custom_call.1} parent=11 // pred_check_branch
          %261 = sbr.rel (%p259) target = $region24
        $region23: #{tpu_custom_call.1} parent=11 // pred_region
          _
        $region24: #{tpu_custom_call.1} parent=11 // pred_fallthru
          _
        // Predicated region
        $region25: #{tpu_custom_call.1} parent=11 // pred_check
          %p262 = pneg %p128
        $region26: #{tpu_custom_call.1} parent=11 // pred_check_branch
          %264 = sbr.rel (%p262) target = $region28
        $region27: #{tpu_custom_call.1} parent=11 // pred_region
          _
        $region28: #{tpu_custom_call.1} parent=11 // pred_fallthru
          _
        // Predicated region
        $region29: #{tpu_custom_call.1} parent=11 // pred_check
          %p265 = pneg %p149
        $region30: #{tpu_custom_call.1} parent=11 // pred_check_branch
          %267 = sbr.rel (%p265) target = $region32
        $region31: #{tpu_custom_call.1} parent=11 // pred_region
          _
        $region32: #{tpu_custom_call.1} parent=11 // pred_fallthru
          _
        // Predicated region
        $region33: #{tpu_custom_call.1} parent=11 // pred_check
          %p268 = pneg %p170
        $region34: #{tpu_custom_call.1} parent=11 // pred_check_branch
          %270 = sbr.rel (%p268) target = $region36
        $region35: #{tpu_custom_call.1} parent=11 // pred_region
          _
        $region36: #{tpu_custom_call.1} parent=11 // pred_fallthru
          _
        // Predicated region
        $region37: #{tpu_custom_call.1} parent=11 // pred_check
          %p271 = pneg %p191
        $region38: #{tpu_custom_call.1} parent=11 // pred_check_branch
          %273 = sbr.rel (%p271) target = $region40
        $region39: #{tpu_custom_call.1} parent=11 // pred_region
          _
        $region40: #{tpu_custom_call.1} parent=11 // pred_fallthru
          _
        // Predicated region
        $region41: #{tpu_custom_call.1} parent=11 // pred_check
          %p274 = pneg %p212
        $region42: #{tpu_custom_call.1} parent=11 // pred_check_branch
          %276 = sbr.rel (%p274) target = $region44
        $region43: #{tpu_custom_call.1} parent=11 // pred_region
          _
        $region44: #{tpu_custom_call.1} parent=11 // pred_fallthru
          _
      $region12: #{tpu_custom_call.1} parent=5 // pred_fallthru
        _
      %p277 = scmp.lt.s32.totalorder %s18, 2
      // Predicated region
      $region45: #{tpu_custom_call.1} parent=5 // pred_check
        %p278 = pneg %p277
      $region46: #{tpu_custom_call.1} parent=5 // pred_check_branch
        %280 = sbr.rel (%p278) target = $region48
      $region47: #{tpu_custom_call.1} parent=5 // pred_region
        // Predicated region
        $region49: #{tpu_custom_call.1} parent=47 // pred_check
          %p281 = pneg %p38
        $region50: #{tpu_custom_call.1} parent=47 // pred_check_branch
          %283 = sbr.rel (%p281) target = $region52
        $region51: #{tpu_custom_call.1} parent=47 // pred_region
          %s284 = smul.u32 8, %s18
          %p285 = scmp.lt.s32.totalorder %s284, 15
          %s286 = scalar_select %p285, %s284, 15
          %s287 = smul.addr %s286, 7
          %s288 = smul.addr %s287, 8
          %s289 = scalar_lea.vmem %s0, %s288
          %s290 = smul.u32 8, %s18
        $region52: #{tpu_custom_call.1} parent=47 // pred_fallthru
          _
      $region48: #{tpu_custom_call.1} parent=5 // pred_fallthru
        _
      %p291 = scmp.le.s32.totalorder 1, %s18
      %p292 = scmp.lt.s32.totalorder %s18, 3
      %p293 = pnand %p291, %p292
      %p294 = pneg %p293
      // Predicated region
      $region53: #{tpu_custom_call.1} parent=5 // pred_check
        _
      $region54: #{tpu_custom_call.1} parent=5 // pred_check_branch
        %296 = sbr.rel (%p293) target = $region56
      $region55: #{tpu_custom_call.1} parent=5 // pred_region
        %s297 = ssub.s32 %s18, 1
        %s298 = smul.u32 8, %s23
        %p299 = scmp.lt.s32.totalorder %s298, 15
        %s300 = scalar_select %p299, %s298, 15
        %s301 = smul.addr %s300, 7
        %s302 = smul.addr %s301, 8
        %s303 = scalar_lea.vmem %s0, %s302
        %p304 = pneg %p44
        %p305 = pneg %p41
        %p306 = pneg %p65
        %p307 = pneg %p62
        %p308 = pneg %p86
        %p309 = pneg %p83
        %p310 = pneg %p107
        %p311 = pneg %p104
        %p312 = pneg %p128
        %p313 = pneg %p125
        %p314 = pneg %p149
        %p315 = pneg %p146
        %p316 = pneg %p170
        %p317 = pneg %p167
        %p318 = pneg %p191
        %p319 = pneg %p188
        %p320 = pneg %p212
        %p321 = pneg %p209
        %p322 = pneg %p238
        %p323 = pneg %p235
        %s324 = sand.u32 %s225, 1
        %s325 = scalar_lea.sflag [#allocation4], %s324
        %s326 = sand.u32 %s225, 1
        %s327 = smul.addr %s326, 8
        %s328 = scalar_lea.vmem [#allocation3], %s327
        %s329 = smul.u32 8, %s23
        %p330 = scmp.lt.s32.totalorder %s329, 15
        %s331 = scalar_select %p330, %s329, 15
        %s332 = smul.addr %s331, 7
        %s333 = smul.addr %s332, 8
        %s334 = scalar_lea.vmem %s0, %s333
        %s335 = smul.u32 8, %s23
        %v336 = vld [vmem:[%s334] sm:$0xff]
        %v337 = vld [vmem:[%s334 + $0x8] sm:$0xff]
        %v338 = vld [vmem:[%s334 + $0x10] sm:$0xff]
        %v339 = vld [vmem:[%s334 + $0x18] sm:$0xff]
        %v340 = vld [vmem:[%s334 + $0x20] sm:$0xff]
        %v341 = vld [vmem:[%s334 + $0x28] sm:$0xff]
        %v342 = vld [vmem:[%s334 + $0x30] sm:$0x1]
        %v343 = vld [vmem:[%s334 + $0x38] sm:$0xff]
        %v344 = vld [vmem:[%s334 + $0x40] sm:$0xff]
        %v345 = vld [vmem:[%s334 + $0x48] sm:$0xff]
        %v346 = vld [vmem:[%s334 + $0x50] sm:$0xff]
        %v347 = vld [vmem:[%s334 + $0x58] sm:$0xff]
        %v348 = vld [vmem:[%s334 + $0x60] sm:$0xff]
        %v349 = vld [vmem:[%s334 + $0x68] sm:$0x1]
        %v350 = vld [vmem:[%s334 + $0x70] sm:$0xff]
        %v351 = vld [vmem:[%s334 + $0x78] sm:$0xff]
        %v352 = vld [vmem:[%s334 + $0x80] sm:$0xff]
        %v353 = vld [vmem:[%s334 + $0x88] sm:$0xff]
        %v354 = vld [vmem:[%s334 + $0x90] sm:$0xff]
        %v355 = vld [vmem:[%s334 + $0x98] sm:$0xff]
        %v356 = vld [vmem:[%s334 + $0xa0] sm:$0x1]
        %v357 = vld [vmem:[%s334 + $0xa8] sm:$0xff]
        %v358 = vld [vmem:[%s334 + $0xb0] sm:$0xff]
        %v359 = vld [vmem:[%s334 + $0xb8] sm:$0xff]
        %v360 = vld [vmem:[%s334 + $0xc0] sm:$0xff]
        %v361 = vld [vmem:[%s334 + $0xc8] sm:$0xff]
        %v362 = vld [vmem:[%s334 + $0xd0] sm:$0xff]
        %v363 = vld [vmem:[%s334 + $0xd8] sm:$0x1]
        %v364 = vld [vmem:[%s334 + $0xe0] sm:$0xff]
        %v365 = vld [vmem:[%s334 + $0xe8] sm:$0xff]
        %v366 = vld [vmem:[%s334 + $0xf0] sm:$0xff]
        %v367 = vld [vmem:[%s334 + $0xf8] sm:$0xff]
        %v368 = vld [vmem:[%s334 + $0x100] sm:$0xff]
        %v369 = vld [vmem:[%s334 + $0x108] sm:$0xff]
        %v370 = vld [vmem:[%s334 + $0x110] sm:$0x1]
        %v371 = vld [vmem:[%s334 + $0x118] sm:$0xff]
        %v372 = vld [vmem:[%s334 + $0x120] sm:$0xff]
        %v373 = vld [vmem:[%s334 + $0x128] sm:$0xff]
        %v374 = vld [vmem:[%s334 + $0x130] sm:$0xff]
        %v375 = vld [vmem:[%s334 + $0x138] sm:$0xff]
        %v376 = vld [vmem:[%s334 + $0x140] sm:$0xff]
        %v377 = vld [vmem:[%s334 + $0x148] sm:$0x1]
        %v378 = vld [vmem:[%s334 + $0x150] sm:$0xff]
        %v379 = vld [vmem:[%s334 + $0x158] sm:$0xff]
        %v380 = vld [vmem:[%s334 + $0x160] sm:$0xff]
        %v381 = vld [vmem:[%s334 + $0x168] sm:$0xff]
        %v382 = vld [vmem:[%s334 + $0x170] sm:$0xff]
        %v383 = vld [vmem:[%s334 + $0x178] sm:$0xff]
        %v384 = vld [vmem:[%s334 + $0x180] sm:$0x1]
        %v385 = vld [vmem:[%s334 + $0x188] sm:$0xff]
        %v386 = vld [vmem:[%s334 + $0x190] sm:$0xff]
        %v387 = vld [vmem:[%s334 + $0x198] sm:$0xff]
        %v388 = vld [vmem:[%s334 + $0x1a0] sm:$0xff]
        %v389 = vld [vmem:[%s334 + $0x1a8] sm:$0xff]
        %v390 = vld [vmem:[%s334 + $0x1b0] sm:$0xff]
        %v391 = vld [vmem:[%s334 + $0x1b8] sm:$0x1]
        %392 = vst [vmem:[#allocation2] sm:$0xff] %v336
        %393 = vst [vmem:[#allocation2 + $0x8] sm:$0xff] %v337
        %394 = vst [vmem:[#allocation2 + $0x10] sm:$0xff] %v338
        %395 = vst [vmem:[#allocation2 + $0x18] sm:$0xff] %v339
        %396 = vst [vmem:[#allocation2 + $0x20] sm:$0xff] %v340
        %397 = vst [vmem:[#allocation2 + $0x28] sm:$0xff] %v341
        %398 = vst [vmem:[#allocation2 + $0x30] sm:$0x1] %v342
        %399 = vst [vmem:[#allocation2 + $0x38] sm:$0xff] %v343
        %400 = vst [vmem:[#allocation2 + $0x40] sm:$0xff] %v344
        %401 = vst [vmem:[#allocation2 + $0x48] sm:$0xff] %v345
        %402 = vst [vmem:[#allocation2 + $0x50] sm:$0xff] %v346
        %403 = vst [vmem:[#allocation2 + $0x58] sm:$0xff] %v347
        %404 = vst [vmem:[#allocation2 + $0x60] sm:$0xff] %v348
        %405 = vst [vmem:[#allocation2 + $0x68] sm:$0x1] %v349
        %406 = vst [vmem:[#allocation2 + $0x70] sm:$0xff] %v350
        %407 = vst [vmem:[#allocation2 + $0x78] sm:$0xff] %v351
        %408 = vst [vmem:[#allocation2 + $0x80] sm:$0xff] %v352
        %409 = vst [vmem:[#allocation2 + $0x88] sm:$0xff] %v353
        %410 = vst [vmem:[#allocation2 + $0x90] sm:$0xff] %v354
        %411 = vst [vmem:[#allocation2 + $0x98] sm:$0xff] %v355
        %412 = vst [vmem:[#allocation2 + $0xa0] sm:$0x1] %v356
        %413 = vst [vmem:[#allocation2 + $0xa8] sm:$0xff] %v357
        %414 = vst [vmem:[#allocation2 + $0xb0] sm:$0xff] %v358
        %415 = vst [vmem:[#allocation2 + $0xb8] sm:$0xff] %v359
        %416 = vst [vmem:[#allocation2 + $0xc0] sm:$0xff] %v360
        %417 = vst [vmem:[#allocation2 + $0xc8] sm:$0xff] %v361
        %418 = vst [vmem:[#allocation2 + $0xd0] sm:$0xff] %v362
        %419 = vst [vmem:[#allocation2 + $0xd8] sm:$0x1] %v363
        %420 = vst [vmem:[#allocation2 + $0xe0] sm:$0xff] %v364
        %421 = vst [vmem:[#allocation2 + $0xe8] sm:$0xff] %v365
        %422 = vst [vmem:[#allocation2 + $0xf0] sm:$0xff] %v366
        %423 = vst [vmem:[#allocation2 + $0xf8] sm:$0xff] %v367
        %424 = vst [vmem:[#allocation2 + $0x100] sm:$0xff] %v368
        %425 = vst [vmem:[#allocation2 + $0x108] sm:$0xff] %v369
        %426 = vst [vmem:[#allocation2 + $0x110] sm:$0x1] %v370
        %427 = vst [vmem:[#allocation2 + $0x118] sm:$0xff] %v371
        %428 = vst [vmem:[#allocation2 + $0x120] sm:$0xff] %v372
        %429 = vst [vmem:[#allocation2 + $0x128] sm:$0xff] %v373
        %430 = vst [vmem:[#allocation2 + $0x130] sm:$0xff] %v374
        %431 = vst [vmem:[#allocation2 + $0x138] sm:$0xff] %v375
        %432 = vst [vmem:[#allocation2 + $0x140] sm:$0xff] %v376
        %433 = vst [vmem:[#allocation2 + $0x148] sm:$0x1] %v377
        %434 = vst [vmem:[#allocation2 + $0x150] sm:$0xff] %v378
        %435 = vst [vmem:[#allocation2 + $0x158] sm:$0xff] %v379
        %436 = vst [vmem:[#allocation2 + $0x160] sm:$0xff] %v380
        %437 = vst [vmem:[#allocation2 + $0x168] sm:$0xff] %v381
        %438 = vst [vmem:[#allocation2 + $0x170] sm:$0xff] %v382
        %439 = vst [vmem:[#allocation2 + $0x178] sm:$0xff] %v383
        %440 = vst [vmem:[#allocation2 + $0x180] sm:$0x1] %v384
        %441 = vst [vmem:[#allocation2 + $0x188] sm:$0xff] %v385
        %442 = vst [vmem:[#allocation2 + $0x190] sm:$0xff] %v386
        %443 = vst [vmem:[#allocation2 + $0x198] sm:$0xff] %v387
        %444 = vst [vmem:[#allocation2 + $0x1a0] sm:$0xff] %v388
        %445 = vst [vmem:[#allocation2 + $0x1a8] sm:$0xff] %v389
        %446 = vst [vmem:[#allocation2 + $0x1b0] sm:$0xff] %v390
        %447 = vst [vmem:[#allocation2 + $0x1b8] sm:$0x1] %v391
        %v448 = vadd.f32 %v336, %v337
        %v449 = vadd.f32 %v448, %v338
        %v450 = vadd.f32 %v449, %v339
        %v451 = vadd.f32 %v450, %v340
        %v452 = vadd.f32 %v451, %v341
        %vm453 = vcmask 1040384
        %v454 = vsel %vm453, %v342, 0.0
        %v455 = vadd.f32 %v452, %v454
        %v456 = vrot.slane %v455, 4
        %v457 = vadd.f32 %v455, %v456
        %v458 = vrot.slane %v457, 2
        %v459 = vadd.f32 %v457, %v458
        %v460 = vrot.slane %v459, 1
        %v461 = vadd.f32 %v459, %v460
        %v462 = vadd.f32 %v343, %v344
        %v463 = vadd.f32 %v462, %v345
        %v464 = vadd.f32 %v463, %v346
        %v465 = vadd.f32 %v464, %v347
        %v466 = vadd.f32 %v465, %v348
        %v467 = vsel %vm453, %v349, 0.0
        %v468 = vadd.f32 %v466, %v467
        %v469 = vrot.slane %v468, 4
        %v470 = vadd.f32 %v468, %v469
        %v471 = vrot.slane %v470, 2
        %v472 = vadd.f32 %v470, %v471
        %v473 = vrot.slane %v472, 1
        %v474 = vadd.f32 %v472, %v473
        %v475 = vadd.f32 %v350, %v351
        %v476 = vadd.f32 %v475, %v352
        %v477 = vadd.f32 %v476, %v353
        %v478 = vadd.f32 %v477, %v354
        %v479 = vadd.f32 %v478, %v355
        %v480 = vsel %vm453, %v356, 0.0
        %v481 = vadd.f32 %v479, %v480
        %v482 = vrot.slane %v481, 4
        %v483 = vadd.f32 %v481, %v482
        %v484 = vrot.slane %v483, 2
        %v485 = vadd.f32 %v483, %v484
        %v486 = vrot.slane %v485, 1
        %v487 = vadd.f32 %v485, %v486
        %v488 = vadd.f32 %v357, %v358
        %v489 = vadd.f32 %v488, %v359
        %v490 = vadd.f32 %v489, %v360
        %v491 = vadd.f32 %v490, %v361
        %v492 = vadd.f32 %v491, %v362
        %v493 = vsel %vm453, %v363, 0.0
        %v494 = vadd.f32 %v492, %v493
        %v495 = vrot.slane %v494, 4
        %v496 = vadd.f32 %v494, %v495
        %v497 = vrot.slane %v496, 2
        %v498 = vadd.f32 %v496, %v497
        %v499 = vrot.slane %v498, 1
        %v500 = vadd.f32 %v498, %v499
        %v501 = vadd.f32 %v364, %v365
        %v502 = vadd.f32 %v501, %v366
        %v503 = vadd.f32 %v502, %v367
        %v504 = vadd.f32 %v503, %v368
        %v505 = vadd.f32 %v504, %v369
        %v506 = vsel %vm453, %v370, 0.0
        %v507 = vadd.f32 %v505, %v506
        %v508 = vrot.slane %v507, 4
        %v509 = vadd.f32 %v507, %v508
        %v510 = vrot.slane %v509, 2
        %v511 = vadd.f32 %v509, %v510
        %v512 = vrot.slane %v511, 1
        %v513 = vadd.f32 %v511, %v512
        %v514 = vadd.f32 %v371, %v372
        %v515 = vadd.f32 %v514, %v373
        %v516 = vadd.f32 %v515, %v374
        %v517 = vadd.f32 %v516, %v375
        %v518 = vadd.f32 %v517, %v376
        %v519 = vsel %vm453, %v377, 0.0
        %v520 = vadd.f32 %v518, %v519
        %v521 = vrot.slane %v520, 4
        %v522 = vadd.f32 %v520, %v521
        %v523 = vrot.slane %v522, 2
        %v524 = vadd.f32 %v522, %v523
        %v525 = vrot.slane %v524, 1
        %v526 = vadd.f32 %v524, %v525
        %v527 = vadd.f32 %v378, %v379
        %v528 = vadd.f32 %v527, %v380
        %v529 = vadd.f32 %v528, %v381
        %v530 = vadd.f32 %v529, %v382
        %v531 = vadd.f32 %v530, %v383
        %v532 = vsel %vm453, %v384, 0.0
        %v533 = vadd.f32 %v531, %v532
        %v534 = vrot.slane %v533, 4
        %v535 = vadd.f32 %v533, %v534
        %v536 = vrot.slane %v535, 2
        %v537 = vadd.f32 %v535, %v536
        %v538 = vrot.slane %v537, 1
        %v539 = vadd.f32 %v537, %v538
        %v540 = vadd.f32 %v385, %v386
        %v541 = vadd.f32 %v540, %v387
        %v542 = vadd.f32 %v541, %v388
        %v543 = vadd.f32 %v542, %v389
        %v544 = vadd.f32 %v543, %v390
        %v545 = vsel %vm453, %v391, 0.0
        %v546 = vadd.f32 %v544, %v545
        %v547 = vrot.slane %v546, 4
        %v548 = vadd.f32 %v546, %v547
        %v549 = vrot.slane %v548, 2
        %v550 = vadd.f32 %v548, %v549
        %v551 = vrot.slane %v550, 1
        %v552 = vadd.f32 %v550, %v551
        %v553 = vrcp.pop 49.0
        %v554 = vmul.f32 %v461, %v553
        %v555 = vmul.f32 %v474, %v553
        %v556 = vmul.f32 %v487, %v553
        %v557 = vmul.f32 %v500, %v553
        %v558 = vmul.f32 %v513, %v553
        %v559 = vmul.f32 %v526, %v553
        %v560 = vmul.f32 %v539, %v553
        %v561 = vmul.f32 %v552, %v553
        %562 = vst [vmem:[#allocation2 + $0x31] sm:$0x1] %v554
        %563 = vst [vmem:[#allocation2 + $0x69] sm:$0x1] %v555
        %564 = vst [vmem:[#allocation2 + $0xa1] sm:$0x1] %v556
        %565 = vst [vmem:[#allocation2 + $0xd9] sm:$0x1] %v557
        %566 = vst [vmem:[#allocation2 + $0x111] sm:$0x1] %v558
        %567 = vst [vmem:[#allocation2 + $0x149] sm:$0x1] %v559
        %568 = vst [vmem:[#allocation2 + $0x181] sm:$0x1] %v560
        %569 = vst [vmem:[#allocation2 + $0x1b9] sm:$0x1] %v561
        %570 = vst [vmem:[#allocation2 + $0x32] sm:$0x3f] 0.0
        %571 = vst [vmem:[#allocation2 + $0x6a] sm:$0x3f] 0.0
        %572 = vst [vmem:[#allocation2 + $0xa2] sm:$0x3f] 0.0
        %573 = vst [vmem:[#allocation2 + $0xda] sm:$0x3f] 0.0
        %574 = vst [vmem:[#allocation2 + $0x112] sm:$0x3f] 0.0
        %575 = vst [vmem:[#allocation2 + $0x14a] sm:$0x3f] 0.0
        %576 = vst [vmem:[#allocation2 + $0x182] sm:$0x3f] 0.0
        %577 = vst [vmem:[#allocation2 + $0x1ba] sm:$0x3f] 0.0
        %v578 = vld [vmem:[#allocation2] sm:$0xff]
        %v579 = vld [vmem:[#allocation2 + $0x8] sm:$0xff]
        %v580 = vld [vmem:[#allocation2 + $0x10] sm:$0xff]
        %v581 = vld [vmem:[#allocation2 + $0x18] sm:$0xff]
        %v582 = vld [vmem:[#allocation2 + $0x20] sm:$0xff]
        %v583 = vld [vmem:[#allocation2 + $0x28] sm:$0xff]
        %v584 = vld [vmem:[#allocation2 + $0x30] sm:$0xff]
        %v585 = vld [vmem:[#allocation2 + $0x38] sm:$0xff]
        %v586 = vld [vmem:[#allocation2 + $0x40] sm:$0xff]
        %v587 = vld [vmem:[#allocation2 + $0x48] sm:$0xff]
        %v588 = vld [vmem:[#allocation2 + $0x50] sm:$0xff]
        %v589 = vld [vmem:[#allocation2 + $0x58] sm:$0xff]
        %v590 = vld [vmem:[#allocation2 + $0x60] sm:$0xff]
        %v591 = vld [vmem:[#allocation2 + $0x68] sm:$0xff]
        %v592 = vld [vmem:[#allocation2 + $0x70] sm:$0xff]
        %v593 = vld [vmem:[#allocation2 + $0x78] sm:$0xff]
        %v594 = vld [vmem:[#allocation2 + $0x80] sm:$0xff]
        %v595 = vld [vmem:[#allocation2 + $0x88] sm:$0xff]
        %v596 = vld [vmem:[#allocation2 + $0x90] sm:$0xff]
        %v597 = vld [vmem:[#allocation2 + $0x98] sm:$0xff]
        %v598 = vld [vmem:[#allocation2 + $0xa0] sm:$0xff]
        %v599 = vld [vmem:[#allocation2 + $0xa8] sm:$0xff]
        %v600 = vld [vmem:[#allocation2 + $0xb0] sm:$0xff]
        %v601 = vld [vmem:[#allocation2 + $0xb8] sm:$0xff]
        %v602 = vld [vmem:[#allocation2 + $0xc0] sm:$0xff]
        %v603 = vld [vmem:[#allocation2 + $0xc8] sm:$0xff]
        %v604 = vld [vmem:[#allocation2 + $0xd0] sm:$0xff]
        %v605 = vld [vmem:[#allocation2 + $0xd8] sm:$0xff]
        %v606 = vld [vmem:[#allocation2 + $0xe0] sm:$0xff]
        %v607 = vld [vmem:[#allocation2 + $0xe8] sm:$0xff]
        %v608 = vld [vmem:[#allocation2 + $0xf0] sm:$0xff]
        %v609 = vld [vmem:[#allocation2 + $0xf8] sm:$0xff]
        %v610 = vld [vmem:[#allocation2 + $0x100] sm:$0xff]
        %v611 = vld [vmem:[#allocation2 + $0x108] sm:$0xff]
        %v612 = vld [vmem:[#allocation2 + $0x110] sm:$0xff]
        %v613 = vld [vmem:[#allocation2 + $0x118] sm:$0xff]
        %v614 = vld [vmem:[#allocation2 + $0x120] sm:$0xff]
        %v615 = vld [vmem:[#allocation2 + $0x128] sm:$0xff]
        %v616 = vld [vmem:[#allocation2 + $0x130] sm:$0xff]
        %v617 = vld [vmem:[#allocation2 + $0x138] sm:$0xff]
        %v618 = vld [vmem:[#allocation2 + $0x140] sm:$0xff]
        %v619 = vld [vmem:[#allocation2 + $0x148] sm:$0xff]
        %v620 = vld [vmem:[#allocation2 + $0x150] sm:$0xff]
        %v621 = vld [vmem:[#allocation2 + $0x158] sm:$0xff]
        %v622 = vld [vmem:[#allocation2 + $0x160] sm:$0xff]
        %v623 = vld [vmem:[#allocation2 + $0x168] sm:$0xff]
        %v624 = vld [vmem:[#allocation2 + $0x170] sm:$0xff]
        %v625 = vld [vmem:[#allocation2 + $0x178] sm:$0xff]
        %v626 = vld [vmem:[#allocation2 + $0x180] sm:$0xff]
        %v627 = vld [vmem:[#allocation2 + $0x188] sm:$0xff]
        %v628 = vld [vmem:[#allocation2 + $0x190] sm:$0xff]
        %v629 = vld [vmem:[#allocation2 + $0x198] sm:$0xff]
        %v630 = vld [vmem:[#allocation2 + $0x1a0] sm:$0xff]
        %v631 = vld [vmem:[#allocation2 + $0x1a8] sm:$0xff]
        %v632 = vld [vmem:[#allocation2 + $0x1b0] sm:$0xff]
        %v633 = vld [vmem:[#allocation2 + $0x1b8] sm:$0xff]
        %v634 = vld [vmem:[%s4] sm:$0xff]
        %v635 = vld [vmem:[%s4 + $0x8] sm:$0xff]
        %v636 = vld [vmem:[%s4 + $0x10] sm:$0xff]
        %v637 = vld [vmem:[%s4 + $0x18] sm:$0xff]
        %v638 = vld [vmem:[%s4 + $0x20] sm:$0xff]
        %v639 = vld [vmem:[%s4 + $0x28] sm:$0xff]
        %v640 = vld [vmem:[%s4 + $0x30] sm:$0xff]
        %v641 = vld [vmem:[%s4 + $0x38] sm:$0xff]
        %v642 = vld [vmem:[%s4 + $0x40] sm:$0xff]
        %v643 = vld [vmem:[%s4 + $0x48] sm:$0xff]
        %v644 = vld [vmem:[%s4 + $0x50] sm:$0xff]
        %v645 = vld [vmem:[%s4 + $0x58] sm:$0xff]
        %v646 = vld [vmem:[%s4 + $0x60] sm:$0xff]
        %v647 = vld [vmem:[%s4 + $0x68] sm:$0xff]
        %v648 = vld [vmem:[%s4 + $0x70] sm:$0xff]
        %v649 = vld [vmem:[%s4 + $0x78] sm:$0xff]
        %v650 = vld [vmem:[%s4 + $0x80] sm:$0xff]
        %v651 = vld [vmem:[%s4 + $0x88] sm:$0xff]
        %v652 = vld [vmem:[%s4 + $0x90] sm:$0xff]
        %v653 = vld [vmem:[%s4 + $0x98] sm:$0xff]
        %v654 = vld [vmem:[%s4 + $0xa0] sm:$0xff]
        %v655 = vld [vmem:[%s4 + $0xa8] sm:$0xff]
        %v656 = vld [vmem:[%s4 + $0xb0] sm:$0xff]
        %v657 = vld [vmem:[%s4 + $0xb8] sm:$0xff]
        %v658 = vld [vmem:[%s4 + $0xc0] sm:$0xff]
        %v659 = vld [vmem:[%s4 + $0xc8] sm:$0xff]
        %v660 = vld [vmem:[%s4 + $0xd0] sm:$0xff]
        %v661 = vld [vmem:[%s4 + $0xd8] sm:$0xff]
        %v662 = vld [vmem:[%s4 + $0xe0] sm:$0xff]
        %v663 = vld [vmem:[%s4 + $0xe8] sm:$0xff]
        %v664 = vld [vmem:[%s4 + $0xf0] sm:$0xff]
        %v665 = vld [vmem:[%s4 + $0xf8] sm:$0xff]
        %666 = vmatprep.subr.mxu0 %v635
        %667 = vmatpush1.msra.mxu0 %v634
        %668 = vmatprep.subr.mxu0 %v637
        %669 = vmatpush1.msra.mxu0 %v636
        %670 = vmatprep.subr.mxu0 %v639
        %671 = vmatpush1.msra.mxu0 %v638
        %672 = vmatprep.subr.mxu0 %v641
        %673 = vmatpush1.msra.mxu0 %v640
        %674 = vmatprep.subr.mxu0 %v643
        %675 = vmatpush1.msra.mxu0 %v642
        %676 = vmatprep.subr.mxu0 %v645
        %677 = vmatpush1.msra.mxu0 %v644
        %678 = vmatprep.subr.mxu0 %v647
        %679 = vmatpush1.msra.mxu0 %v646
        %680 = vmatprep.subr.mxu0 %v649
        %681 = vmatpush1.msra.mxu0 %v648
        %682 = vmatprep.subr.mxu0 %v651
        %683 = vmatpush1.msra.mxu0 %v650
        %684 = vmatprep.subr.mxu0 %v653
        %685 = vmatpush1.msra.mxu0 %v652
        %686 = vmatprep.subr.mxu0 %v655
        %687 = vmatpush1.msra.mxu0 %v654
        %688 = vmatprep.subr.mxu0 %v657
        %689 = vmatpush1.msra.mxu0 %v656
        %690 = vmatprep.subr.mxu0 %v659
        %691 = vmatpush1.msra.mxu0 %v658
        %692 = vmatprep.subr.mxu0 %v661
        %693 = vmatpush1.msra.mxu0 %v660
        %694 = vmatprep.subr.mxu0 %v663
        %695 = vmatpush1.msra.mxu0 %v662
        %696 = vmatprep.subr.mxu0 %v665
        %697 = vmatpush1.msra.mxu0 %v664
        %698 = vmatprep.subr.mxu0 0.0
        %699 = vmatpush1.msra.mxu0 0.0
        %700 = vmatprep.subr.mxu0 0.0
        %701 = vmatpush1.msra.mxu0 0.0
        %702 = vmatprep.subr.mxu0 0.0
        %703 = vmatpush1.msra.mxu0 0.0
        %704 = vmatprep.subr.mxu0 0.0
        %705 = vmatpush1.msra.mxu0 0.0
        %706 = vmatprep.subr.mxu0 0.0
        %707 = vmatpush1.msra.mxu0 0.0
        %708 = vmatprep.subr.mxu0 0.0
        %709 = vmatpush1.msra.mxu0 0.0
        %710 = vmatprep.subr.mxu0 0.0
        %711 = vmatpush1.msra.mxu0 0.0
        %712 = vmatprep.subr.mxu0 0.0
        %713 = vmatpush1.msra.mxu0 0.0
        %714 = vmatprep.subr.mxu0 0.0
        %715 = vmatpush1.msra.mxu0 0.0
        %716 = vmatprep.subr.mxu0 0.0
        %717 = vmatpush1.msra.mxu0 0.0
        %718 = vmatprep.subr.mxu0 0.0
        %719 = vmatpush1.msra.mxu0 0.0
        %720 = vmatprep.subr.mxu0 0.0
        %721 = vmatpush1.msra.mxu0 0.0
        %722 = vmatprep.subr.mxu0 0.0
        %723 = vmatpush1.msra.mxu0 0.0
        %724 = vmatprep.subr.mxu0 0.0
        %725 = vmatpush1.msra.mxu0 0.0
        %726 = vmatprep.subr.mxu0 0.0
        %727 = vmatpush1.msra.mxu0 0.0
        %728 = vmatprep.subr.mxu0 0.0
        %729 = vmatpush1.msra.mxu0 0.0
        %730 = vmatprep.mubr.f32.mxu0 0.0
        %731 = vmatmul.mubr.f32.gmra.mrb[0].mxu0 %v578
        %v732 = vpop.f32.mrb[0].mxu0
        %v733 = vadd.f32 0.0, %v732
        %v734 = vpop.f32.mrb[0].mxu0
        %v735 = vadd.f32 0.0, %v734
        %736 = vmatprep.mubr.f32.mxu0 0.0
        %737 = vmatmul.mubr.f32.gmra.mrb[0].mxu0 %v579
        %v738 = vpop.f32.mrb[0].mxu0
        %v739 = vadd.f32 0.0, %v738
        %v740 = vpop.f32.mrb[0].mxu0
        %v741 = vadd.f32 0.0, %v740
        %742 = vmatprep.mubr.f32.mxu0 0.0
        %743 = vmatmul.mubr.f32.gmra.mrb[0].mxu0 %v580
        %v744 = vpop.f32.mrb[0].mxu0
        %v745 = vadd.f32 0.0, %v744
        %v746 = vpop.f32.mrb[0].mxu0
        %v747 = vadd.f32 0.0, %v746
        %748 = vmatprep.mubr.f32.mxu0 0.0
        %749 = vmatmul.mubr.f32.gmra.mrb[0].mxu0 %v581
        %v750 = vpop.f32.mrb[0].mxu0
        %v751 = vadd.f32 0.0, %v750
        %v752 = vpop.f32.mrb[0].mxu0
        %v753 = vadd.f32 0.0, %v752
        %754 = vmatprep.mubr.f32.mxu0 0.0
        %755 = vmatmul.mubr.f32.gmra.mrb[0].mxu0 %v582
        %v756 = vpop.f32.mrb[0].mxu0
        %v757 = vadd.f32 0.0, %v756
        %v758 = vpop.f32.mrb[0].mxu0
        %v759 = vadd.f32 0.0, %v758
        %760 = vmatprep.mubr.f32.mxu0 0.0
        %761 = vmatmul.mubr.f32.gmra.mrb[0].mxu0 %v583
        %v762 = vpop.f32.mrb[0].mxu0
        %v763 = vadd.f32 0.0, %v762
        %v764 = vpop.f32.mrb[0].mxu0
        %v765 = vadd.f32 0.0, %v764
        %766 = vmatprep.mubr.f32.mxu0 0.0
        %767 = vmatmul.mubr.f32.gmra.mrb[0].mxu0 %v584
        %v768 = vpop.f32.mrb[0].mxu0
        %v769 = vadd.f32 0.0, %v768
        %v770 = vpop.f32.mrb[0].mxu0
        %v771 = vadd.f32 0.0, %v770
        %772 = vmatprep.mubr.f32.mxu0 0.0
        %773 = vmatmul.mubr.f32.gmra.mrb[0].mxu0 %v585
        %v774 = vpop.f32.mrb[0].mxu0
        %v775 = vadd.f32 0.0, %v774
        %v776 = vpop.f32.mrb[0].mxu0
        %v777 = vadd.f32 0.0, %v776
        %778 = vmatprep.mubr.f32.mxu0 0.0
        %779 = vmatmul.mubr.f32.gmra.mrb[0].mxu0 %v586
        %v780 = vpop.f32.mrb[0].mxu0
        %v781 = vadd.f32 0.0, %v780
        %v782 = vpop.f32.mrb[0].mxu0
        %v783 = vadd.f32 0.0, %v782
        %784 = vmatprep.mubr.f32.mxu0 0.0
        %785 = vmatmul.mubr.f32.gmra.mrb[0].mxu0 %v587
        %v786 = vpop.f32.mrb[0].mxu0
        %v787 = vadd.f32 0.0, %v786
        %v788 = vpop.f32.mrb[0].mxu0
        %v789 = vadd.f32 0.0, %v788
        %790 = vmatprep.mubr.f32.mxu0 0.0
        %791 = vmatmul.mubr.f32.gmra.mrb[0].mxu0 %v588
        %v792 = vpop.f32.mrb[0].mxu0
        %v793 = vadd.f32 0.0, %v792
        %v794 = vpop.f32.mrb[0].mxu0
        %v795 = vadd.f32 0.0, %v794
        %796 = vmatprep.mubr.f32.mxu0 0.0
        %797 = vmatmul.mubr.f32.gmra.mrb[0].mxu0 %v589
        %v798 = vpop.f32.mrb[0].mxu0
        %v799 = vadd.f32 0.0, %v798
        %v800 = vpop.f32.mrb[0].mxu0
        %v801 = vadd.f32 0.0, %v800
        %802 = vmatprep.mubr.f32.mxu0 0.0
        %803 = vmatmul.mubr.f32.gmra.mrb[0].mxu0 %v590
        %v804 = vpop.f32.mrb[0].mxu0
        %v805 = vadd.f32 0.0, %v804
        %v806 = vpop.f32.mrb[0].mxu0
        %v807 = vadd.f32 0.0, %v806
        %808 = vmatprep.mubr.f32.mxu0 0.0
        %809 = vmatmul.mubr.f32.gmra.mrb[0].mxu0 %v591
        %v810 = vpop.f32.mrb[0].mxu0
        %v811 = vadd.f32 0.0, %v810
        %v812 = vpop.f32.mrb[0].mxu0
        %v813 = vadd.f32 0.0, %v812
        %814 = vmatprep.mubr.f32.mxu0 0.0
        %815 = vmatmul.mubr.f32.gmra.mrb[0].mxu0 %v592
        %v816 = vpop.f32.mrb[0].mxu0
        %v817 = vadd.f32 0.0, %v816
        %v818 = vpop.f32.mrb[0].mxu0
        %v819 = vadd.f32 0.0, %v818
        %820 = vmatprep.mubr.f32.mxu0 0.0
        %821 = vmatmul.mubr.f32.gmra.mrb[0].mxu0 %v593
        %v822 = vpop.f32.mrb[0].mxu0
        %v823 = vadd.f32 0.0, %v822
        %v824 = vpop.f32.mrb[0].mxu0
        %v825 = vadd.f32 0.0, %v824
        %826 = vmatprep.mubr.f32.mxu0 0.0
        %827 = vmatmul.mubr.f32.gmra.mrb[0].mxu0 %v594
        %v828 = vpop.f32.mrb[0].mxu0
        %v829 = vadd.f32 0.0, %v828
        %v830 = vpop.f32.mrb[0].mxu0
        %v831 = vadd.f32 0.0, %v830
        %832 = vmatprep.mubr.f32.mxu0 0.0
        %833 = vmatmul.mubr.f32.gmra.mrb[0].mxu0 %v595
        %v834 = vpop.f32.mrb[0].mxu0
        %v835 = vadd.f32 0.0, %v834
        %v836 = vpop.f32.mrb[0].mxu0
        %v837 = vadd.f32 0.0, %v836
        %838 = vmatprep.mubr.f32.mxu0 0.0
        %839 = vmatmul.mubr.f32.gmra.mrb[0].mxu0 %v596
        %v840 = vpop.f32.mrb[0].mxu0
        %v841 = vadd.f32 0.0, %v840
        %v842 = vpop.f32.mrb[0].mxu0
        %v843 = vadd.f32 0.0, %v842
        %844 = vmatprep.mubr.f32.mxu0 0.0
        %845 = vmatmul.mubr.f32.gmra.mrb[0].mxu0 %v597
        %v846 = vpop.f32.mrb[0].mxu0
        %v847 = vadd.f32 0.0, %v846
        %v848 = vpop.f32.mrb[0].mxu0
        %v849 = vadd.f32 0.0, %v848
        %850 = vmatprep.mubr.f32.mxu0 0.0
        %851 = vmatmul.mubr.f32.gmra.mrb[0].mxu0 %v598
        %v852 = vpop.f32.mrb[0].mxu0
        %v853 = vadd.f32 0.0, %v852
        %v854 = vpop.f32.mrb[0].mxu0
        %v855 = vadd.f32 0.0, %v854
        %856 = vmatprep.mubr.f32.mxu0 0.0
        %857 = vmatmul.mubr.f32.gmra.mrb[0].mxu0 %v599
        %v858 = vpop.f32.mrb[0].mxu0
        %v859 = vadd.f32 0.0, %v858
        %v860 = vpop.f32.mrb[0].mxu0
        %v861 = vadd.f32 0.0, %v860
        %862 = vmatprep.mubr.f32.mxu0 0.0
        %863 = vmatmul.mubr.f32.gmra.mrb[0].mxu0 %v600
        %v864 = vpop.f32.mrb[0].mxu0
        %v865 = vadd.f32 0.0, %v864
        %v866 = vpop.f32.mrb[0].mxu0
        %v867 = vadd.f32 0.0, %v866
        %868 = vmatprep.mubr.f32.mxu0 0.0
        %869 = vmatmul.mubr.f32.gmra.mrb[0].mxu0 %v601
        %v870 = vpop.f32.mrb[0].mxu0
        %v871 = vadd.f32 0.0, %v870
        %v872 = vpop.f32.mrb[0].mxu0
        %v873 = vadd.f32 0.0, %v872
        %874 = vmatprep.mubr.f32.mxu0 0.0
        %875 = vmatmul.mubr.f32.gmra.mrb[0].mxu0 %v602
        %v876 = vpop.f32.mrb[0].mxu0
        %v877 = vadd.f32 0.0, %v876
        %v878 = vpop.f32.mrb[0].mxu0
        %v879 = vadd.f32 0.0, %v878
        %880 = vmatprep.mubr.f32.mxu0 0.0
        %881 = vmatmul.mubr.f32.gmra.mrb[0].mxu0 %v603
        %v882 = vpop.f32.mrb[0].mxu0
        %v883 = vadd.f32 0.0, %v882
        %v884 = vpop.f32.mrb[0].mxu0
        %v885 = vadd.f32 0.0, %v884
        %886 = vmatprep.mubr.f32.mxu0 0.0
        %887 = vmatmul.mubr.f32.gmra.mrb[0].mxu0 %v604
        %v888 = vpop.f32.mrb[0].mxu0
        %v889 = vadd.f32 0.0, %v888
        %v890 = vpop.f32.mrb[0].mxu0
        %v891 = vadd.f32 0.0, %v890
        %892 = vmatprep.mubr.f32.mxu0 0.0
        %893 = vmatmul.mubr.f32.gmra.mrb[0].mxu0 %v605
        %v894 = vpop.f32.mrb[0].mxu0
        %v895 = vadd.f32 0.0, %v894
        %v896 = vpop.f32.mrb[0].mxu0
        %v897 = vadd.f32 0.0, %v896
        %898 = vmatprep.mubr.f32.mxu0 0.0
        %899 = vmatmul.mubr.f32.gmra.mrb[0].mxu0 %v606
        %v900 = vpop.f32.mrb[0].mxu0
        %v901 = vadd.f32 0.0, %v900
        %v902 = vpop.f32.mrb[0].mxu0
        %v903 = vadd.f32 0.0, %v902
        %904 = vmatprep.mubr.f32.mxu0 0.0
        %905 = vmatmul.mubr.f32.gmra.mrb[0].mxu0 %v607
        %v906 = vpop.f32.mrb[0].mxu0
        %v907 = vadd.f32 0.0, %v906
        %v908 = vpop.f32.mrb[0].mxu0
        %v909 = vadd.f32 0.0, %v908
        %910 = vmatprep.mubr.f32.mxu0 0.0
        %911 = vmatmul.mubr.f32.gmra.mrb[0].mxu0 %v608
        %v912 = vpop.f32.mrb[0].mxu0
        %v913 = vadd.f32 0.0, %v912
        %v914 = vpop.f32.mrb[0].mxu0
        %v915 = vadd.f32 0.0, %v914
        %916 = vmatprep.mubr.f32.mxu0 0.0
        %917 = vmatmul.mubr.f32.gmra.mrb[0].mxu0 %v609
        %v918 = vpop.f32.mrb[0].mxu0
        %v919 = vadd.f32 0.0, %v918
        %v920 = vpop.f32.mrb[0].mxu0
        %v921 = vadd.f32 0.0, %v920
        %922 = vmatprep.mubr.f32.mxu0 0.0
        %923 = vmatmul.mubr.f32.gmra.mrb[0].mxu0 %v610
        %v924 = vpop.f32.mrb[0].mxu0
        %v925 = vadd.f32 0.0, %v924
        %v926 = vpop.f32.mrb[0].mxu0
        %v927 = vadd.f32 0.0, %v926
        %928 = vmatprep.mubr.f32.mxu0 0.0
        %929 = vmatmul.mubr.f32.gmra.mrb[0].mxu0 %v611
        %v930 = vpop.f32.mrb[0].mxu0
        %v931 = vadd.f32 0.0, %v930
        %v932 = vpop.f32.mrb[0].mxu0
        %v933 = vadd.f32 0.0, %v932
        %934 = vmatprep.mubr.f32.mxu0 0.0
        %935 = vmatmul.mubr.f32.gmra.mrb[0].mxu0 %v612
        %v936 = vpop.f32.mrb[0].mxu0
        %v937 = vadd.f32 0.0, %v936
        %v938 = vpop.f32.mrb[0].mxu0
        %v939 = vadd.f32 0.0, %v938
        %940 = vmatprep.mubr.f32.mxu0 0.0
        %941 = vmatmul.mubr.f32.gmra.mrb[0].mxu0 %v613
        %v942 = vpop.f32.mrb[0].mxu0
        %v943 = vadd.f32 0.0, %v942
        %v944 = vpop.f32.mrb[0].mxu0
        %v945 = vadd.f32 0.0, %v944
        %946 = vmatprep.mubr.f32.mxu0 0.0
        %947 = vmatmul.mubr.f32.gmra.mrb[0].mxu0 %v614
        %v948 = vpop.f32.mrb[0].mxu0
        %v949 = vadd.f32 0.0, %v948
        %v950 = vpop.f32.mrb[0].mxu0
        %v951 = vadd.f32 0.0, %v950
        %952 = vmatprep.mubr.f32.mxu0 0.0
        %953 = vmatmul.mubr.f32.gmra.mrb[0].mxu0 %v615
        %v954 = vpop.f32.mrb[0].mxu0
        %v955 = vadd.f32 0.0, %v954
        %v956 = vpop.f32.mrb[0].mxu0
        %v957 = vadd.f32 0.0, %v956
        %958 = vmatprep.mubr.f32.mxu0 0.0
        %959 = vmatmul.mubr.f32.gmra.mrb[0].mxu0 %v616
        %v960 = vpop.f32.mrb[0].mxu0
        %v961 = vadd.f32 0.0, %v960
        %v962 = vpop.f32.mrb[0].mxu0
        %v963 = vadd.f32 0.0, %v962
        %964 = vmatprep.mubr.f32.mxu0 0.0
        %965 = vmatmul.mubr.f32.gmra.mrb[0].mxu0 %v617
        %v966 = vpop.f32.mrb[0].mxu0
        %v967 = vadd.f32 0.0, %v966
        %v968 = vpop.f32.mrb[0].mxu0
        %v969 = vadd.f32 0.0, %v968
        %970 = vmatprep.mubr.f32.mxu0 0.0
        %971 = vmatmul.mubr.f32.gmra.mrb[0].mxu0 %v618
        %v972 = vpop.f32.mrb[0].mxu0
        %v973 = vadd.f32 0.0, %v972
        %v974 = vpop.f32.mrb[0].mxu0
        %v975 = vadd.f32 0.0, %v974
        %976 = vmatprep.mubr.f32.mxu0 0.0
        %977 = vmatmul.mubr.f32.gmra.mrb[0].mxu0 %v619
        %v978 = vpop.f32.mrb[0].mxu0
        %v979 = vadd.f32 0.0, %v978
        %v980 = vpop.f32.mrb[0].mxu0
        %v981 = vadd.f32 0.0, %v980
        %982 = vmatprep.mubr.f32.mxu0 0.0
        %983 = vmatmul.mubr.f32.gmra.mrb[0].mxu0 %v620
        %v984 = vpop.f32.mrb[0].mxu0
        %v985 = vadd.f32 0.0, %v984
        %v986 = vpop.f32.mrb[0].mxu0
        %v987 = vadd.f32 0.0, %v986
        %988 = vmatprep.mubr.f32.mxu0 0.0
        %989 = vmatmul.mubr.f32.gmra.mrb[0].mxu0 %v621
        %v990 = vpop.f32.mrb[0].mxu0
        %v991 = vadd.f32 0.0, %v990
        %v992 = vpop.f32.mrb[0].mxu0
        %v993 = vadd.f32 0.0, %v992
        %994 = vmatprep.mubr.f32.mxu0 0.0
        %995 = vmatmul.mubr.f32.gmra.mrb[0].mxu0 %v622
        %v996 = vpop.f32.mrb[0].mxu0
        %v997 = vadd.f32 0.0, %v996
        %v998 = vpop.f32.mrb[0].mxu0
        %v999 = vadd.f32 0.0, %v998
        %1000 = vmatprep.mubr.f32.mxu0 0.0
        %1001 = vmatmul.mubr.f32.gmra.mrb[0].mxu0 %v623
        %v1002 = vpop.f32.mrb[0].mxu0
        %v1003 = vadd.f32 0.0, %v1002
        %v1004 = vpop.f32.mrb[0].mxu0
        %v1005 = vadd.f32 0.0, %v1004
        %1006 = vmatprep.mubr.f32.mxu0 0.0
        %1007 = vmatmul.mubr.f32.gmra.mrb[0].mxu0 %v624
        %v1008 = vpop.f32.mrb[0].mxu0
        %v1009 = vadd.f32 0.0, %v1008
        %v1010 = vpop.f32.mrb[0].mxu0
        %v1011 = vadd.f32 0.0, %v1010
        %1012 = vmatprep.mubr.f32.mxu0 0.0
        %1013 = vmatmul.mubr.f32.gmra.mrb[0].mxu0 %v625
        %v1014 = vpop.f32.mrb[0].mxu0
        %v1015 = vadd.f32 0.0, %v1014
        %v1016 = vpop.f32.mrb[0].mxu0
        %v1017 = vadd.f32 0.0, %v1016
        %1018 = vmatprep.mubr.f32.mxu0 0.0
        %1019 = vmatmul.mubr.f32.gmra.mrb[0].mxu0 %v626
        %v1020 = vpop.f32.mrb[0].mxu0
        %v1021 = vadd.f32 0.0, %v1020
        %v1022 = vpop.f32.mrb[0].mxu0
        %v1023 = vadd.f32 0.0, %v1022
        %1024 = vmatprep.mubr.f32.mxu0 0.0
        %1025 = vmatmul.mubr.f32.gmra.mrb[0].mxu0 %v627
        %v1026 = vpop.f32.mrb[0].mxu0
        %v1027 = vadd.f32 0.0, %v1026
        %v1028 = vpop.f32.mrb[0].mxu0
        %v1029 = vadd.f32 0.0, %v1028
        %1030 = vmatprep.mubr.f32.mxu0 0.0
        %1031 = vmatmul.mubr.f32.gmra.mrb[0].mxu0 %v628
        %v1032 = vpop.f32.mrb[0].mxu0
        %v1033 = vadd.f32 0.0, %v1032
        %v1034 = vpop.f32.mrb[0].mxu0
        %v1035 = vadd.f32 0.0, %v1034
        %1036 = vmatprep.mubr.f32.mxu0 0.0
        %1037 = vmatmul.mubr.f32.gmra.mrb[0].mxu0 %v629
        %v1038 = vpop.f32.mrb[0].mxu0
        %v1039 = vadd.f32 0.0, %v1038
        %v1040 = vpop.f32.mrb[0].mxu0
        %v1041 = vadd.f32 0.0, %v1040
        %1042 = vmatprep.mubr.f32.mxu0 0.0
        %1043 = vmatmul.mubr.f32.gmra.mrb[0].mxu0 %v630
        %v1044 = vpop.f32.mrb[0].mxu0
        %v1045 = vadd.f32 0.0, %v1044
        %v1046 = vpop.f32.mrb[0].mxu0
        %v1047 = vadd.f32 0.0, %v1046
        %1048 = vmatprep.mubr.f32.mxu0 0.0
        %1049 = vmatmul.mubr.f32.gmra.mrb[0].mxu0 %v631
        %v1050 = vpop.f32.mrb[0].mxu0
        %v1051 = vadd.f32 0.0, %v1050
        %v1052 = vpop.f32.mrb[0].mxu0
        %v1053 = vadd.f32 0.0, %v1052
        %1054 = vmatprep.mubr.f32.mxu0 0.0
        %1055 = vmatmul.mubr.f32.gmra.mrb[0].mxu0 %v632
        %v1056 = vpop.f32.mrb[0].mxu0
        %v1057 = vadd.f32 0.0, %v1056
        %v1058 = vpop.f32.mrb[0].mxu0
        %v1059 = vadd.f32 0.0, %v1058
        %1060 = vmatprep.mubr.f32.mxu0 0.0
        %1061 = vmatmul.mubr.f32.gmra.mrb[0].mxu0 %v633
        %v1062 = vpop.f32.mrb[0].mxu0
        %v1063 = vadd.f32 0.0, %v1062
        %v1064 = vpop.f32.mrb[0].mxu0
        %v1065 = vadd.f32 0.0, %v1064
        %1066 = vdwg.mxu0
        %v1067 = vld [vmem:[%s1] sm:$0xff]
        %v1068 = vld [vmem:[%s1 + $0x8] sm:$0xff]
        %v1069 = vld [vmem:[%s1 + $0x10] sm:$0xff]
        %v1070 = vld [vmem:[%s1 + $0x18] sm:$0xff]
        %v1071 = vld [vmem:[%s1 + $0x20] sm:$0xff]
        %v1072 = vld [vmem:[%s1 + $0x28] sm:$0xff]
        %v1073 = vld [vmem:[%s1 + $0x30] sm:$0xff]
        %v1074 = vld [vmem:[%s1 + $0x38] sm:$0xff]
        %v1075 = vld [vmem:[%s1 + $0x40] sm:$0xff]
        %v1076 = vld [vmem:[%s1 + $0x48] sm:$0xff]
        %v1077 = vld [vmem:[%s1 + $0x50] sm:$0xff]
        %v1078 = vld [vmem:[%s1 + $0x58] sm:$0xff]
        %v1079 = vld [vmem:[%s1 + $0x60] sm:$0xff]
        %v1080 = vld [vmem:[%s1 + $0x68] sm:$0xff]
        %v1081 = vadd.f32 %v733, %v1067
        %v1082 = vadd.f32 %v735, %v1068
        %v1083 = vadd.f32 %v739, %v1069
        %v1084 = vadd.f32 %v741, %v1070
        %v1085 = vadd.f32 %v745, %v1071
        %v1086 = vadd.f32 %v747, %v1072
        %v1087 = vadd.f32 %v751, %v1073
        %v1088 = vadd.f32 %v753, %v1074
        %v1089 = vadd.f32 %v757, %v1075
        %v1090 = vadd.f32 %v759, %v1076
        %v1091 = vadd.f32 %v763, %v1077
        %v1092 = vadd.f32 %v765, %v1078
        %v1093 = vadd.f32 %v769, %v1079
        %v1094 = vadd.f32 %v771, %v1080
        %v1095 = vadd.f32 %v775, %v1067
        %v1096 = vadd.f32 %v777, %v1068
        %v1097 = vadd.f32 %v781, %v1069
        %v1098 = vadd.f32 %v783, %v1070
        %v1099 = vadd.f32 %v787, %v1071
        %v1100 = vadd.f32 %v789, %v1072
        %v1101 = vadd.f32 %v793, %v1073
        %v1102 = vadd.f32 %v795, %v1074
        %v1103 = vadd.f32 %v799, %v1075
        %v1104 = vadd.f32 %v801, %v1076
        %v1105 = vadd.f32 %v805, %v1077
        %v1106 = vadd.f32 %v807, %v1078
        %v1107 = vadd.f32 %v811, %v1079
        %v1108 = vadd.f32 %v813, %v1080
        %v1109 = vadd.f32 %v817, %v1067
        %v1110 = vadd.f32 %v819, %v1068
        %v1111 = vadd.f32 %v823, %v1069
        %v1112 = vadd.f32 %v825, %v1070
        %v1113 = vadd.f32 %v829, %v1071
        %v1114 = vadd.f32 %v831, %v1072
        %v1115 = vadd.f32 %v835, %v1073
        %v1116 = vadd.f32 %v837, %v1074
        %v1117 = vadd.f32 %v841, %v1075
        %v1118 = vadd.f32 %v843, %v1076
        %v1119 = vadd.f32 %v847, %v1077
        %v1120 = vadd.f32 %v849, %v1078
        %v1121 = vadd.f32 %v853, %v1079
        %v1122 = vadd.f32 %v855, %v1080
        %v1123 = vadd.f32 %v859, %v1067
        %v1124 = vadd.f32 %v861, %v1068
        %v1125 = vadd.f32 %v865, %v1069
        %v1126 = vadd.f32 %v867, %v1070
        %v1127 = vadd.f32 %v871, %v1071
        %v1128 = vadd.f32 %v873, %v1072
        %v1129 = vadd.f32 %v877, %v1073
        %v1130 = vadd.f32 %v879, %v1074
        %v1131 = vadd.f32 %v883, %v1075
        %v1132 = vadd.f32 %v885, %v1076
        %v1133 = vadd.f32 %v889, %v1077
        %v1134 = vadd.f32 %v891, %v1078
        %v1135 = vadd.f32 %v895, %v1079
        %v1136 = vadd.f32 %v897, %v1080
        %v1137 = vadd.f32 %v901, %v1067
        %v1138 = vadd.f32 %v903, %v1068
        %v1139 = vadd.f32 %v907, %v1069
        %v1140 = vadd.f32 %v909, %v1070
        %v1141 = vadd.f32 %v913, %v1071
        %v1142 = vadd.f32 %v915, %v1072
        %v1143 = vadd.f32 %v919, %v1073
        %v1144 = vadd.f32 %v921, %v1074
        %v1145 = vadd.f32 %v925, %v1075
        %v1146 = vadd.f32 %v927, %v1076
        %v1147 = vadd.f32 %v931, %v1077
        %v1148 = vadd.f32 %v933, %v1078
        %v1149 = vadd.f32 %v937, %v1079
        %v1150 = vadd.f32 %v939, %v1080
        %v1151 = vadd.f32 %v943, %v1067
        %v1152 = vadd.f32 %v945, %v1068
        %v1153 = vadd.f32 %v949, %v1069
        %v1154 = vadd.f32 %v951, %v1070
        %v1155 = vadd.f32 %v955, %v1071
        %v1156 = vadd.f32 %v957, %v1072
        %v1157 = vadd.f32 %v961, %v1073
        %v1158 = vadd.f32 %v963, %v1074
        %v1159 = vadd.f32 %v967, %v1075
        %v1160 = vadd.f32 %v969, %v1076
        %v1161 = vadd.f32 %v973, %v1077
        %v1162 = vadd.f32 %v975, %v1078
        %v1163 = vadd.f32 %v979, %v1079
        %v1164 = vadd.f32 %v981, %v1080
        %v1165 = vadd.f32 %v985, %v1067
        %v1166 = vadd.f32 %v987, %v1068
        %v1167 = vadd.f32 %v991, %v1069
        %v1168 = vadd.f32 %v993, %v1070
        %v1169 = vadd.f32 %v997, %v1071
        %v1170 = vadd.f32 %v999, %v1072
        %v1171 = vadd.f32 %v1003, %v1073
        %v1172 = vadd.f32 %v1005, %v1074
        %v1173 = vadd.f32 %v1009, %v1075
        %v1174 = vadd.f32 %v1011, %v1076
        %v1175 = vadd.f32 %v1015, %v1077
        %v1176 = vadd.f32 %v1017, %v1078
        %v1177 = vadd.f32 %v1021, %v1079
        %v1178 = vadd.f32 %v1023, %v1080
        %v1179 = vadd.f32 %v1027, %v1067
        %v1180 = vadd.f32 %v1029, %v1068
        %v1181 = vadd.f32 %v1033, %v1069
        %v1182 = vadd.f32 %v1035, %v1070
        %v1183 = vadd.f32 %v1039, %v1071
        %v1184 = vadd.f32 %v1041, %v1072
        %v1185 = vadd.f32 %v1045, %v1073
        %v1186 = vadd.f32 %v1047, %v1074
        %v1187 = vadd.f32 %v1051, %v1075
        %v1188 = vadd.f32 %v1053, %v1076
        %v1189 = vadd.f32 %v1057, %v1077
        %v1190 = vadd.f32 %v1059, %v1078
        %v1191 = vadd.f32 %v1063, %v1079
        %v1192 = vadd.f32 %v1065, %v1080
        %v1193 = vld [vmem:[%s2] sm:$0xff]
        %v1194 = vld [vmem:[%s2 + $0x8] sm:$0xff]
        %v1195 = vld [vmem:[%s2 + $0x10] sm:$0xff]
        %v1196 = vld [vmem:[%s2 + $0x18] sm:$0xff]
        %v1197 = vld [vmem:[%s2 + $0x20] sm:$0xff]
        %v1198 = vld [vmem:[%s2 + $0x28] sm:$0xff]
        %v1199 = vld [vmem:[%s2 + $0x30] sm:$0xff]
        %v1200 = vld [vmem:[%s2 + $0x38] sm:$0xff]
        %v1201 = vld [vmem:[%s2 + $0x40] sm:$0xff]
        %v1202 = vld [vmem:[%s2 + $0x48] sm:$0xff]
        %v1203 = vld [vmem:[%s2 + $0x50] sm:$0xff]
        %v1204 = vld [vmem:[%s2 + $0x58] sm:$0xff]
        %v1205 = vld [vmem:[%s2 + $0x60] sm:$0xff]
        %v1206 = vld [vmem:[%s2 + $0x68] sm:$0xff]
        %v1207 = vld [vmem:[%s2 + $0x70] sm:$0xff]
        %v1208 = vld [vmem:[%s2 + $0x78] sm:$0xff]
        %v1209 = vld [vmem:[%s3] sm:$0x1]
        %v1211 = vlaneseq
        %v1212 = vshrl.u32 %v1211, 7
        %v1213 = vsub.s32 0, %v1212
        %v1214 = vrot.slane %v1209, %v1213
        %vm1224 = vcmask 1041409
        %v1225 = vsel %vm1224, %v555, %v554
        %vm1226 = vcmask 1042434
        %v1227 = vsel %vm1226, %v556, %v1225
        %vm1228 = vcmask 1043459
        %v1229 = vsel %vm1228, %v557, %v1227
        %vm1230 = vcmask 1044484
        %v1231 = vsel %vm1230, %v558, %v1229
        %vm1232 = vcmask 1045509
        %v1233 = vsel %vm1232, %v559, %v1231
        %vm1234 = vcmask 1046534
        %v1235 = vsel %vm1234, %v560, %v1233
        %vm1236 = vcmask 1047559
        %v1237 = vsel %vm1236, %v561, %v1235
        %1239 = vmatprep.subr.mxu0 0.0
        %1240 = vmatpush1.msra.mxu0 %v1193
        %1241 = vmatprep.subr.mxu0 0.0
        %1242 = vmatpush1.msra.mxu0 %v1194
        %1243 = vmatprep.subr.mxu0 0.0
        %1244 = vmatpush1.msra.mxu0 %v1195
        %1245 = vmatprep.subr.mxu0 0.0
        %1246 = vmatpush1.msra.mxu0 %v1196
        %1247 = vmatprep.subr.mxu0 0.0
        %1248 = vmatpush1.msra.mxu0 %v1197
        %1249 = vmatprep.subr.mxu0 0.0
        %1250 = vmatpush1.msra.mxu0 %v1198
        %1251 = vmatprep.subr.mxu0 0.0
        %1252 = vmatpush1.msra.mxu0 %v1199
        %1253 = vmatprep.subr.mxu0 0.0
        %1254 = vmatpush1.msra.mxu0 %v1200
        %1255 = vmatprep.subr.mxu0 0.0
        %1256 = vmatpush1.msra.mxu0 %v1201
        %1257 = vmatprep.subr.mxu0 0.0
        %1258 = vmatpush1.msra.mxu0 %v1202
        %1259 = vmatprep.subr.mxu0 0.0
        %1260 = vmatpush1.msra.mxu0 %v1203
        %1261 = vmatprep.subr.mxu0 0.0
        %1262 = vmatpush1.msra.mxu0 %v1204
        %1263 = vmatprep.subr.mxu0 0.0
        %1264 = vmatpush1.msra.mxu0 %v1205
        %1265 = vmatprep.subr.mxu0 0.0
        %1266 = vmatpush1.msra.mxu0 %v1206
        %1267 = vmatprep.subr.mxu0 0.0
        %1268 = vmatpush1.msra.mxu0 %v1207
        %1269 = vmatprep.subr.mxu0 0.0
        %1270 = vmatpush1.msra.mxu0 %v1208
        %1271 = vmatprep.subr.mxu0 0.0
        %1272 = vmatpush1.msra.mxu0 0.0
        %1273 = vmatprep.subr.mxu0 0.0
        %1274 = vmatpush1.msra.mxu0 0.0
        %1275 = vmatprep.subr.mxu0 0.0
        %1276 = vmatpush1.msra.mxu0 0.0
        %1277 = vmatprep.subr.mxu0 0.0
        %1278 = vmatpush1.msra.mxu0 0.0
        %1279 = vmatprep.subr.mxu0 0.0
        %1280 = vmatpush1.msra.mxu0 0.0
        %1281 = vmatprep.subr.mxu0 0.0
        %1282 = vmatpush1.msra.mxu0 0.0
        %1283 = vmatprep.subr.mxu0 0.0
        %1284 = vmatpush1.msra.mxu0 0.0
        %1285 = vmatprep.subr.mxu0 0.0
        %1286 = vmatpush1.msra.mxu0 0.0
        %1287 = vmatprep.subr.mxu0 0.0
        %1288 = vmatpush1.msra.mxu0 0.0
        %1289 = vmatprep.subr.mxu0 0.0
        %1290 = vmatpush1.msra.mxu0 0.0
        %1291 = vmatprep.subr.mxu0 0.0
        %1292 = vmatpush1.msra.mxu0 0.0
        %1293 = vmatprep.subr.mxu0 0.0
        %1294 = vmatpush1.msra.mxu0 0.0
        %1295 = vmatprep.subr.mxu0 0.0
        %1296 = vmatpush1.msra.mxu0 0.0
        %1297 = vmatprep.subr.mxu0 0.0
        %1298 = vmatpush1.msra.mxu0 0.0
        %1299 = vmatprep.subr.mxu0 0.0
        %1300 = vmatpush1.msra.mxu0 0.0
        %1301 = vmatprep.subr.mxu0 0.0
        %1302 = vmatpush1.msra.mxu0 0.0
        %1303 = vmatprep.mubr.f32.mxu0 0.0
        %1304 = vmatmul.mubr.f32.gmra.mrb[0].mxu0 %v1237
        %v1305 = vpop.f32.mrb[0].mxu0
        %v1306 = vadd.f32 %v1214, %v1305
        %v1307 = vpop.f32.mrb[0].mxu0
        %1308 = vdwg.mxu0
        %v1310 = vcombine.high %v1306, %v1306
        %v1312 = vunpack.c.l.s4 1966171168
        %v1313 = vunpack.c.0.s8 %v1312
        %v1314 = vlaneseq
        %v1315 = vshrl.u32 %v1314, 7
        %v1316 = vsub.s32 %v1313, %v1315
        %v1317 = vrot.slane %v1306, %v1316
        %v1319 = vunpack.c.l.s4 1966171168
        %v1320 = vunpack.c.0.s8 %v1319
        %v1321 = vlaneseq
        %v1322 = vshrl.u32 %v1321, 7
        %v1323 = vsub.s32 %v1320, %v1322
        %v1324 = vrot.slane %v1310, %v1323
        %v1325 = vcombine.high %v1317, %v1317
        %v1326 = vcombine.high %v1324, %v1324
        %v1328 = vunpack.c.l.s4 1966171168
        %v1329 = vunpack.c.0.s8 %v1328
        %v1330 = vlaneseq
        %v1331 = vshrl.u32 %v1330, 7
        %v1332 = vsub.s32 %v1329, %v1331
        %v1333 = vrot.slane %v1317, %v1332
        %v1335 = vunpack.c.l.s4 1966171168
        %v1336 = vunpack.c.0.s8 %v1335
        %v1337 = vlaneseq
        %v1338 = vshrl.u32 %v1337, 7
        %v1339 = vsub.s32 %v1336, %v1338
        %v1340 = vrot.slane %v1324, %v1339
        %v1342 = vunpack.c.l.s4 1966171168
        %v1343 = vunpack.c.0.s8 %v1342
        %v1344 = vlaneseq
        %v1345 = vshrl.u32 %v1344, 7
        %v1346 = vsub.s32 %v1343, %v1345
        %v1347 = vrot.slane %v1325, %v1346
        %v1349 = vunpack.c.l.s4 1966171168
        %v1350 = vunpack.c.0.s8 %v1349
        %v1351 = vlaneseq
        %v1352 = vshrl.u32 %v1351, 7
        %v1353 = vsub.s32 %v1350, %v1352
        %v1354 = vrot.slane %v1326, %v1353
        %v1355 = vcombine.high %v1333, %v1333
        %v1356 = vcombine.high %v1340, %v1340
        %v1357 = vcombine.high %v1347, %v1347
        %v1358 = vcombine.high %v1354, %v1354
        %v1359 = vlaneseq
        %v1360 = vshrl.u32 %v1359, 7
        %v1361 = vsub.s32 0, %v1360
        %v1362 = vrot.slane %v1333, %v1361
        %v1363 = vlaneseq
        %v1364 = vshrl.u32 %v1363, 7
        %v1365 = vsub.s32 0, %v1364
        %v1366 = vrot.slane %v1347, %v1365
        %v1367 = vlaneseq
        %v1368 = vshrl.u32 %v1367, 7
        %v1369 = vsub.s32 0, %v1368
        %v1370 = vrot.slane %v1355, %v1369
        %v1371 = vlaneseq
        %v1372 = vshrl.u32 %v1371, 7
        %v1373 = vsub.s32 0, %v1372
        %v1374 = vrot.slane %v1357, %v1373
        %v1375 = vlaneseq
        %v1376 = vshrl.u32 %v1375, 7
        %v1377 = vsub.s32 0, %v1376
        %v1378 = vrot.slane %v1340, %v1377
        %v1379 = vlaneseq
        %v1380 = vshrl.u32 %v1379, 7
        %v1381 = vsub.s32 0, %v1380
        %v1382 = vrot.slane %v1354, %v1381
        %v1383 = vlaneseq
        %v1384 = vshrl.u32 %v1383, 7
        %v1385 = vsub.s32 0, %v1384
        %v1386 = vrot.slane %v1356, %v1385
        %v1387 = vlaneseq
        %v1388 = vshrl.u32 %v1387, 7
        %v1389 = vsub.s32 0, %v1388
        %v1390 = vrot.slane %v1358, %v1389
        %v1399 = vmul.f32 %v1362, %v1081
        %v1400 = vmul.f32 %v1362, %v1083
        %v1401 = vmul.f32 %v1362, %v1085
        %v1402 = vmul.f32 %v1362, %v1087
        %v1403 = vmul.f32 %v1362, %v1089
        %v1404 = vmul.f32 %v1362, %v1091
        %v1405 = vmul.f32 %v1362, %v1093
        %v1406 = vmul.f32 %v1366, %v1095
        %v1407 = vmul.f32 %v1366, %v1097
        %v1408 = vmul.f32 %v1366, %v1099
        %v1409 = vmul.f32 %v1366, %v1101
        %v1410 = vmul.f32 %v1366, %v1103
        %v1411 = vmul.f32 %v1366, %v1105
        %v1412 = vmul.f32 %v1366, %v1107
        %v1413 = vmul.f32 %v1370, %v1109
        %v1414 = vmul.f32 %v1370, %v1111
        %v1415 = vmul.f32 %v1370, %v1113
        %v1416 = vmul.f32 %v1370, %v1115
        %v1417 = vmul.f32 %v1370, %v1117
        %v1418 = vmul.f32 %v1370, %v1119
        %v1419 = vmul.f32 %v1370, %v1121
        %v1420 = vmul.f32 %v1374, %v1123
        %v1421 = vmul.f32 %v1374, %v1125
        %v1422 = vmul.f32 %v1374, %v1127
        %v1423 = vmul.f32 %v1374, %v1129
        %v1424 = vmul.f32 %v1374, %v1131
        %v1425 = vmul.f32 %v1374, %v1133
        %v1426 = vmul.f32 %v1374, %v1135
        %v1427 = vmul.f32 %v1378, %v1137
        %v1428 = vmul.f32 %v1378, %v1139
        %v1429 = vmul.f32 %v1378, %v1141
        %v1430 = vmul.f32 %v1378, %v1143
        %v1431 = vmul.f32 %v1378, %v1145
        %v1432 = vmul.f32 %v1378, %v1147
        %v1433 = vmul.f32 %v1378, %v1149
        %v1434 = vmul.f32 %v1382, %v1151
        %v1435 = vmul.f32 %v1382, %v1153
        %v1436 = vmul.f32 %v1382, %v1155
        %v1437 = vmul.f32 %v1382, %v1157
        %v1438 = vmul.f32 %v1382, %v1159
        %v1439 = vmul.f32 %v1382, %v1161
        %v1440 = vmul.f32 %v1382, %v1163
        %v1441 = vmul.f32 %v1386, %v1165
        %v1442 = vmul.f32 %v1386, %v1167
        %v1443 = vmul.f32 %v1386, %v1169
        %v1444 = vmul.f32 %v1386, %v1171
        %v1445 = vmul.f32 %v1386, %v1173
        %v1446 = vmul.f32 %v1386, %v1175
        %v1447 = vmul.f32 %v1386, %v1177
        %v1448 = vmul.f32 %v1390, %v1179
        %v1449 = vmul.f32 %v1390, %v1181
        %v1450 = vmul.f32 %v1390, %v1183
        %v1451 = vmul.f32 %v1390, %v1185
        %v1452 = vmul.f32 %v1390, %v1187
        %v1453 = vmul.f32 %v1390, %v1189
        %v1454 = vmul.f32 %v1390, %v1191
        %v1455 = vld [vmem:[%s5] sm:$0xff]
        %v1456 = vld [vmem:[%s5 + $0x8] sm:$0xff]
        %v1457 = vld [vmem:[%s5 + $0x10] sm:$0xff]
        %v1458 = vld [vmem:[%s5 + $0x18] sm:$0xff]
        %v1459 = vld [vmem:[%s5 + $0x20] sm:$0xff]
        %v1460 = vld [vmem:[%s5 + $0x28] sm:$0xff]
        %v1461 = vld [vmem:[%s5 + $0x30] sm:$0xff]
        %v1462 = vld [vmem:[%s5 + $0x38] sm:$0xff]
        %v1463 = vld [vmem:[%s5 + $0x40] sm:$0xff]
        %v1464 = vld [vmem:[%s5 + $0x48] sm:$0xff]
        %v1465 = vld [vmem:[%s5 + $0x50] sm:$0xff]
        %v1466 = vld [vmem:[%s5 + $0x58] sm:$0xff]
        %v1467 = vld [vmem:[%s5 + $0x60] sm:$0xff]
        %v1468 = vld [vmem:[%s5 + $0x68] sm:$0xff]
        %v1469 = vld [vmem:[%s5 + $0x70] sm:$0xff]
        %v1470 = vld [vmem:[%s5 + $0x78] sm:$0xff]
        %1471 = vmatprep.subr.mxu0 0.0
        %1472 = vmatpush1.msra.mxu0 %v1455
        %1473 = vmatprep.subr.mxu0 0.0
        %1474 = vmatpush1.msra.mxu0 %v1456
        %1475 = vmatprep.subr.mxu0 0.0
        %1476 = vmatpush1.msra.mxu0 %v1457
        %1477 = vmatprep.subr.mxu0 0.0
        %1478 = vmatpush1.msra.mxu0 %v1458
        %1479 = vmatprep.subr.mxu0 0.0
        %1480 = vmatpush1.msra.mxu0 %v1459
        %1481 = vmatprep.subr.mxu0 0.0
        %1482 = vmatpush1.msra.mxu0 %v1460
        %1483 = vmatprep.subr.mxu0 0.0
        %1484 = vmatpush1.msra.mxu0 %v1461
        %1485 = vmatprep.subr.mxu0 0.0
        %1486 = vmatpush1.msra.mxu0 %v1462
        %1487 = vmatprep.subr.mxu0 0.0
        %1488 = vmatpush1.msra.mxu0 %v1463
        %1489 = vmatprep.subr.mxu0 0.0
        %1490 = vmatpush1.msra.mxu0 %v1464
        %1491 = vmatprep.subr.mxu0 0.0
        %1492 = vmatpush1.msra.mxu0 %v1465
        %1493 = vmatprep.subr.mxu0 0.0
        %1494 = vmatpush1.msra.mxu0 %v1466
        %1495 = vmatprep.subr.mxu0 0.0
        %1496 = vmatpush1.msra.mxu0 %v1467
        %1497 = vmatprep.subr.mxu0 0.0
        %1498 = vmatpush1.msra.mxu0 %v1468
        %1499 = vmatprep.subr.mxu0 0.0
        %1500 = vmatpush1.msra.mxu0 %v1469
        %1501 = vmatprep.subr.mxu0 0.0
        %1502 = vmatpush1.msra.mxu0 %v1470
        %1503 = vmatprep.subr.mxu0 0.0
        %1504 = vmatpush1.msra.mxu0 0.0
        %1505 = vmatprep.subr.mxu0 0.0
        %1506 = vmatpush1.msra.mxu0 0.0
        %1507 = vmatprep.subr.mxu0 0.0
        %1508 = vmatpush1.msra.mxu0 0.0
        %1509 = vmatprep.subr.mxu0 0.0
        %1510 = vmatpush1.msra.mxu0 0.0
        %1511 = vmatprep.subr.mxu0 0.0
        %1512 = vmatpush1.msra.mxu0 0.0
        %1513 = vmatprep.subr.mxu0 0.0
        %1514 = vmatpush1.msra.mxu0 0.0
        %1515 = vmatprep.subr.mxu0 0.0
        %1516 = vmatpush1.msra.mxu0 0.0
        %1517 = vmatprep.subr.mxu0 0.0
        %1518 = vmatpush1.msra.mxu0 0.0
        %1519 = vmatprep.subr.mxu0 0.0
        %1520 = vmatpush1.msra.mxu0 0.0
        %1521 = vmatprep.subr.mxu0 0.0
        %1522 = vmatpush1.msra.mxu0 0.0
        %1523 = vmatprep.subr.mxu0 0.0
        %1524 = vmatpush1.msra.mxu0 0.0
        %1525 = vmatprep.subr.mxu0 0.0
        %1526 = vmatpush1.msra.mxu0 0.0
        %1527 = vmatprep.subr.mxu0 0.0
        %1528 = vmatpush1.msra.mxu0 0.0
        %1529 = vmatprep.subr.mxu0 0.0
        %1530 = vmatpush1.msra.mxu0 0.0
        %1531 = vmatprep.subr.mxu0 0.0
        %1532 = vmatpush1.msra.mxu0 0.0
        %1533 = vmatprep.subr.mxu0 0.0
        %1534 = vmatpush1.msra.mxu0 0.0
        %1535 = vmatprep.mubr.f32.mxu0 0.0
        %1536 = vmatmul.mubr.f32.gmra.mrb[0].mxu0 %v1399
        %v1537 = vpop.f32.mrb[0].mxu0
        %v1538 = vadd.f32 0.0, %v1537
        %v1539 = vpop.f32.mrb[0].mxu0
        %1540 = vmatprep.mubr.f32.mxu0 0.0
        %1541 = vmatmul.mubr.f32.gmra.mrb[0].mxu0 %v1400
        %v1542 = vpop.f32.mrb[0].mxu0
        %v1543 = vadd.f32 0.0, %v1542
        %v1544 = vpop.f32.mrb[0].mxu0
        %1545 = vmatprep.mubr.f32.mxu0 0.0
        %1546 = vmatmul.mubr.f32.gmra.mrb[0].mxu0 %v1401
        %v1547 = vpop.f32.mrb[0].mxu0
        %v1548 = vadd.f32 0.0, %v1547
        %v1549 = vpop.f32.mrb[0].mxu0
        %1550 = vmatprep.mubr.f32.mxu0 0.0
        %1551 = vmatmul.mubr.f32.gmra.mrb[0].mxu0 %v1402
        %v1552 = vpop.f32.mrb[0].mxu0
        %v1553 = vadd.f32 0.0, %v1552
        %v1554 = vpop.f32.mrb[0].mxu0
        %1555 = vmatprep.mubr.f32.mxu0 0.0
        %1556 = vmatmul.mubr.f32.gmra.mrb[0].mxu0 %v1403
        %v1557 = vpop.f32.mrb[0].mxu0
        %v1558 = vadd.f32 0.0, %v1557
        %v1559 = vpop.f32.mrb[0].mxu0
        %1560 = vmatprep.mubr.f32.mxu0 0.0
        %1561 = vmatmul.mubr.f32.gmra.mrb[0].mxu0 %v1404
        %v1562 = vpop.f32.mrb[0].mxu0
        %v1563 = vadd.f32 0.0, %v1562
        %v1564 = vpop.f32.mrb[0].mxu0
        %1565 = vmatprep.mubr.f32.mxu0 0.0
        %1566 = vmatmul.mubr.f32.gmra.mrb[0].mxu0 %v1405
        %v1567 = vpop.f32.mrb[0].mxu0
        %v1568 = vadd.f32 0.0, %v1567
        %v1569 = vpop.f32.mrb[0].mxu0
        %1570 = vmatprep.mubr.f32.mxu0 0.0
        %1571 = vmatmul.mubr.f32.gmra.mrb[0].mxu0 %v1406
        %v1572 = vpop.f32.mrb[0].mxu0
        %v1573 = vadd.f32 0.0, %v1572
        %v1574 = vpop.f32.mrb[0].mxu0
        %1575 = vmatprep.mubr.f32.mxu0 0.0
        %1576 = vmatmul.mubr.f32.gmra.mrb[0].mxu0 %v1407
        %v1577 = vpop.f32.mrb[0].mxu0
        %v1578 = vadd.f32 0.0, %v1577
        %v1579 = vpop.f32.mrb[0].mxu0
        %1580 = vmatprep.mubr.f32.mxu0 0.0
        %1581 = vmatmul.mubr.f32.gmra.mrb[0].mxu0 %v1408
        %v1582 = vpop.f32.mrb[0].mxu0
        %v1583 = vadd.f32 0.0, %v1582
        %v1584 = vpop.f32.mrb[0].mxu0
        %1585 = vmatprep.mubr.f32.mxu0 0.0
        %1586 = vmatmul.mubr.f32.gmra.mrb[0].mxu0 %v1409
        %v1587 = vpop.f32.mrb[0].mxu0
        %v1588 = vadd.f32 0.0, %v1587
        %v1589 = vpop.f32.mrb[0].mxu0
        %1590 = vmatprep.mubr.f32.mxu0 0.0
        %1591 = vmatmul.mubr.f32.gmra.mrb[0].mxu0 %v1410
        %v1592 = vpop.f32.mrb[0].mxu0
        %v1593 = vadd.f32 0.0, %v1592
        %v1594 = vpop.f32.mrb[0].mxu0
        %1595 = vmatprep.mubr.f32.mxu0 0.0
        %1596 = vmatmul.mubr.f32.gmra.mrb[0].mxu0 %v1411
        %v1597 = vpop.f32.mrb[0].mxu0
        %v1598 = vadd.f32 0.0, %v1597
        %v1599 = vpop.f32.mrb[0].mxu0
        %1600 = vmatprep.mubr.f32.mxu0 0.0
        %1601 = vmatmul.mubr.f32.gmra.mrb[0].mxu0 %v1412
        %v1602 = vpop.f32.mrb[0].mxu0
        %v1603 = vadd.f32 0.0, %v1602
        %v1604 = vpop.f32.mrb[0].mxu0
        %1605 = vmatprep.mubr.f32.mxu0 0.0
        %1606 = vmatmul.mubr.f32.gmra.mrb[0].mxu0 %v1413
        %v1607 = vpop.f32.mrb[0].mxu0
        %v1608 = vadd.f32 0.0, %v1607
        %v1609 = vpop.f32.mrb[0].mxu0
        %1610 = vmatprep.mubr.f32.mxu0 0.0
        %1611 = vmatmul.mubr.f32.gmra.mrb[0].mxu0 %v1414
        %v1612 = vpop.f32.mrb[0].mxu0
        %v1613 = vadd.f32 0.0, %v1612
        %v1614 = vpop.f32.mrb[0].mxu0
        %1615 = vmatprep.mubr.f32.mxu0 0.0
        %1616 = vmatmul.mubr.f32.gmra.mrb[0].mxu0 %v1415
        %v1617 = vpop.f32.mrb[0].mxu0
        %v1618 = vadd.f32 0.0, %v1617
        %v1619 = vpop.f32.mrb[0].mxu0
        %1620 = vmatprep.mubr.f32.mxu0 0.0
        %1621 = vmatmul.mubr.f32.gmra.mrb[0].mxu0 %v1416
        %v1622 = vpop.f32.mrb[0].mxu0
        %v1623 = vadd.f32 0.0, %v1622
        %v1624 = vpop.f32.mrb[0].mxu0
        %1625 = vmatprep.mubr.f32.mxu0 0.0
        %1626 = vmatmul.mubr.f32.gmra.mrb[0].mxu0 %v1417
        %v1627 = vpop.f32.mrb[0].mxu0
        %v1628 = vadd.f32 0.0, %v1627
        %v1629 = vpop.f32.mrb[0].mxu0
        %1630 = vmatprep.mubr.f32.mxu0 0.0
        %1631 = vmatmul.mubr.f32.gmra.mrb[0].mxu0 %v1418
        %v1632 = vpop.f32.mrb[0].mxu0
        %v1633 = vadd.f32 0.0, %v1632
        %v1634 = vpop.f32.mrb[0].mxu0
        %1635 = vmatprep.mubr.f32.mxu0 0.0
        %1636 = vmatmul.mubr.f32.gmra.mrb[0].mxu0 %v1419
        %v1637 = vpop.f32.mrb[0].mxu0
        %v1638 = vadd.f32 0.0, %v1637
        %v1639 = vpop.f32.mrb[0].mxu0
        %1640 = vmatprep.mubr.f32.mxu0 0.0
        %1641 = vmatmul.mubr.f32.gmra.mrb[0].mxu0 %v1420
        %v1642 = vpop.f32.mrb[0].mxu0
        %v1643 = vadd.f32 0.0, %v1642
        %v1644 = vpop.f32.mrb[0].mxu0
        %1645 = vmatprep.mubr.f32.mxu0 0.0
        %1646 = vmatmul.mubr.f32.gmra.mrb[0].mxu0 %v1421
        %v1647 = vpop.f32.mrb[0].mxu0
        %v1648 = vadd.f32 0.0, %v1647
        %v1649 = vpop.f32.mrb[0].mxu0
        %1650 = vmatprep.mubr.f32.mxu0 0.0
        %1651 = vmatmul.mubr.f32.gmra.mrb[0].mxu0 %v1422
        %v1652 = vpop.f32.mrb[0].mxu0
        %v1653 = vadd.f32 0.0, %v1652
        %v1654 = vpop.f32.mrb[0].mxu0
        %1655 = vmatprep.mubr.f32.mxu0 0.0
        %1656 = vmatmul.mubr.f32.gmra.mrb[0].mxu0 %v1423
        %v1657 = vpop.f32.mrb[0].mxu0
        %v1658 = vadd.f32 0.0, %v1657
        %v1659 = vpop.f32.mrb[0].mxu0
        %1660 = vmatprep.mubr.f32.mxu0 0.0
        %1661 = vmatmul.mubr.f32.gmra.mrb[0].mxu0 %v1424
        %v1662 = vpop.f32.mrb[0].mxu0
        %v1663 = vadd.f32 0.0, %v1662
        %v1664 = vpop.f32.mrb[0].mxu0
        %1665 = vmatprep.mubr.f32.mxu0 0.0
        %1666 = vmatmul.mubr.f32.gmra.mrb[0].mxu0 %v1425
        %v1667 = vpop.f32.mrb[0].mxu0
        %v1668 = vadd.f32 0.0, %v1667
        %v1669 = vpop.f32.mrb[0].mxu0
        %1670 = vmatprep.mubr.f32.mxu0 0.0
        %1671 = vmatmul.mubr.f32.gmra.mrb[0].mxu0 %v1426
        %v1672 = vpop.f32.mrb[0].mxu0
        %v1673 = vadd.f32 0.0, %v1672
        %v1674 = vpop.f32.mrb[0].mxu0
        %1675 = vmatprep.mubr.f32.mxu0 0.0
        %1676 = vmatmul.mubr.f32.gmra.mrb[0].mxu0 %v1427
        %v1677 = vpop.f32.mrb[0].mxu0
        %v1678 = vadd.f32 0.0, %v1677
        %v1679 = vpop.f32.mrb[0].mxu0
        %1680 = vmatprep.mubr.f32.mxu0 0.0
        %1681 = vmatmul.mubr.f32.gmra.mrb[0].mxu0 %v1428
        %v1682 = vpop.f32.mrb[0].mxu0
        %v1683 = vadd.f32 0.0, %v1682
        %v1684 = vpop.f32.mrb[0].mxu0
        %1685 = vmatprep.mubr.f32.mxu0 0.0
        %1686 = vmatmul.mubr.f32.gmra.mrb[0].mxu0 %v1429
        %v1687 = vpop.f32.mrb[0].mxu0
        %v1688 = vadd.f32 0.0, %v1687
        %v1689 = vpop.f32.mrb[0].mxu0
        %1690 = vmatprep.mubr.f32.mxu0 0.0
        %1691 = vmatmul.mubr.f32.gmra.mrb[0].mxu0 %v1430
        %v1692 = vpop.f32.mrb[0].mxu0
        %v1693 = vadd.f32 0.0, %v1692
        %v1694 = vpop.f32.mrb[0].mxu0
        %1695 = vmatprep.mubr.f32.mxu0 0.0
        %1696 = vmatmul.mubr.f32.gmra.mrb[0].mxu0 %v1431
        %v1697 = vpop.f32.mrb[0].mxu0
        %v1698 = vadd.f32 0.0, %v1697
        %v1699 = vpop.f32.mrb[0].mxu0
        %1700 = vmatprep.mubr.f32.mxu0 0.0
        %1701 = vmatmul.mubr.f32.gmra.mrb[0].mxu0 %v1432
        %v1702 = vpop.f32.mrb[0].mxu0
        %v1703 = vadd.f32 0.0, %v1702
        %v1704 = vpop.f32.mrb[0].mxu0
        %1705 = vmatprep.mubr.f32.mxu0 0.0
        %1706 = vmatmul.mubr.f32.gmra.mrb[0].mxu0 %v1433
        %v1707 = vpop.f32.mrb[0].mxu0
        %v1708 = vadd.f32 0.0, %v1707
        %v1709 = vpop.f32.mrb[0].mxu0
        %1710 = vmatprep.mubr.f32.mxu0 0.0
        %1711 = vmatmul.mubr.f32.gmra.mrb[0].mxu0 %v1434
        %v1712 = vpop.f32.mrb[0].mxu0
        %v1713 = vadd.f32 0.0, %v1712
        %v1714 = vpop.f32.mrb[0].mxu0
        %1715 = vmatprep.mubr.f32.mxu0 0.0
        %1716 = vmatmul.mubr.f32.gmra.mrb[0].mxu0 %v1435
        %v1717 = vpop.f32.mrb[0].mxu0
        %v1718 = vadd.f32 0.0, %v1717
        %v1719 = vpop.f32.mrb[0].mxu0
        %1720 = vmatprep.mubr.f32.mxu0 0.0
        %1721 = vmatmul.mubr.f32.gmra.mrb[0].mxu0 %v1436
        %v1722 = vpop.f32.mrb[0].mxu0
        %v1723 = vadd.f32 0.0, %v1722
        %v1724 = vpop.f32.mrb[0].mxu0
        %1725 = vmatprep.mubr.f32.mxu0 0.0
        %1726 = vmatmul.mubr.f32.gmra.mrb[0].mxu0 %v1437
        %v1727 = vpop.f32.mrb[0].mxu0
        %v1728 = vadd.f32 0.0, %v1727
        %v1729 = vpop.f32.mrb[0].mxu0
        %1730 = vmatprep.mubr.f32.mxu0 0.0
        %1731 = vmatmul.mubr.f32.gmra.mrb[0].mxu0 %v1438
        %v1732 = vpop.f32.mrb[0].mxu0
        %v1733 = vadd.f32 0.0, %v1732
        %v1734 = vpop.f32.mrb[0].mxu0
        %1735 = vmatprep.mubr.f32.mxu0 0.0
        %1736 = vmatmul.mubr.f32.gmra.mrb[0].mxu0 %v1439
        %v1737 = vpop.f32.mrb[0].mxu0
        %v1738 = vadd.f32 0.0, %v1737
        %v1739 = vpop.f32.mrb[0].mxu0
        %1740 = vmatprep.mubr.f32.mxu0 0.0
        %1741 = vmatmul.mubr.f32.gmra.mrb[0].mxu0 %v1440
        %v1742 = vpop.f32.mrb[0].mxu0
        %v1743 = vadd.f32 0.0, %v1742
        %v1744 = vpop.f32.mrb[0].mxu0
        %1745 = vmatprep.mubr.f32.mxu0 0.0
        %1746 = vmatmul.mubr.f32.gmra.mrb[0].mxu0 %v1441
        %v1747 = vpop.f32.mrb[0].mxu0
        %v1748 = vadd.f32 0.0, %v1747
        %v1749 = vpop.f32.mrb[0].mxu0
        %1750 = vmatprep.mubr.f32.mxu0 0.0
        %1751 = vmatmul.mubr.f32.gmra.mrb[0].mxu0 %v1442
        %v1752 = vpop.f32.mrb[0].mxu0
        %v1753 = vadd.f32 0.0, %v1752
        %v1754 = vpop.f32.mrb[0].mxu0
        %1755 = vmatprep.mubr.f32.mxu0 0.0
        %1756 = vmatmul.mubr.f32.gmra.mrb[0].mxu0 %v1443
        %v1757 = vpop.f32.mrb[0].mxu0
        %v1758 = vadd.f32 0.0, %v1757
        %v1759 = vpop.f32.mrb[0].mxu0
        %1760 = vmatprep.mubr.f32.mxu0 0.0
        %1761 = vmatmul.mubr.f32.gmra.mrb[0].mxu0 %v1444
        %v1762 = vpop.f32.mrb[0].mxu0
        %v1763 = vadd.f32 0.0, %v1762
        %v1764 = vpop.f32.mrb[0].mxu0
        %1765 = vmatprep.mubr.f32.mxu0 0.0
        %1766 = vmatmul.mubr.f32.gmra.mrb[0].mxu0 %v1445
        %v1767 = vpop.f32.mrb[0].mxu0
        %v1768 = vadd.f32 0.0, %v1767
        %v1769 = vpop.f32.mrb[0].mxu0
        %1770 = vmatprep.mubr.f32.mxu0 0.0
        %1771 = vmatmul.mubr.f32.gmra.mrb[0].mxu0 %v1446
        %v1772 = vpop.f32.mrb[0].mxu0
        %v1773 = vadd.f32 0.0, %v1772
        %v1774 = vpop.f32.mrb[0].mxu0
        %1775 = vmatprep.mubr.f32.mxu0 0.0
        %1776 = vmatmul.mubr.f32.gmra.mrb[0].mxu0 %v1447
        %v1777 = vpop.f32.mrb[0].mxu0
        %v1778 = vadd.f32 0.0, %v1777
        %v1779 = vpop.f32.mrb[0].mxu0
        %1780 = vmatprep.mubr.f32.mxu0 0.0
        %1781 = vmatmul.mubr.f32.gmra.mrb[0].mxu0 %v1448
        %v1782 = vpop.f32.mrb[0].mxu0
        %v1783 = vadd.f32 0.0, %v1782
        %v1784 = vpop.f32.mrb[0].mxu0
        %1785 = vmatprep.mubr.f32.mxu0 0.0
        %1786 = vmatmul.mubr.f32.gmra.mrb[0].mxu0 %v1449
        %v1787 = vpop.f32.mrb[0].mxu0
        %v1788 = vadd.f32 0.0, %v1787
        %v1789 = vpop.f32.mrb[0].mxu0
        %1790 = vmatprep.mubr.f32.mxu0 0.0
        %1791 = vmatmul.mubr.f32.gmra.mrb[0].mxu0 %v1450
        %v1792 = vpop.f32.mrb[0].mxu0
        %v1793 = vadd.f32 0.0, %v1792
        %v1794 = vpop.f32.mrb[0].mxu0
        %1795 = vmatprep.mubr.f32.mxu0 0.0
        %1796 = vmatmul.mubr.f32.gmra.mrb[0].mxu0 %v1451
        %v1797 = vpop.f32.mrb[0].mxu0
        %v1798 = vadd.f32 0.0, %v1797
        %v1799 = vpop.f32.mrb[0].mxu0
        %1800 = vmatprep.mubr.f32.mxu0 0.0
        %1801 = vmatmul.mubr.f32.gmra.mrb[0].mxu0 %v1452
        %v1802 = vpop.f32.mrb[0].mxu0
        %v1803 = vadd.f32 0.0, %v1802
        %v1804 = vpop.f32.mrb[0].mxu0
        %1805 = vmatprep.mubr.f32.mxu0 0.0
        %1806 = vmatmul.mubr.f32.gmra.mrb[0].mxu0 %v1453
        %v1807 = vpop.f32.mrb[0].mxu0
        %v1808 = vadd.f32 0.0, %v1807
        %v1809 = vpop.f32.mrb[0].mxu0
        %1810 = vmatprep.mubr.f32.mxu0 0.0
        %1811 = vmatmul.mubr.f32.gmra.mrb[0].mxu0 %v1454
        %v1812 = vpop.f32.mrb[0].mxu0
        %v1813 = vadd.f32 0.0, %v1812
        %v1814 = vpop.f32.mrb[0].mxu0
        %1815 = vdwg.mxu0
        %v1816 = vlaneseq
        %v1817 = vshrl.u32 %v1816, 7
        %v1818 = vadd.s32 %v1817, 8
        %v1819 = vadd.s32 %v1817, 16
        %v1820 = vadd.s32 %v1817, 24
        %v1821 = vadd.s32 %v1817, 32
        %v1822 = vadd.s32 %v1817, 40
        %v1823 = vadd.s32 %v1817, 48
        %vm1824 = vcmp.lt.s32.totalorder %v1817, 50
        %vm1825 = vcmp.lt.s32.totalorder %v1818, 50
        %vm1826 = vcmp.lt.s32.totalorder %v1819, 50
        %vm1827 = vcmp.lt.s32.totalorder %v1820, 50
        %vm1828 = vcmp.lt.s32.totalorder %v1821, 50
        %vm1829 = vcmp.lt.s32.totalorder %v1822, 50
        %vm1830 = vcmp.lt.s32.totalorder %v1823, 50
        %v1831 = vsel %vm1824, %v1538, -1e+30
        %v1832 = vsel %vm1825, %v1543, -1e+30
        %v1833 = vsel %vm1826, %v1548, -1e+30
        %v1834 = vsel %vm1827, %v1553, -1e+30
        %v1835 = vsel %vm1828, %v1558, -1e+30
        %v1836 = vsel %vm1829, %v1563, -1e+30
        %v1837 = vsel %vm1830, %v1568, -1e+30
        %v1838 = vsel %vm1824, %v1573, -1e+30
        %v1839 = vsel %vm1825, %v1578, -1e+30
        %v1840 = vsel %vm1826, %v1583, -1e+30
        %v1841 = vsel %vm1827, %v1588, -1e+30
        %v1842 = vsel %vm1828, %v1593, -1e+30
        %v1843 = vsel %vm1829, %v1598, -1e+30
        %v1844 = vsel %vm1830, %v1603, -1e+30
        %v1845 = vsel %vm1824, %v1608, -1e+30
        %v1846 = vsel %vm1825, %v1613, -1e+30
        %v1847 = vsel %vm1826, %v1618, -1e+30
        %v1848 = vsel %vm1827, %v1623, -1e+30
        %v1849 = vsel %vm1828, %v1628, -1e+30
        %v1850 = vsel %vm1829, %v1633, -1e+30
        %v1851 = vsel %vm1830, %v1638, -1e+30
        %v1852 = vsel %vm1824, %v1643, -1e+30
        %v1853 = vsel %vm1825, %v1648, -1e+30
        %v1854 = vsel %vm1826, %v1653, -1e+30
        %v1855 = vsel %vm1827, %v1658, -1e+30
        %v1856 = vsel %vm1828, %v1663, -1e+30
        %v1857 = vsel %vm1829, %v1668, -1e+30
        %v1858 = vsel %vm1830, %v1673, -1e+30
        %v1859 = vsel %vm1824, %v1678, -1e+30
        %v1860 = vsel %vm1825, %v1683, -1e+30
        %v1861 = vsel %vm1826, %v1688, -1e+30
        %v1862 = vsel %vm1827, %v1693, -1e+30
        %v1863 = vsel %vm1828, %v1698, -1e+30
        %v1864 = vsel %vm1829, %v1703, -1e+30
        %v1865 = vsel %vm1830, %v1708, -1e+30
        %v1866 = vsel %vm1824, %v1713, -1e+30
        %v1867 = vsel %vm1825, %v1718, -1e+30
        %v1868 = vsel %vm1826, %v1723, -1e+30
        %v1869 = vsel %vm1827, %v1728, -1e+30
        %v1870 = vsel %vm1828, %v1733, -1e+30
        %v1871 = vsel %vm1829, %v1738, -1e+30
        %v1872 = vsel %vm1830, %v1743, -1e+30
        %v1873 = vsel %vm1824, %v1748, -1e+30
        %v1874 = vsel %vm1825, %v1753, -1e+30
        %v1875 = vsel %vm1826, %v1758, -1e+30
        %v1876 = vsel %vm1827, %v1763, -1e+30
        %v1877 = vsel %vm1828, %v1768, -1e+30
        %v1878 = vsel %vm1829, %v1773, -1e+30
        %v1879 = vsel %vm1830, %v1778, -1e+30
        %v1880 = vsel %vm1824, %v1783, -1e+30
        %v1881 = vsel %vm1825, %v1788, -1e+30
        %v1882 = vsel %vm1826, %v1793, -1e+30
        %v1883 = vsel %vm1827, %v1798, -1e+30
        %v1884 = vsel %vm1828, %v1803, -1e+30
        %v1885 = vsel %vm1829, %v1808, -1e+30
        %v1886 = vsel %vm1830, %v1813, -1e+30
        %vm1887 = vcmask 31744
        %v1888 = vsel %vm1887, %v1831, -inf
        %v1889 = vsel %vm1887, %v1832, -inf
        %v1890 = vmax.f32 %v1888, %v1889
        %v1891 = vsel %vm1887, %v1833, -inf
        %v1892 = vmax.f32 %v1890, %v1891
        %v1893 = vsel %vm1887, %v1834, -inf
        %v1894 = vmax.f32 %v1892, %v1893
        %v1895 = vsel %vm1887, %v1835, -inf
        %v1896 = vmax.f32 %v1894, %v1895
        %v1897 = vsel %vm1887, %v1836, -inf
        %v1898 = vmax.f32 %v1896, %v1897
        %v1899 = vsel %vm1887, %v1837, -inf
        %v1900 = vmax.f32 %v1898, %v1899
        %v1901 = vrot.slane %v1900, 4
        %v1902 = vmax.f32 %v1900, %v1901
        %v1903 = vrot.slane %v1902, 2
        %v1904 = vmax.f32 %v1902, %v1903
        %v1905 = vrot.slane %v1904, 1
        %v1906 = vmax.f32 %v1904, %v1905
        %v1907 = vsel %vm1887, %v1838, -inf
        %v1908 = vsel %vm1887, %v1839, -inf
        %v1909 = vmax.f32 %v1907, %v1908
        %v1910 = vsel %vm1887, %v1840, -inf
        %v1911 = vmax.f32 %v1909, %v1910
        %v1912 = vsel %vm1887, %v1841, -inf
        %v1913 = vmax.f32 %v1911, %v1912
        %v1914 = vsel %vm1887, %v1842, -inf
        %v1915 = vmax.f32 %v1913, %v1914
        %v1916 = vsel %vm1887, %v1843, -inf
        %v1917 = vmax.f32 %v1915, %v1916
        %v1918 = vsel %vm1887, %v1844, -inf
        %v1919 = vmax.f32 %v1917, %v1918
        %v1920 = vrot.slane %v1919, 4
        %v1921 = vmax.f32 %v1919, %v1920
        %v1922 = vrot.slane %v1921, 2
        %v1923 = vmax.f32 %v1921, %v1922
        %v1924 = vrot.slane %v1923, 1
        %v1925 = vmax.f32 %v1923, %v1924
        %v1926 = vsel %vm1887, %v1845, -inf
        %v1927 = vsel %vm1887, %v1846, -inf
        %v1928 = vmax.f32 %v1926, %v1927
        %v1929 = vsel %vm1887, %v1847, -inf
        %v1930 = vmax.f32 %v1928, %v1929
        %v1931 = vsel %vm1887, %v1848, -inf
        %v1932 = vmax.f32 %v1930, %v1931
        %v1933 = vsel %vm1887, %v1849, -inf
        %v1934 = vmax.f32 %v1932, %v1933
        %v1935 = vsel %vm1887, %v1850, -inf
        %v1936 = vmax.f32 %v1934, %v1935
        %v1937 = vsel %vm1887, %v1851, -inf
        %v1938 = vmax.f32 %v1936, %v1937
        %v1939 = vrot.slane %v1938, 4
        %v1940 = vmax.f32 %v1938, %v1939
        %v1941 = vrot.slane %v1940, 2
        %v1942 = vmax.f32 %v1940, %v1941
        %v1943 = vrot.slane %v1942, 1
        %v1944 = vmax.f32 %v1942, %v1943
        %v1945 = vsel %vm1887, %v1852, -inf
        %v1946 = vsel %vm1887, %v1853, -inf
        %v1947 = vmax.f32 %v1945, %v1946
        %v1948 = vsel %vm1887, %v1854, -inf
        %v1949 = vmax.f32 %v1947, %v1948
        %v1950 = vsel %vm1887, %v1855, -inf
        %v1951 = vmax.f32 %v1949, %v1950
        %v1952 = vsel %vm1887, %v1856, -inf
        %v1953 = vmax.f32 %v1951, %v1952
        %v1954 = vsel %vm1887, %v1857, -inf
        %v1955 = vmax.f32 %v1953, %v1954
        %v1956 = vsel %vm1887, %v1858, -inf
        %v1957 = vmax.f32 %v1955, %v1956
        %v1958 = vrot.slane %v1957, 4
        %v1959 = vmax.f32 %v1957, %v1958
        %v1960 = vrot.slane %v1959, 2
        %v1961 = vmax.f32 %v1959, %v1960
        %v1962 = vrot.slane %v1961, 1
        %v1963 = vmax.f32 %v1961, %v1962
        %v1964 = vsel %vm1887, %v1859, -inf
        %v1965 = vsel %vm1887, %v1860, -inf
        %v1966 = vmax.f32 %v1964, %v1965
        %v1967 = vsel %vm1887, %v1861, -inf
        %v1968 = vmax.f32 %v1966, %v1967
        %v1969 = vsel %vm1887, %v1862, -inf
        %v1970 = vmax.f32 %v1968, %v1969
        %v1971 = vsel %vm1887, %v1863, -inf
        %v1972 = vmax.f32 %v1970, %v1971
        %v1973 = vsel %vm1887, %v1864, -inf
        %v1974 = vmax.f32 %v1972, %v1973
        %v1975 = vsel %vm1887, %v1865, -inf
        %v1976 = vmax.f32 %v1974, %v1975
        %v1977 = vrot.slane %v1976, 4
        %v1978 = vmax.f32 %v1976, %v1977
        %v1979 = vrot.slane %v1978, 2
        %v1980 = vmax.f32 %v1978, %v1979
        %v1981 = vrot.slane %v1980, 1
        %v1982 = vmax.f32 %v1980, %v1981
        %v1983 = vsel %vm1887, %v1866, -inf
        %v1984 = vsel %vm1887, %v1867, -inf
        %v1985 = vmax.f32 %v1983, %v1984
        %v1986 = vsel %vm1887, %v1868, -inf
        %v1987 = vmax.f32 %v1985, %v1986
        %v1988 = vsel %vm1887, %v1869, -inf
        %v1989 = vmax.f32 %v1987, %v1988
        %v1990 = vsel %vm1887, %v1870, -inf
        %v1991 = vmax.f32 %v1989, %v1990
        %v1992 = vsel %vm1887, %v1871, -inf
        %v1993 = vmax.f32 %v1991, %v1992
        %v1994 = vsel %vm1887, %v1872, -inf
        %v1995 = vmax.f32 %v1993, %v1994
        %v1996 = vrot.slane %v1995, 4
        %v1997 = vmax.f32 %v1995, %v1996
        %v1998 = vrot.slane %v1997, 2
        %v1999 = vmax.f32 %v1997, %v1998
        %v2000 = vrot.slane %v1999, 1
        %v2001 = vmax.f32 %v1999, %v2000
        %v2002 = vsel %vm1887, %v1873, -inf
        %v2003 = vsel %vm1887, %v1874, -inf
        %v2004 = vmax.f32 %v2002, %v2003
        %v2005 = vsel %vm1887, %v1875, -inf
        %v2006 = vmax.f32 %v2004, %v2005
        %v2007 = vsel %vm1887, %v1876, -inf
        %v2008 = vmax.f32 %v2006, %v2007
        %v2009 = vsel %vm1887, %v1877, -inf
        %v2010 = vmax.f32 %v2008, %v2009
        %v2011 = vsel %vm1887, %v1878, -inf
        %v2012 = vmax.f32 %v2010, %v2011
        %v2013 = vsel %vm1887, %v1879, -inf
        %v2014 = vmax.f32 %v2012, %v2013
        %v2015 = vrot.slane %v2014, 4
        %v2016 = vmax.f32 %v2014, %v2015
        %v2017 = vrot.slane %v2016, 2
        %v2018 = vmax.f32 %v2016, %v2017
        %v2019 = vrot.slane %v2018, 1
        %v2020 = vmax.f32 %v2018, %v2019
        %v2021 = vsel %vm1887, %v1880, -inf
        %v2022 = vsel %vm1887, %v1881, -inf
        %v2023 = vmax.f32 %v2021, %v2022
        %v2024 = vsel %vm1887, %v1882, -inf
        %v2025 = vmax.f32 %v2023, %v2024
        %v2026 = vsel %vm1887, %v1883, -inf
        %v2027 = vmax.f32 %v2025, %v2026
        %v2028 = vsel %vm1887, %v1884, -inf
        %v2029 = vmax.f32 %v2027, %v2028
        %v2030 = vsel %vm1887, %v1885, -inf
        %v2031 = vmax.f32 %v2029, %v2030
        %v2032 = vsel %vm1887, %v1886, -inf
        %v2033 = vmax.f32 %v2031, %v2032
        %v2034 = vrot.slane %v2033, 4
        %v2035 = vmax.f32 %v2033, %v2034
        %v2036 = vrot.slane %v2035, 2
        %v2037 = vmax.f32 %v2035, %v2036
        %v2038 = vrot.slane %v2037, 1
        %v2039 = vmax.f32 %v2037, %v2038
        %v2040 = vsub.f32 %v1831, %v1906
        %v2041 = vsub.f32 %v1832, %v1906
        %v2042 = vsub.f32 %v1833, %v1906
        %v2043 = vsub.f32 %v1834, %v1906
        %v2044 = vsub.f32 %v1835, %v1906
        %v2045 = vsub.f32 %v1836, %v1906
        %v2046 = vsub.f32 %v1837, %v1906
        %v2047 = vsub.f32 %v1838, %v1925
        %v2048 = vsub.f32 %v1839, %v1925
        %v2049 = vsub.f32 %v1840, %v1925
        %v2050 = vsub.f32 %v1841, %v1925
        %v2051 = vsub.f32 %v1842, %v1925
        %v2052 = vsub.f32 %v1843, %v1925
        %v2053 = vsub.f32 %v1844, %v1925
        %v2054 = vsub.f32 %v1845, %v1944
        %v2055 = vsub.f32 %v1846, %v1944
        %v2056 = vsub.f32 %v1847, %v1944
        %v2057 = vsub.f32 %v1848, %v1944
        %v2058 = vsub.f32 %v1849, %v1944
        %v2059 = vsub.f32 %v1850, %v1944
        %v2060 = vsub.f32 %v1851, %v1944
        %v2061 = vsub.f32 %v1852, %v1963
        %v2062 = vsub.f32 %v1853, %v1963
        %v2063 = vsub.f32 %v1854, %v1963
        %v2064 = vsub.f32 %v1855, %v1963
        %v2065 = vsub.f32 %v1856, %v1963
        %v2066 = vsub.f32 %v1857, %v1963
        %v2067 = vsub.f32 %v1858, %v1963
        %v2068 = vsub.f32 %v1859, %v1982
        %v2069 = vsub.f32 %v1860, %v1982
        %v2070 = vsub.f32 %v1861, %v1982
        %v2071 = vsub.f32 %v1862, %v1982
        %v2072 = vsub.f32 %v1863, %v1982
        %v2073 = vsub.f32 %v1864, %v1982
        %v2074 = vsub.f32 %v1865, %v1982
        %v2075 = vsub.f32 %v1866, %v2001
        %v2076 = vsub.f32 %v1867, %v2001
        %v2077 = vsub.f32 %v1868, %v2001
        %v2078 = vsub.f32 %v1869, %v2001
        %v2079 = vsub.f32 %v1870, %v2001
        %v2080 = vsub.f32 %v1871, %v2001
        %v2081 = vsub.f32 %v1872, %v2001
        %v2082 = vsub.f32 %v1873, %v2020
        %v2083 = vsub.f32 %v1874, %v2020
        %v2084 = vsub.f32 %v1875, %v2020
        %v2085 = vsub.f32 %v1876, %v2020
        %v2086 = vsub.f32 %v1877, %v2020
        %v2087 = vsub.f32 %v1878, %v2020
        %v2088 = vsub.f32 %v1879, %v2020
        %v2089 = vsub.f32 %v1880, %v2039
        %v2090 = vsub.f32 %v1881, %v2039
        %v2091 = vsub.f32 %v1882, %v2039
        %v2092 = vsub.f32 %v1883, %v2039
        %v2093 = vsub.f32 %v1884, %v2039
        %v2094 = vsub.f32 %v1885, %v2039
        %v2095 = vsub.f32 %v1886, %v2039
        %v2096 = vmul.f32 %v2040, 1.442695
        %v2097 = vpow.pop %v2096
        %v2098 = vmul.f32 %v2041, 1.442695
        %v2099 = vpow.pop %v2098
        %v2100 = vmul.f32 %v2042, 1.442695
        %v2101 = vpow.pop %v2100
        %v2102 = vmul.f32 %v2043, 1.442695
        %v2103 = vpow.pop %v2102
        %v2104 = vmul.f32 %v2044, 1.442695
        %v2105 = vpow.pop %v2104
        %v2106 = vmul.f32 %v2045, 1.442695
        %v2107 = vpow.pop %v2106
        %v2108 = vmul.f32 %v2046, 1.442695
        %v2109 = vpow.pop %v2108
        %v2110 = vmul.f32 %v2047, 1.442695
        %v2111 = vpow.pop %v2110
        %v2112 = vmul.f32 %v2048, 1.442695
        %v2113 = vpow.pop %v2112
        %v2114 = vmul.f32 %v2049, 1.442695
        %v2115 = vpow.pop %v2114
        %v2116 = vmul.f32 %v2050, 1.442695
        %v2117 = vpow.pop %v2116
        %v2118 = vmul.f32 %v2051, 1.442695
        %v2119 = vpow.pop %v2118
        %v2120 = vmul.f32 %v2052, 1.442695
        %v2121 = vpow.pop %v2120
        %v2122 = vmul.f32 %v2053, 1.442695
        %v2123 = vpow.pop %v2122
        %v2124 = vmul.f32 %v2054, 1.442695
        %v2125 = vpow.pop %v2124
        %v2126 = vmul.f32 %v2055, 1.442695
        %v2127 = vpow.pop %v2126
        %v2128 = vmul.f32 %v2056, 1.442695
        %v2129 = vpow.pop %v2128
        %v2130 = vmul.f32 %v2057, 1.442695
        %v2131 = vpow.pop %v2130
        %v2132 = vmul.f32 %v2058, 1.442695
        %v2133 = vpow.pop %v2132
        %v2134 = vmul.f32 %v2059, 1.442695
        %v2135 = vpow.pop %v2134
        %v2136 = vmul.f32 %v2060, 1.442695
        %v2137 = vpow.pop %v2136
        %v2138 = vmul.f32 %v2061, 1.442695
        %v2139 = vpow.pop %v2138
        %v2140 = vmul.f32 %v2062, 1.442695
        %v2141 = vpow.pop %v2140
        %v2142 = vmul.f32 %v2063, 1.442695
        %v2143 = vpow.pop %v2142
        %v2144 = vmul.f32 %v2064, 1.442695
        %v2145 = vpow.pop %v2144
        %v2146 = vmul.f32 %v2065, 1.442695
        %v2147 = vpow.pop %v2146
        %v2148 = vmul.f32 %v2066, 1.442695
        %v2149 = vpow.pop %v2148
        %v2150 = vmul.f32 %v2067, 1.442695
        %v2151 = vpow.pop %v2150
        %v2152 = vmul.f32 %v2068, 1.442695
        %v2153 = vpow.pop %v2152
        %v2154 = vmul.f32 %v2069, 1.442695
        %v2155 = vpow.pop %v2154
        %v2156 = vmul.f32 %v2070, 1.442695
        %v2157 = vpow.pop %v2156
        %v2158 = vmul.f32 %v2071, 1.442695
        %v2159 = vpow.pop %v2158
        %v2160 = vmul.f32 %v2072, 1.442695
        %v2161 = vpow.pop %v2160
        %v2162 = vmul.f32 %v2073, 1.442695
        %v2163 = vpow.pop %v2162
        %v2164 = vmul.f32 %v2074, 1.442695
        %v2165 = vpow.pop %v2164
        %v2166 = vmul.f32 %v2075, 1.442695
        %v2167 = vpow.pop %v2166
        %v2168 = vmul.f32 %v2076, 1.442695
        %v2169 = vpow.pop %v2168
        %v2170 = vmul.f32 %v2077, 1.442695
        %v2171 = vpow.pop %v2170
        %v2172 = vmul.f32 %v2078, 1.442695
        %v2173 = vpow.pop %v2172
        %v2174 = vmul.f32 %v2079, 1.442695
        %v2175 = vpow.pop %v2174
        %v2176 = vmul.f32 %v2080, 1.442695
        %v2177 = vpow.pop %v2176
        %v2178 = vmul.f32 %v2081, 1.442695
        %v2179 = vpow.pop %v2178
        %v2180 = vmul.f32 %v2082, 1.442695
        %v2181 = vpow.pop %v2180
        %v2182 = vmul.f32 %v2083, 1.442695
        %v2183 = vpow.pop %v2182
        %v2184 = vmul.f32 %v2084, 1.442695
        %v2185 = vpow.pop %v2184
        %v2186 = vmul.f32 %v2085, 1.442695
        %v2187 = vpow.pop %v2186
        %v2188 = vmul.f32 %v2086, 1.442695
        %v2189 = vpow.pop %v2188
        %v2190 = vmul.f32 %v2087, 1.442695
        %v2191 = vpow.pop %v2190
        %v2192 = vmul.f32 %v2088, 1.442695
        %v2193 = vpow.pop %v2192
        %v2194 = vmul.f32 %v2089, 1.442695
        %v2195 = vpow.pop %v2194
        %v2196 = vmul.f32 %v2090, 1.442695
        %v2197 = vpow.pop %v2196
        %v2198 = vmul.f32 %v2091, 1.442695
        %v2199 = vpow.pop %v2198
        %v2200 = vmul.f32 %v2092, 1.442695
        %v2201 = vpow.pop %v2200
        %v2202 = vmul.f32 %v2093, 1.442695
        %v2203 = vpow.pop %v2202
        %v2204 = vmul.f32 %v2094, 1.442695
        %v2205 = vpow.pop %v2204
        %v2206 = vmul.f32 %v2095, 1.442695
        %v2207 = vpow.pop %v2206
        %v2208 = vsel %vm1887, %v2097, 0.0
        %v2209 = vsel %vm1887, %v2099, 0.0
        %v2210 = vadd.f32 %v2208, %v2209
        %v2211 = vsel %vm1887, %v2101, 0.0
        %v2212 = vadd.f32 %v2210, %v2211
        %v2213 = vsel %vm1887, %v2103, 0.0
        %v2214 = vadd.f32 %v2212, %v2213
        %v2215 = vsel %vm1887, %v2105, 0.0
        %v2216 = vadd.f32 %v2214, %v2215
        %v2217 = vsel %vm1887, %v2107, 0.0
        %v2218 = vadd.f32 %v2216, %v2217
        %v2219 = vsel %vm1887, %v2109, 0.0
        %v2220 = vadd.f32 %v2218, %v2219
        %v2221 = vrot.slane %v2220, 4
        %v2222 = vadd.f32 %v2220, %v2221
        %v2223 = vrot.slane %v2222, 2
        %v2224 = vadd.f32 %v2222, %v2223
        %v2225 = vrot.slane %v2224, 1
        %v2226 = vadd.f32 %v2224, %v2225
        %v2227 = vsel %vm1887, %v2111, 0.0
        %v2228 = vsel %vm1887, %v2113, 0.0
        %v2229 = vadd.f32 %v2227, %v2228
        %v2230 = vsel %vm1887, %v2115, 0.0
        %v2231 = vadd.f32 %v2229, %v2230
        %v2232 = vsel %vm1887, %v2117, 0.0
        %v2233 = vadd.f32 %v2231, %v2232
        %v2234 = vsel %vm1887, %v2119, 0.0
        %v2235 = vadd.f32 %v2233, %v2234
        %v2236 = vsel %vm1887, %v2121, 0.0
        %v2237 = vadd.f32 %v2235, %v2236
        %v2238 = vsel %vm1887, %v2123, 0.0
        %v2239 = vadd.f32 %v2237, %v2238
        %v2240 = vrot.slane %v2239, 4
        %v2241 = vadd.f32 %v2239, %v2240
        %v2242 = vrot.slane %v2241, 2
        %v2243 = vadd.f32 %v2241, %v2242
        %v2244 = vrot.slane %v2243, 1
        %v2245 = vadd.f32 %v2243, %v2244
        %v2246 = vsel %vm1887, %v2125, 0.0
        %v2247 = vsel %vm1887, %v2127, 0.0
        %v2248 = vadd.f32 %v2246, %v2247
        %v2249 = vsel %vm1887, %v2129, 0.0
        %v2250 = vadd.f32 %v2248, %v2249
        %v2251 = vsel %vm1887, %v2131, 0.0
        %v2252 = vadd.f32 %v2250, %v2251
        %v2253 = vsel %vm1887, %v2133, 0.0
        %v2254 = vadd.f32 %v2252, %v2253
        %v2255 = vsel %vm1887, %v2135, 0.0
        %v2256 = vadd.f32 %v2254, %v2255
        %v2257 = vsel %vm1887, %v2137, 0.0
        %v2258 = vadd.f32 %v2256, %v2257
        %v2259 = vrot.slane %v2258, 4
        %v2260 = vadd.f32 %v2258, %v2259
        %v2261 = vrot.slane %v2260, 2
        %v2262 = vadd.f32 %v2260, %v2261
        %v2263 = vrot.slane %v2262, 1
        %v2264 = vadd.f32 %v2262, %v2263
        %v2265 = vsel %vm1887, %v2139, 0.0
        %v2266 = vsel %vm1887, %v2141, 0.0
        %v2267 = vadd.f32 %v2265, %v2266
        %v2268 = vsel %vm1887, %v2143, 0.0
        %v2269 = vadd.f32 %v2267, %v2268
        %v2270 = vsel %vm1887, %v2145, 0.0
        %v2271 = vadd.f32 %v2269, %v2270
        %v2272 = vsel %vm1887, %v2147, 0.0
        %v2273 = vadd.f32 %v2271, %v2272
        %v2274 = vsel %vm1887, %v2149, 0.0
        %v2275 = vadd.f32 %v2273, %v2274
        %v2276 = vsel %vm1887, %v2151, 0.0
        %v2277 = vadd.f32 %v2275, %v2276
        %v2278 = vrot.slane %v2277, 4
        %v2279 = vadd.f32 %v2277, %v2278
        %v2280 = vrot.slane %v2279, 2
        %v2281 = vadd.f32 %v2279, %v2280
        %v2282 = vrot.slane %v2281, 1
        %v2283 = vadd.f32 %v2281, %v2282
        %v2284 = vsel %vm1887, %v2153, 0.0
        %v2285 = vsel %vm1887, %v2155, 0.0
        %v2286 = vadd.f32 %v2284, %v2285
        %v2287 = vsel %vm1887, %v2157, 0.0
        %v2288 = vadd.f32 %v2286, %v2287
        %v2289 = vsel %vm1887, %v2159, 0.0
        %v2290 = vadd.f32 %v2288, %v2289
        %v2291 = vsel %vm1887, %v2161, 0.0
        %v2292 = vadd.f32 %v2290, %v2291
        %v2293 = vsel %vm1887, %v2163, 0.0
        %v2294 = vadd.f32 %v2292, %v2293
        %v2295 = vsel %vm1887, %v2165, 0.0
        %v2296 = vadd.f32 %v2294, %v2295
        %v2297 = vrot.slane %v2296, 4
        %v2298 = vadd.f32 %v2296, %v2297
        %v2299 = vrot.slane %v2298, 2
        %v2300 = vadd.f32 %v2298, %v2299
        %v2301 = vrot.slane %v2300, 1
        %v2302 = vadd.f32 %v2300, %v2301
        %v2303 = vsel %vm1887, %v2167, 0.0
        %v2304 = vsel %vm1887, %v2169, 0.0
        %v2305 = vadd.f32 %v2303, %v2304
        %v2306 = vsel %vm1887, %v2171, 0.0
        %v2307 = vadd.f32 %v2305, %v2306
        %v2308 = vsel %vm1887, %v2173, 0.0
        %v2309 = vadd.f32 %v2307, %v2308
        %v2310 = vsel %vm1887, %v2175, 0.0
        %v2311 = vadd.f32 %v2309, %v2310
        %v2312 = vsel %vm1887, %v2177, 0.0
        %v2313 = vadd.f32 %v2311, %v2312
        %v2314 = vsel %vm1887, %v2179, 0.0
        %v2315 = vadd.f32 %v2313, %v2314
        %v2316 = vrot.slane %v2315, 4
        %v2317 = vadd.f32 %v2315, %v2316
        %v2318 = vrot.slane %v2317, 2
        %v2319 = vadd.f32 %v2317, %v2318
        %v2320 = vrot.slane %v2319, 1
        %v2321 = vadd.f32 %v2319, %v2320
        %v2322 = vsel %vm1887, %v2181, 0.0
        %v2323 = vsel %vm1887, %v2183, 0.0
        %v2324 = vadd.f32 %v2322, %v2323
        %v2325 = vsel %vm1887, %v2185, 0.0
        %v2326 = vadd.f32 %v2324, %v2325
        %v2327 = vsel %vm1887, %v2187, 0.0
        %v2328 = vadd.f32 %v2326, %v2327
        %v2329 = vsel %vm1887, %v2189, 0.0
        %v2330 = vadd.f32 %v2328, %v2329
        %v2331 = vsel %vm1887, %v2191, 0.0
        %v2332 = vadd.f32 %v2330, %v2331
        %v2333 = vsel %vm1887, %v2193, 0.0
        %v2334 = vadd.f32 %v2332, %v2333
        %v2335 = vrot.slane %v2334, 4
        %v2336 = vadd.f32 %v2334, %v2335
        %v2337 = vrot.slane %v2336, 2
        %v2338 = vadd.f32 %v2336, %v2337
        %v2339 = vrot.slane %v2338, 1
        %v2340 = vadd.f32 %v2338, %v2339
        %v2341 = vsel %vm1887, %v2195, 0.0
        %v2342 = vsel %vm1887, %v2197, 0.0
        %v2343 = vadd.f32 %v2341, %v2342
        %v2344 = vsel %vm1887, %v2199, 0.0
        %v2345 = vadd.f32 %v2343, %v2344
        %v2346 = vsel %vm1887, %v2201, 0.0
        %v2347 = vadd.f32 %v2345, %v2346
        %v2348 = vsel %vm1887, %v2203, 0.0
        %v2349 = vadd.f32 %v2347, %v2348
        %v2350 = vsel %vm1887, %v2205, 0.0
        %v2351 = vadd.f32 %v2349, %v2350
        %v2352 = vsel %vm1887, %v2207, 0.0
        %v2353 = vadd.f32 %v2351, %v2352
        %v2354 = vrot.slane %v2353, 4
        %v2355 = vadd.f32 %v2353, %v2354
        %v2356 = vrot.slane %v2355, 2
        %v2357 = vadd.f32 %v2355, %v2356
        %v2358 = vrot.slane %v2357, 1
        %v2359 = vadd.f32 %v2357, %v2358
        %v2360 = vrcp.pop %v2226
        %v2361 = vrcp.pop %v2245
        %v2362 = vrcp.pop %v2264
        %v2363 = vrcp.pop %v2283
        %v2364 = vrcp.pop %v2302
        %v2365 = vrcp.pop %v2321
        %v2366 = vrcp.pop %v2340
        %v2367 = vrcp.pop %v2359
        %v2368 = vmul.f32 %v2097, %v2360
        %v2369 = vmul.f32 %v2099, %v2360
        %v2370 = vmul.f32 %v2101, %v2360
        %v2371 = vmul.f32 %v2103, %v2360
        %v2372 = vmul.f32 %v2105, %v2360
        %v2373 = vmul.f32 %v2107, %v2360
        %v2374 = vmul.f32 %v2109, %v2360
        %v2375 = vmul.f32 %v2111, %v2361
        %v2376 = vmul.f32 %v2113, %v2361
        %v2377 = vmul.f32 %v2115, %v2361
        %v2378 = vmul.f32 %v2117, %v2361
        %v2379 = vmul.f32 %v2119, %v2361
        %v2380 = vmul.f32 %v2121, %v2361
        %v2381 = vmul.f32 %v2123, %v2361
        %v2382 = vmul.f32 %v2125, %v2362
        %v2383 = vmul.f32 %v2127, %v2362
        %v2384 = vmul.f32 %v2129, %v2362
        %v2385 = vmul.f32 %v2131, %v2362
        %v2386 = vmul.f32 %v2133, %v2362
        %v2387 = vmul.f32 %v2135, %v2362
        %v2388 = vmul.f32 %v2137, %v2362
        %v2389 = vmul.f32 %v2139, %v2363
        %v2390 = vmul.f32 %v2141, %v2363
        %v2391 = vmul.f32 %v2143, %v2363
        %v2392 = vmul.f32 %v2145, %v2363
        %v2393 = vmul.f32 %v2147, %v2363
        %v2394 = vmul.f32 %v2149, %v2363
        %v2395 = vmul.f32 %v2151, %v2363
        %v2396 = vmul.f32 %v2153, %v2364
        %v2397 = vmul.f32 %v2155, %v2364
        %v2398 = vmul.f32 %v2157, %v2364
        %v2399 = vmul.f32 %v2159, %v2364
        %v2400 = vmul.f32 %v2161, %v2364
        %v2401 = vmul.f32 %v2163, %v2364
        %v2402 = vmul.f32 %v2165, %v2364
        %v2403 = vmul.f32 %v2167, %v2365
        %v2404 = vmul.f32 %v2169, %v2365
        %v2405 = vmul.f32 %v2171, %v2365
        %v2406 = vmul.f32 %v2173, %v2365
        %v2407 = vmul.f32 %v2175, %v2365
        %v2408 = vmul.f32 %v2177, %v2365
        %v2409 = vmul.f32 %v2179, %v2365
        %v2410 = vmul.f32 %v2181, %v2366
        %v2411 = vmul.f32 %v2183, %v2366
        %v2412 = vmul.f32 %v2185, %v2366
        %v2413 = vmul.f32 %v2187, %v2366
        %v2414 = vmul.f32 %v2189, %v2366
        %v2415 = vmul.f32 %v2191, %v2366
        %v2416 = vmul.f32 %v2193, %v2366
        %v2417 = vmul.f32 %v2195, %v2367
        %v2418 = vmul.f32 %v2197, %v2367
        %v2419 = vmul.f32 %v2199, %v2367
        %v2420 = vmul.f32 %v2201, %v2367
        %v2421 = vmul.f32 %v2203, %v2367
        %v2422 = vmul.f32 %v2205, %v2367
        %v2423 = vmul.f32 %v2207, %v2367
        %v2424 = vld [vmem:[%s6] sm:$0xf]
        %v2426 = vsel %vm1887, %v2368, 0
        %v2429 = vsel %vm1887, %v2369, 0
        %v2432 = vsel %vm1887, %v2370, 0
        %v2435 = vsel %vm1887, %v2371, 0
        %v2438 = vsel %vm1887, %v2372, 0
        %v2441 = vsel %vm1887, %v2373, 0
        %v2444 = vsel %vm1887, %v2374, 0
        %v2447 = vsel %vm1887, %v2375, 0
        %v2450 = vsel %vm1887, %v2376, 0
        %v2453 = vsel %vm1887, %v2377, 0
        %v2456 = vsel %vm1887, %v2378, 0
        %v2459 = vsel %vm1887, %v2379, 0
        %v2462 = vsel %vm1887, %v2380, 0
        %v2465 = vsel %vm1887, %v2381, 0
        %v2468 = vsel %vm1887, %v2382, 0
        %v2471 = vsel %vm1887, %v2383, 0
        %v2474 = vsel %vm1887, %v2384, 0
        %v2477 = vsel %vm1887, %v2385, 0
        %v2480 = vsel %vm1887, %v2386, 0
        %v2483 = vsel %vm1887, %v2387, 0
        %v2486 = vsel %vm1887, %v2388, 0
        %v2489 = vsel %vm1887, %v2389, 0
        %v2492 = vsel %vm1887, %v2390, 0
        %v2495 = vsel %vm1887, %v2391, 0
        %v2498 = vsel %vm1887, %v2392, 0
        %v2501 = vsel %vm1887, %v2393, 0
        %v2504 = vsel %vm1887, %v2394, 0
        %v2507 = vsel %vm1887, %v2395, 0
        %v2510 = vsel %vm1887, %v2396, 0
        %v2513 = vsel %vm1887, %v2397, 0
        %v2516 = vsel %vm1887, %v2398, 0
        %v2519 = vsel %vm1887, %v2399, 0
        %v2522 = vsel %vm1887, %v2400, 0
        %v2525 = vsel %vm1887, %v2401, 0
        %v2528 = vsel %vm1887, %v2402, 0
        %v2531 = vsel %vm1887, %v2403, 0
        %v2534 = vsel %vm1887, %v2404, 0
        %v2537 = vsel %vm1887, %v2405, 0
        %v2540 = vsel %vm1887, %v2406, 0
        %v2543 = vsel %vm1887, %v2407, 0
        %v2546 = vsel %vm1887, %v2408, 0
        %v2549 = vsel %vm1887, %v2409, 0
        %v2552 = vsel %vm1887, %v2410, 0
        %v2555 = vsel %vm1887, %v2411, 0
        %v2558 = vsel %vm1887, %v2412, 0
        %v2561 = vsel %vm1887, %v2413, 0
        %v2564 = vsel %vm1887, %v2414, 0
        %v2567 = vsel %vm1887, %v2415, 0
        %v2570 = vsel %vm1887, %v2416, 0
        %v2573 = vsel %vm1887, %v2417, 0
        %v2576 = vsel %vm1887, %v2418, 0
        %v2579 = vsel %vm1887, %v2419, 0
        %v2582 = vsel %vm1887, %v2420, 0
        %v2585 = vsel %vm1887, %v2421, 0
        %v2588 = vsel %vm1887, %v2422, 0
        %v2591 = vsel %vm1887, %v2423, 0
        %vm2593 = vcmask 1043456
        %v2595 = vsel %vm2593, %v2424, 0
        %2597 = vmatprep.subr.mxu0 0.0
        %2598 = vmatpush1.msra.mxu0 %v2595
        %2599 = vmatprep.subr.mxu0 0.0
        %2600 = vmatpush1.msra.mxu0 0.0
        %2601 = vmatprep.subr.mxu0 0.0
        %2602 = vmatpush1.msra.mxu0 0.0
        %2603 = vmatprep.subr.mxu0 0.0
        %2604 = vmatpush1.msra.mxu0 0.0
        %2605 = vmatprep.subr.mxu0 0.0
        %2606 = vmatpush1.msra.mxu0 0.0
        %2607 = vmatprep.subr.mxu0 0.0
        %2608 = vmatpush1.msra.mxu0 0.0
        %2609 = vmatprep.subr.mxu0 0.0
        %2610 = vmatpush1.msra.mxu0 0.0
        %2611 = vmatprep.subr.mxu0 0.0
        %2612 = vmatpush1.msra.mxu0 0.0
        %2613 = vmatprep.subr.mxu0 0.0
        %2614 = vmatpush1.msra.mxu0 0.0
        %2615 = vmatprep.subr.mxu0 0.0
        %2616 = vmatpush1.msra.mxu0 0.0
        %2617 = vmatprep.subr.mxu0 0.0
        %2618 = vmatpush1.msra.mxu0 0.0
        %2619 = vmatprep.subr.mxu0 0.0
        %2620 = vmatpush1.msra.mxu0 0.0
        %2621 = vmatprep.subr.mxu0 0.0
        %2622 = vmatpush1.msra.mxu0 0.0
        %2623 = vmatprep.subr.mxu0 0.0
        %2624 = vmatpush1.msra.mxu0 0.0
        %2625 = vmatprep.subr.mxu0 0.0
        %2626 = vmatpush1.msra.mxu0 0.0
        %2627 = vmatprep.subr.mxu0 0.0
        %2628 = vmatpush1.msra.mxu0 0.0
        %2629 = vmatprep.subr.mxu0 0.0
        %2630 = vmatpush1.msra.mxu0 0.0
        %2631 = vmatprep.subr.mxu0 0.0
        %2632 = vmatpush1.msra.mxu0 0.0
        %2633 = vmatprep.subr.mxu0 0.0
        %2634 = vmatpush1.msra.mxu0 0.0
        %2635 = vmatprep.subr.mxu0 0.0
        %2636 = vmatpush1.msra.mxu0 0.0
        %2637 = vmatprep.subr.mxu0 0.0
        %2638 = vmatpush1.msra.mxu0 0.0
        %2639 = vmatprep.subr.mxu0 0.0
        %2640 = vmatpush1.msra.mxu0 0.0
        %2641 = vmatprep.subr.mxu0 0.0
        %2642 = vmatpush1.msra.mxu0 0.0
        %2643 = vmatprep.subr.mxu0 0.0
        %2644 = vmatpush1.msra.mxu0 0.0
        %2645 = vmatprep.subr.mxu0 0.0
        %2646 = vmatpush1.msra.mxu0 0.0
        %2647 = vmatprep.subr.mxu0 0.0
        %2648 = vmatpush1.msra.mxu0 0.0
        %2649 = vmatprep.subr.mxu0 0.0
        %2650 = vmatpush1.msra.mxu0 0.0
        %2651 = vmatprep.subr.mxu0 0.0
        %2652 = vmatpush1.msra.mxu0 0.0
        %2653 = vmatprep.subr.mxu0 0.0
        %2654 = vmatpush1.msra.mxu0 0.0
        %2655 = vmatprep.subr.mxu0 0.0
        %2656 = vmatpush1.msra.mxu0 0.0
        %2657 = vmatprep.subr.mxu0 0.0
        %2658 = vmatpush1.msra.mxu0 0.0
        %2659 = vmatprep.subr.mxu0 0.0
        %2660 = vmatpush1.msra.mxu0 0.0
        %2661 = vmatprep.mubr.f32.mxu0 0.0
        %2662 = vmatmul.mubr.f32.gmra.mrb[0].mxu0 %v2426
        %v2663 = vpop.f32.mrb[0].mxu0
        %v2664 = vadd.f32 0.0, %v2663
        %v2665 = vpop.f32.mrb[0].mxu0
        %2666 = vmatprep.mubr.f32.mxu0 0.0
        %2667 = vmatmul.mubr.f32.gmra.mrb[0].mxu0 %v2429
        %v2668 = vpop.f32.mrb[0].mxu0
        %v2669 = vadd.f32 0.0, %v2668
        %v2670 = vpop.f32.mrb[0].mxu0
        %2671 = vmatprep.mubr.f32.mxu0 0.0
        %2672 = vmatmul.mubr.f32.gmra.mrb[0].mxu0 %v2432
        %v2673 = vpop.f32.mrb[0].mxu0
        %v2674 = vadd.f32 0.0, %v2673
        %v2675 = vpop.f32.mrb[0].mxu0
        %2676 = vmatprep.mubr.f32.mxu0 0.0
        %2677 = vmatmul.mubr.f32.gmra.mrb[0].mxu0 %v2435
        %v2678 = vpop.f32.mrb[0].mxu0
        %v2679 = vadd.f32 0.0, %v2678
        %v2680 = vpop.f32.mrb[0].mxu0
        %2681 = vmatprep.mubr.f32.mxu0 0.0
        %2682 = vmatmul.mubr.f32.gmra.mrb[0].mxu0 %v2438
        %v2683 = vpop.f32.mrb[0].mxu0
        %v2684 = vadd.f32 0.0, %v2683
        %v2685 = vpop.f32.mrb[0].mxu0
        %2686 = vmatprep.mubr.f32.mxu0 0.0
        %2687 = vmatmul.mubr.f32.gmra.mrb[0].mxu0 %v2441
        %v2688 = vpop.f32.mrb[0].mxu0
        %v2689 = vadd.f32 0.0, %v2688
        %v2690 = vpop.f32.mrb[0].mxu0
        %2691 = vmatprep.mubr.f32.mxu0 0.0
        %2692 = vmatmul.mubr.f32.gmra.mrb[0].mxu0 %v2444
        %v2693 = vpop.f32.mrb[0].mxu0
        %v2694 = vadd.f32 0.0, %v2693
        %v2695 = vpop.f32.mrb[0].mxu0
        %2696 = vmatprep.mubr.f32.mxu0 0.0
        %2697 = vmatmul.mubr.f32.gmra.mrb[0].mxu0 %v2447
        %v2698 = vpop.f32.mrb[0].mxu0
        %v2699 = vadd.f32 0.0, %v2698
        %v2700 = vpop.f32.mrb[0].mxu0
        %2701 = vmatprep.mubr.f32.mxu0 0.0
        %2702 = vmatmul.mubr.f32.gmra.mrb[0].mxu0 %v2450
        %v2703 = vpop.f32.mrb[0].mxu0
        %v2704 = vadd.f32 0.0, %v2703
        %v2705 = vpop.f32.mrb[0].mxu0
        %2706 = vmatprep.mubr.f32.mxu0 0.0
        %2707 = vmatmul.mubr.f32.gmra.mrb[0].mxu0 %v2453
        %v2708 = vpop.f32.mrb[0].mxu0
        %v2709 = vadd.f32 0.0, %v2708
        %v2710 = vpop.f32.mrb[0].mxu0
        %2711 = vmatprep.mubr.f32.mxu0 0.0
        %2712 = vmatmul.mubr.f32.gmra.mrb[0].mxu0 %v2456
        %v2713 = vpop.f32.mrb[0].mxu0
        %v2714 = vadd.f32 0.0, %v2713
        %v2715 = vpop.f32.mrb[0].mxu0
        %2716 = vmatprep.mubr.f32.mxu0 0.0
        %2717 = vmatmul.mubr.f32.gmra.mrb[0].mxu0 %v2459
        %v2718 = vpop.f32.mrb[0].mxu0
        %v2719 = vadd.f32 0.0, %v2718
        %v2720 = vpop.f32.mrb[0].mxu0
        %2721 = vmatprep.mubr.f32.mxu0 0.0
        %2722 = vmatmul.mubr.f32.gmra.mrb[0].mxu0 %v2462
        %v2723 = vpop.f32.mrb[0].mxu0
        %v2724 = vadd.f32 0.0, %v2723
        %v2725 = vpop.f32.mrb[0].mxu0
        %2726 = vmatprep.mubr.f32.mxu0 0.0
        %2727 = vmatmul.mubr.f32.gmra.mrb[0].mxu0 %v2465
        %v2728 = vpop.f32.mrb[0].mxu0
        %v2729 = vadd.f32 0.0, %v2728
        %v2730 = vpop.f32.mrb[0].mxu0
        %2731 = vmatprep.mubr.f32.mxu0 0.0
        %2732 = vmatmul.mubr.f32.gmra.mrb[0].mxu0 %v2468
        %v2733 = vpop.f32.mrb[0].mxu0
        %v2734 = vadd.f32 0.0, %v2733
        %v2735 = vpop.f32.mrb[0].mxu0
        %2736 = vmatprep.mubr.f32.mxu0 0.0
        %2737 = vmatmul.mubr.f32.gmra.mrb[0].mxu0 %v2471
        %v2738 = vpop.f32.mrb[0].mxu0
        %v2739 = vadd.f32 0.0, %v2738
        %v2740 = vpop.f32.mrb[0].mxu0
        %2741 = vmatprep.mubr.f32.mxu0 0.0
        %2742 = vmatmul.mubr.f32.gmra.mrb[0].mxu0 %v2474
        %v2743 = vpop.f32.mrb[0].mxu0
        %v2744 = vadd.f32 0.0, %v2743
        %v2745 = vpop.f32.mrb[0].mxu0
        %2746 = vmatprep.mubr.f32.mxu0 0.0
        %2747 = vmatmul.mubr.f32.gmra.mrb[0].mxu0 %v2477
        %v2748 = vpop.f32.mrb[0].mxu0
        %v2749 = vadd.f32 0.0, %v2748
        %v2750 = vpop.f32.mrb[0].mxu0
        %2751 = vmatprep.mubr.f32.mxu0 0.0
        %2752 = vmatmul.mubr.f32.gmra.mrb[0].mxu0 %v2480
        %v2753 = vpop.f32.mrb[0].mxu0
        %v2754 = vadd.f32 0.0, %v2753
        %v2755 = vpop.f32.mrb[0].mxu0
        %2756 = vmatprep.mubr.f32.mxu0 0.0
        %2757 = vmatmul.mubr.f32.gmra.mrb[0].mxu0 %v2483
        %v2758 = vpop.f32.mrb[0].mxu0
        %v2759 = vadd.f32 0.0, %v2758
        %v2760 = vpop.f32.mrb[0].mxu0
        %2761 = vmatprep.mubr.f32.mxu0 0.0
        %2762 = vmatmul.mubr.f32.gmra.mrb[0].mxu0 %v2486
        %v2763 = vpop.f32.mrb[0].mxu0
        %v2764 = vadd.f32 0.0, %v2763
        %v2765 = vpop.f32.mrb[0].mxu0
        %2766 = vmatprep.mubr.f32.mxu0 0.0
        %2767 = vmatmul.mubr.f32.gmra.mrb[0].mxu0 %v2489
        %v2768 = vpop.f32.mrb[0].mxu0
        %v2769 = vadd.f32 0.0, %v2768
        %v2770 = vpop.f32.mrb[0].mxu0
        %2771 = vmatprep.mubr.f32.mxu0 0.0
        %2772 = vmatmul.mubr.f32.gmra.mrb[0].mxu0 %v2492
        %v2773 = vpop.f32.mrb[0].mxu0
        %v2774 = vadd.f32 0.0, %v2773
        %v2775 = vpop.f32.mrb[0].mxu0
        %2776 = vmatprep.mubr.f32.mxu0 0.0
        %2777 = vmatmul.mubr.f32.gmra.mrb[0].mxu0 %v2495
        %v2778 = vpop.f32.mrb[0].mxu0
        %v2779 = vadd.f32 0.0, %v2778
        %v2780 = vpop.f32.mrb[0].mxu0
        %2781 = vmatprep.mubr.f32.mxu0 0.0
        %2782 = vmatmul.mubr.f32.gmra.mrb[0].mxu0 %v2498
        %v2783 = vpop.f32.mrb[0].mxu0
        %v2784 = vadd.f32 0.0, %v2783
        %v2785 = vpop.f32.mrb[0].mxu0
        %2786 = vmatprep.mubr.f32.mxu0 0.0
        %2787 = vmatmul.mubr.f32.gmra.mrb[0].mxu0 %v2501
        %v2788 = vpop.f32.mrb[0].mxu0
        %v2789 = vadd.f32 0.0, %v2788
        %v2790 = vpop.f32.mrb[0].mxu0
        %2791 = vmatprep.mubr.f32.mxu0 0.0
        %2792 = vmatmul.mubr.f32.gmra.mrb[0].mxu0 %v2504
        %v2793 = vpop.f32.mrb[0].mxu0
        %v2794 = vadd.f32 0.0, %v2793
        %v2795 = vpop.f32.mrb[0].mxu0
        %2796 = vmatprep.mubr.f32.mxu0 0.0
        %2797 = vmatmul.mubr.f32.gmra.mrb[0].mxu0 %v2507
        %v2798 = vpop.f32.mrb[0].mxu0
        %v2799 = vadd.f32 0.0, %v2798
        %v2800 = vpop.f32.mrb[0].mxu0
        %2801 = vmatprep.mubr.f32.mxu0 0.0
        %2802 = vmatmul.mubr.f32.gmra.mrb[0].mxu0 %v2510
        %v2803 = vpop.f32.mrb[0].mxu0
        %v2804 = vadd.f32 0.0, %v2803
        %v2805 = vpop.f32.mrb[0].mxu0
        %2806 = vmatprep.mubr.f32.mxu0 0.0
        %2807 = vmatmul.mubr.f32.gmra.mrb[0].mxu0 %v2513
        %v2808 = vpop.f32.mrb[0].mxu0
        %v2809 = vadd.f32 0.0, %v2808
        %v2810 = vpop.f32.mrb[0].mxu0
        %2811 = vmatprep.mubr.f32.mxu0 0.0
        %2812 = vmatmul.mubr.f32.gmra.mrb[0].mxu0 %v2516
        %v2813 = vpop.f32.mrb[0].mxu0
        %v2814 = vadd.f32 0.0, %v2813
        %v2815 = vpop.f32.mrb[0].mxu0
        %2816 = vmatprep.mubr.f32.mxu0 0.0
        %2817 = vmatmul.mubr.f32.gmra.mrb[0].mxu0 %v2519
        %v2818 = vpop.f32.mrb[0].mxu0
        %v2819 = vadd.f32 0.0, %v2818
        %v2820 = vpop.f32.mrb[0].mxu0
        %2821 = vmatprep.mubr.f32.mxu0 0.0
        %2822 = vmatmul.mubr.f32.gmra.mrb[0].mxu0 %v2522
        %v2823 = vpop.f32.mrb[0].mxu0
        %v2824 = vadd.f32 0.0, %v2823
        %v2825 = vpop.f32.mrb[0].mxu0
        %2826 = vmatprep.mubr.f32.mxu0 0.0
        %2827 = vmatmul.mubr.f32.gmra.mrb[0].mxu0 %v2525
        %v2828 = vpop.f32.mrb[0].mxu0
        %v2829 = vadd.f32 0.0, %v2828
        %v2830 = vpop.f32.mrb[0].mxu0
        %2831 = vmatprep.mubr.f32.mxu0 0.0
        %2832 = vmatmul.mubr.f32.gmra.mrb[0].mxu0 %v2528
        %v2833 = vpop.f32.mrb[0].mxu0
        %v2834 = vadd.f32 0.0, %v2833
        %v2835 = vpop.f32.mrb[0].mxu0
        %2836 = vmatprep.mubr.f32.mxu0 0.0
        %2837 = vmatmul.mubr.f32.gmra.mrb[0].mxu0 %v2531
        %v2838 = vpop.f32.mrb[0].mxu0
        %v2839 = vadd.f32 0.0, %v2838
        %v2840 = vpop.f32.mrb[0].mxu0
        %2841 = vmatprep.mubr.f32.mxu0 0.0
        %2842 = vmatmul.mubr.f32.gmra.mrb[0].mxu0 %v2534
        %v2843 = vpop.f32.mrb[0].mxu0
        %v2844 = vadd.f32 0.0, %v2843
        %v2845 = vpop.f32.mrb[0].mxu0
        %2846 = vmatprep.mubr.f32.mxu0 0.0
        %2847 = vmatmul.mubr.f32.gmra.mrb[0].mxu0 %v2537
        %v2848 = vpop.f32.mrb[0].mxu0
        %v2849 = vadd.f32 0.0, %v2848
        %v2850 = vpop.f32.mrb[0].mxu0
        %2851 = vmatprep.mubr.f32.mxu0 0.0
        %2852 = vmatmul.mubr.f32.gmra.mrb[0].mxu0 %v2540
        %v2853 = vpop.f32.mrb[0].mxu0
        %v2854 = vadd.f32 0.0, %v2853
        %v2855 = vpop.f32.mrb[0].mxu0
        %2856 = vmatprep.mubr.f32.mxu0 0.0
        %2857 = vmatmul.mubr.f32.gmra.mrb[0].mxu0 %v2543
        %v2858 = vpop.f32.mrb[0].mxu0
        %v2859 = vadd.f32 0.0, %v2858
        %v2860 = vpop.f32.mrb[0].mxu0
        %2861 = vmatprep.mubr.f32.mxu0 0.0
        %2862 = vmatmul.mubr.f32.gmra.mrb[0].mxu0 %v2546
        %v2863 = vpop.f32.mrb[0].mxu0
        %v2864 = vadd.f32 0.0, %v2863
        %v2865 = vpop.f32.mrb[0].mxu0
        %2866 = vmatprep.mubr.f32.mxu0 0.0
        %2867 = vmatmul.mubr.f32.gmra.mrb[0].mxu0 %v2549
        %v2868 = vpop.f32.mrb[0].mxu0
        %v2869 = vadd.f32 0.0, %v2868
        %v2870 = vpop.f32.mrb[0].mxu0
        %2871 = vmatprep.mubr.f32.mxu0 0.0
        %2872 = vmatmul.mubr.f32.gmra.mrb[0].mxu0 %v2552
        %v2873 = vpop.f32.mrb[0].mxu0
        %v2874 = vadd.f32 0.0, %v2873
        %v2875 = vpop.f32.mrb[0].mxu0
        %2876 = vmatprep.mubr.f32.mxu0 0.0
        %2877 = vmatmul.mubr.f32.gmra.mrb[0].mxu0 %v2555
        %v2878 = vpop.f32.mrb[0].mxu0
        %v2879 = vadd.f32 0.0, %v2878
        %v2880 = vpop.f32.mrb[0].mxu0
        %2881 = vmatprep.mubr.f32.mxu0 0.0
        %2882 = vmatmul.mubr.f32.gmra.mrb[0].mxu0 %v2558
        %v2883 = vpop.f32.mrb[0].mxu0
        %v2884 = vadd.f32 0.0, %v2883
        %v2885 = vpop.f32.mrb[0].mxu0
        %2886 = vmatprep.mubr.f32.mxu0 0.0
        %2887 = vmatmul.mubr.f32.gmra.mrb[0].mxu0 %v2561
        %v2888 = vpop.f32.mrb[0].mxu0
        %v2889 = vadd.f32 0.0, %v2888
        %v2890 = vpop.f32.mrb[0].mxu0
        %2891 = vmatprep.mubr.f32.mxu0 0.0
        %2892 = vmatmul.mubr.f32.gmra.mrb[0].mxu0 %v2564
        %v2893 = vpop.f32.mrb[0].mxu0
        %v2894 = vadd.f32 0.0, %v2893
        %v2895 = vpop.f32.mrb[0].mxu0
        %2896 = vmatprep.mubr.f32.mxu0 0.0
        %2897 = vmatmul.mubr.f32.gmra.mrb[0].mxu0 %v2567
        %v2898 = vpop.f32.mrb[0].mxu0
        %v2899 = vadd.f32 0.0, %v2898
        %v2900 = vpop.f32.mrb[0].mxu0
        %2901 = vmatprep.mubr.f32.mxu0 0.0
        %2902 = vmatmul.mubr.f32.gmra.mrb[0].mxu0 %v2570
        %v2903 = vpop.f32.mrb[0].mxu0
        %v2904 = vadd.f32 0.0, %v2903
        %v2905 = vpop.f32.mrb[0].mxu0
        %2906 = vmatprep.mubr.f32.mxu0 0.0
        %2907 = vmatmul.mubr.f32.gmra.mrb[0].mxu0 %v2573
        %v2908 = vpop.f32.mrb[0].mxu0
        %v2909 = vadd.f32 0.0, %v2908
        %v2910 = vpop.f32.mrb[0].mxu0
        %2911 = vmatprep.mubr.f32.mxu0 0.0
        %2912 = vmatmul.mubr.f32.gmra.mrb[0].mxu0 %v2576
        %v2913 = vpop.f32.mrb[0].mxu0
        %v2914 = vadd.f32 0.0, %v2913
        %v2915 = vpop.f32.mrb[0].mxu0
        %2916 = vmatprep.mubr.f32.mxu0 0.0
        %2917 = vmatmul.mubr.f32.gmra.mrb[0].mxu0 %v2579
        %v2918 = vpop.f32.mrb[0].mxu0
        %v2919 = vadd.f32 0.0, %v2918
        %v2920 = vpop.f32.mrb[0].mxu0
        %2921 = vmatprep.mubr.f32.mxu0 0.0
        %2922 = vmatmul.mubr.f32.gmra.mrb[0].mxu0 %v2582
        %v2923 = vpop.f32.mrb[0].mxu0
        %v2924 = vadd.f32 0.0, %v2923
        %v2925 = vpop.f32.mrb[0].mxu0
        %2926 = vmatprep.mubr.f32.mxu0 0.0
        %2927 = vmatmul.mubr.f32.gmra.mrb[0].mxu0 %v2585
        %v2928 = vpop.f32.mrb[0].mxu0
        %v2929 = vadd.f32 0.0, %v2928
        %v2930 = vpop.f32.mrb[0].mxu0
        %2931 = vmatprep.mubr.f32.mxu0 0.0
        %2932 = vmatmul.mubr.f32.gmra.mrb[0].mxu0 %v2588
        %v2933 = vpop.f32.mrb[0].mxu0
        %v2934 = vadd.f32 0.0, %v2933
        %v2935 = vpop.f32.mrb[0].mxu0
        %2936 = vmatprep.mubr.f32.mxu0 0.0
        %2937 = vmatmul.mubr.f32.gmra.mrb[0].mxu0 %v2591
        %v2938 = vpop.f32.mrb[0].mxu0
        %v2939 = vadd.f32 0.0, %v2938
        %v2940 = vpop.f32.mrb[0].mxu0
        %2941 = vdwg.mxu0
        %v2942 = vmul.f32 %v2664, %v1082
        %v2943 = vmul.f32 %v2669, %v1084
        %v2944 = vmul.f32 %v2674, %v1086
        %v2945 = vmul.f32 %v2679, %v1088
        %v2946 = vmul.f32 %v2684, %v1090
        %v2947 = vmul.f32 %v2689, %v1092
        %v2948 = vmul.f32 %v2694, %v1094
        %v2949 = vmul.f32 %v2699, %v1096
        %v2950 = vmul.f32 %v2704, %v1098
        %v2951 = vmul.f32 %v2709, %v1100
        %v2952 = vmul.f32 %v2714, %v1102
        %v2953 = vmul.f32 %v2719, %v1104
        %v2954 = vmul.f32 %v2724, %v1106
        %v2955 = vmul.f32 %v2729, %v1108
        %v2956 = vmul.f32 %v2734, %v1110
        %v2957 = vmul.f32 %v2739, %v1112
        %v2958 = vmul.f32 %v2744, %v1114
        %v2959 = vmul.f32 %v2749, %v1116
        %v2960 = vmul.f32 %v2754, %v1118
        %v2961 = vmul.f32 %v2759, %v1120
        %v2962 = vmul.f32 %v2764, %v1122
        %v2963 = vmul.f32 %v2769, %v1124
        %v2964 = vmul.f32 %v2774, %v1126
        %v2965 = vmul.f32 %v2779, %v1128
        %v2966 = vmul.f32 %v2784, %v1130
        %v2967 = vmul.f32 %v2789, %v1132
        %v2968 = vmul.f32 %v2794, %v1134
        %v2969 = vmul.f32 %v2799, %v1136
        %v2970 = vmul.f32 %v2804, %v1138
        %v2971 = vmul.f32 %v2809, %v1140
        %v2972 = vmul.f32 %v2814, %v1142
        %v2973 = vmul.f32 %v2819, %v1144
        %v2974 = vmul.f32 %v2824, %v1146
        %v2975 = vmul.f32 %v2829, %v1148
        %v2976 = vmul.f32 %v2834, %v1150
        %v2977 = vmul.f32 %v2839, %v1152
        %v2978 = vmul.f32 %v2844, %v1154
        %v2979 = vmul.f32 %v2849, %v1156
        %v2980 = vmul.f32 %v2854, %v1158
        %v2981 = vmul.f32 %v2859, %v1160
        %v2982 = vmul.f32 %v2864, %v1162
        %v2983 = vmul.f32 %v2869, %v1164
        %v2984 = vmul.f32 %v2874, %v1166
        %v2985 = vmul.f32 %v2879, %v1168
        %v2986 = vmul.f32 %v2884, %v1170
        %v2987 = vmul.f32 %v2889, %v1172
        %v2988 = vmul.f32 %v2894, %v1174
        %v2989 = vmul.f32 %v2899, %v1176
        %v2990 = vmul.f32 %v2904, %v1178
        %v2991 = vmul.f32 %v2909, %v1180
        %v2992 = vmul.f32 %v2914, %v1182
        %v2993 = vmul.f32 %v2919, %v1184
        %v2994 = vmul.f32 %v2924, %v1186
        %v2995 = vmul.f32 %v2929, %v1188
        %v2996 = vmul.f32 %v2934, %v1190
        %v2997 = vmul.f32 %v2939, %v1192
        %v2998 = vadd.f32 %v2942, %v2943
        %v2999 = vadd.f32 %v2998, %v2944
        %v3000 = vadd.f32 %v2999, %v2945
        %v3001 = vadd.f32 %v3000, %v2946
        %v3002 = vadd.f32 %v3001, %v2947
        %v3003 = vadd.f32 %v3002, %v2948
        %v3004 = vrot.slane %v3003, 4
        %v3005 = vadd.f32 %v3003, %v3004
        %v3006 = vrot.slane %v3005, 2
        %v3007 = vadd.f32 %v3005, %v3006
        %v3008 = vrot.slane %v3007, 1
        %v3009 = vadd.f32 %v3007, %v3008
        %v3010 = vadd.f32 %v2949, %v2950
        %v3011 = vadd.f32 %v3010, %v2951
        %v3012 = vadd.f32 %v3011, %v2952
        %v3013 = vadd.f32 %v3012, %v2953
        %v3014 = vadd.f32 %v3013, %v2954
        %v3015 = vadd.f32 %v3014, %v2955
        %v3016 = vrot.slane %v3015, 4
        %v3017 = vadd.f32 %v3015, %v3016
        %v3018 = vrot.slane %v3017, 2
        %v3019 = vadd.f32 %v3017, %v3018
        %v3020 = vrot.slane %v3019, 1
        %v3021 = vadd.f32 %v3019, %v3020
        %v3022 = vadd.f32 %v2956, %v2957
        %v3023 = vadd.f32 %v3022, %v2958
        %v3024 = vadd.f32 %v3023, %v2959
        %v3025 = vadd.f32 %v3024, %v2960
        %v3026 = vadd.f32 %v3025, %v2961
        %v3027 = vadd.f32 %v3026, %v2962
        %v3028 = vrot.slane %v3027, 4
        %v3029 = vadd.f32 %v3027, %v3028
        %v3030 = vrot.slane %v3029, 2
        %v3031 = vadd.f32 %v3029, %v3030
        %v3032 = vrot.slane %v3031, 1
        %v3033 = vadd.f32 %v3031, %v3032
        %v3034 = vadd.f32 %v2963, %v2964
        %v3035 = vadd.f32 %v3034, %v2965
        %v3036 = vadd.f32 %v3035, %v2966
        %v3037 = vadd.f32 %v3036, %v2967
        %v3038 = vadd.f32 %v3037, %v2968
        %v3039 = vadd.f32 %v3038, %v2969
        %v3040 = vrot.slane %v3039, 4
        %v3041 = vadd.f32 %v3039, %v3040
        %v3042 = vrot.slane %v3041, 2
        %v3043 = vadd.f32 %v3041, %v3042
        %v3044 = vrot.slane %v3043, 1
        %v3045 = vadd.f32 %v3043, %v3044
        %v3046 = vadd.f32 %v2970, %v2971
        %v3047 = vadd.f32 %v3046, %v2972
        %v3048 = vadd.f32 %v3047, %v2973
        %v3049 = vadd.f32 %v3048, %v2974
        %v3050 = vadd.f32 %v3049, %v2975
        %v3051 = vadd.f32 %v3050, %v2976
        %v3052 = vrot.slane %v3051, 4
        %v3053 = vadd.f32 %v3051, %v3052
        %v3054 = vrot.slane %v3053, 2
        %v3055 = vadd.f32 %v3053, %v3054
        %v3056 = vrot.slane %v3055, 1
        %v3057 = vadd.f32 %v3055, %v3056
        %v3058 = vadd.f32 %v2977, %v2978
        %v3059 = vadd.f32 %v3058, %v2979
        %v3060 = vadd.f32 %v3059, %v2980
        %v3061 = vadd.f32 %v3060, %v2981
        %v3062 = vadd.f32 %v3061, %v2982
        %v3063 = vadd.f32 %v3062, %v2983
        %v3064 = vrot.slane %v3063, 4
        %v3065 = vadd.f32 %v3063, %v3064
        %v3066 = vrot.slane %v3065, 2
        %v3067 = vadd.f32 %v3065, %v3066
        %v3068 = vrot.slane %v3067, 1
        %v3069 = vadd.f32 %v3067, %v3068
        %v3070 = vadd.f32 %v2984, %v2985
        %v3071 = vadd.f32 %v3070, %v2986
        %v3072 = vadd.f32 %v3071, %v2987
        %v3073 = vadd.f32 %v3072, %v2988
        %v3074 = vadd.f32 %v3073, %v2989
        %v3075 = vadd.f32 %v3074, %v2990
        %v3076 = vrot.slane %v3075, 4
        %v3077 = vadd.f32 %v3075, %v3076
        %v3078 = vrot.slane %v3077, 2
        %v3079 = vadd.f32 %v3077, %v3078
        %v3080 = vrot.slane %v3079, 1
        %v3081 = vadd.f32 %v3079, %v3080
        %v3082 = vadd.f32 %v2991, %v2992
        %v3083 = vadd.f32 %v3082, %v2993
        %v3084 = vadd.f32 %v3083, %v2994
        %v3085 = vadd.f32 %v3084, %v2995
        %v3086 = vadd.f32 %v3085, %v2996
        %v3087 = vadd.f32 %v3086, %v2997
        %v3088 = vrot.slane %v3087, 4
        %v3089 = vadd.f32 %v3087, %v3088
        %v3090 = vrot.slane %v3089, 2
        %v3091 = vadd.f32 %v3089, %v3090
        %v3092 = vrot.slane %v3091, 1
        %v3093 = vadd.f32 %v3091, %v3092
        %v3094 = vld [vmem:[%s7] sm:$0xff]
        %v3095 = vld [vmem:[%s7 + $0x8] sm:$0xff]
        %v3096 = vld [vmem:[%s7 + $0x10] sm:$0xff]
        %v3097 = vld [vmem:[%s7 + $0x18] sm:$0xff]
        %v3098 = vld [vmem:[%s7 + $0x20] sm:$0xff]
        %v3099 = vld [vmem:[%s7 + $0x28] sm:$0xff]
        %v3100 = vld [vmem:[%s7 + $0x30] sm:$0xff]
        %v3101 = vld [vmem:[%s7 + $0x38] sm:$0xff]
        %v3102 = vld [vmem:[%s7 + $0x40] sm:$0xff]
        %v3103 = vld [vmem:[%s7 + $0x48] sm:$0xff]
        %v3104 = vld [vmem:[%s7 + $0x50] sm:$0xff]
        %v3105 = vld [vmem:[%s7 + $0x58] sm:$0xff]
        %v3106 = vld [vmem:[%s7 + $0x60] sm:$0xff]
        %v3107 = vld [vmem:[%s7 + $0x68] sm:$0xff]
        %v3108 = vld [vmem:[%s7 + $0x70] sm:$0xff]
        %v3109 = vld [vmem:[%s7 + $0x78] sm:$0xff]
        %v3110 = vld [vmem:[%s8] sm:$0x1]
        %v3112 = vlaneseq
        %v3113 = vshrl.u32 %v3112, 7
        %v3114 = vsub.s32 0, %v3113
        %v3115 = vrot.slane %v3110, %v3114
        %v3125 = vsel %vm1224, %v3021, %v3009
        %v3126 = vsel %vm1226, %v3033, %v3125
        %v3127 = vsel %vm1228, %v3045, %v3126
        %v3128 = vsel %vm1230, %v3057, %v3127
        %v3129 = vsel %vm1232, %v3069, %v3128
        %v3130 = vsel %vm1234, %v3081, %v3129
        %v3131 = vsel %vm1236, %v3093, %v3130
        %3133 = vmatprep.subr.mxu0 0.0
        %3134 = vmatpush1.msra.mxu0 %v3094
        %3135 = vmatprep.subr.mxu0 0.0
        %3136 = vmatpush1.msra.mxu0 %v3095
        %3137 = vmatprep.subr.mxu0 0.0
        %3138 = vmatpush1.msra.mxu0 %v3096
        %3139 = vmatprep.subr.mxu0 0.0
        %3140 = vmatpush1.msra.mxu0 %v3097
        %3141 = vmatprep.subr.mxu0 0.0
        %3142 = vmatpush1.msra.mxu0 %v3098
        %3143 = vmatprep.subr.mxu0 0.0
        %3144 = vmatpush1.msra.mxu0 %v3099
        %3145 = vmatprep.subr.mxu0 0.0
        %3146 = vmatpush1.msra.mxu0 %v3100
        %3147 = vmatprep.subr.mxu0 0.0
        %3148 = vmatpush1.msra.mxu0 %v3101
        %3149 = vmatprep.subr.mxu0 0.0
        %3150 = vmatpush1.msra.mxu0 %v3102
        %3151 = vmatprep.subr.mxu0 0.0
        %3152 = vmatpush1.msra.mxu0 %v3103
        %3153 = vmatprep.subr.mxu0 0.0
        %3154 = vmatpush1.msra.mxu0 %v3104
        %3155 = vmatprep.subr.mxu0 0.0
        %3156 = vmatpush1.msra.mxu0 %v3105
        %3157 = vmatprep.subr.mxu0 0.0
        %3158 = vmatpush1.msra.mxu0 %v3106
        %3159 = vmatprep.subr.mxu0 0.0
        %3160 = vmatpush1.msra.mxu0 %v3107
        %3161 = vmatprep.subr.mxu0 0.0
        %3162 = vmatpush1.msra.mxu0 %v3108
        %3163 = vmatprep.subr.mxu0 0.0
        %3164 = vmatpush1.msra.mxu0 %v3109
        %3165 = vmatprep.subr.mxu0 0.0
        %3166 = vmatpush1.msra.mxu0 0.0
        %3167 = vmatprep.subr.mxu0 0.0
        %3168 = vmatpush1.msra.mxu0 0.0
        %3169 = vmatprep.subr.mxu0 0.0
        %3170 = vmatpush1.msra.mxu0 0.0
        %3171 = vmatprep.subr.mxu0 0.0
        %3172 = vmatpush1.msra.mxu0 0.0
        %3173 = vmatprep.subr.mxu0 0.0
        %3174 = vmatpush1.msra.mxu0 0.0
        %3175 = vmatprep.subr.mxu0 0.0
        %3176 = vmatpush1.msra.mxu0 0.0
        %3177 = vmatprep.subr.mxu0 0.0
        %3178 = vmatpush1.msra.mxu0 0.0
        %3179 = vmatprep.subr.mxu0 0.0
        %3180 = vmatpush1.msra.mxu0 0.0
        %3181 = vmatprep.subr.mxu0 0.0
        %3182 = vmatpush1.msra.mxu0 0.0
        %3183 = vmatprep.subr.mxu0 0.0
        %3184 = vmatpush1.msra.mxu0 0.0
        %3185 = vmatprep.subr.mxu0 0.0
        %3186 = vmatpush1.msra.mxu0 0.0
        %3187 = vmatprep.subr.mxu0 0.0
        %3188 = vmatpush1.msra.mxu0 0.0
        %3189 = vmatprep.subr.mxu0 0.0
        %3190 = vmatpush1.msra.mxu0 0.0
        %3191 = vmatprep.subr.mxu0 0.0
        %3192 = vmatpush1.msra.mxu0 0.0
        %3193 = vmatprep.subr.mxu0 0.0
        %3194 = vmatpush1.msra.mxu0 0.0
        %3195 = vmatprep.subr.mxu0 0.0
        %3196 = vmatpush1.msra.mxu0 0.0
        %3197 = vmatprep.mubr.f32.mxu0 0.0
        %3198 = vmatmul.mubr.f32.gmra.mrb[0].mxu0 %v3131
        %v3199 = vpop.f32.mrb[0].mxu0
        %v3200 = vadd.f32 %v3115, %v3199
        %v3201 = vpop.f32.mrb[0].mxu0
        %3202 = vdwg.mxu0
        %3203 = vst [vmem:[%s328] sm:$0xff] %v3200
        %s3204 = sand.u32 %s225, 1
        %s3205 = scalar_lea.sflag [#allocation4], %s3204
        %s3206 = sand.u32 %s225, 1
        %s3207 = smul.addr %s3206, 8
        %s3208 = scalar_lea.vmem [#allocation3], %s3207
        // Predicated region
        $region57: #{tpu_custom_call.1} parent=55 // pred_check
          %p3209 = pneg %p235
        $region58: #{tpu_custom_call.1} parent=55 // pred_check_branch
          %3211 = sbr.rel (%p3209) target = $region60
        $region59: #{tpu_custom_call.1} parent=55 // pred_region
          %s3213 = ssub.s32 128, 128
          %3214 = vsyncadd %s3205, %s3213
          %s3215 = smul.addr %s23, 128
          %s3216 = scalar_lea.hbm %s9, %s3215
          %s3218 = sshll.u32 %s3208, 4
          %s3219 = int_to_ptr.vmem [resolvable:$true] %s3218
          %3221 = dma.vmem_to_hbm [thread:$0]  %s3219, 128, %s3216, %s3205
        $region60: #{tpu_custom_call.1} parent=55 // pred_fallthru
          _
      $region56: #{tpu_custom_call.1} parent=5 // pred_fallthru
        _
      %p3222 = scmp.le.s32.totalorder 2, %s18
      // Predicated region
      $region61: #{tpu_custom_call.1} parent=5 // pred_check
        %p3223 = pneg %p3222
      $region62: #{tpu_custom_call.1} parent=5 // pred_check_branch
        %3225 = sbr.rel (%p3223) target = $region64
      $region63: #{tpu_custom_call.1} parent=5 // pred_region
        %s3226 = ssub.s32 %s18, 2
        // Predicated region
        $region65: #{tpu_custom_call.1} parent=63 // pred_check
          %p3227 = pneg %p241
        $region66: #{tpu_custom_call.1} parent=63 // pred_check_branch
          %3229 = sbr.rel (%p3227) target = $region68
        $region67: #{tpu_custom_call.1} parent=63 // pred_region
          %s3230 = sand.u32 %s226, 1
          %s3231 = scalar_lea.sflag [#allocation4], %s3230
          %s3232 = sand.u32 %s226, 1
          %s3233 = smul.addr %s3232, 8
          %s3234 = scalar_lea.vmem [#allocation3], %s3233
          %3235 = dma.done %s3231, 128
        $region68: #{tpu_custom_call.1} parent=63 // pred_fallthru
          _
      $region64: #{tpu_custom_call.1} parent=5 // pred_fallthru
        _
    $region6: #{tpu_custom_call.1} parent=1 // loop_footer
      %s22 = sadd.s32 1, %s18
    $region7: #{tpu_custom_call.1} parent=1 // loop_footer_branch
      %17 = sbr.rel target = $region3
    $region8: #{tpu_custom_call.1} parent=1 // loop_exit
      _
    %3236 = vsyncpa [#allocation4], 1
    %s3237 = scalar_lea.sflag [#allocation4], 1
    %3238 = vsyncpa %s3237, 1

</llo_original>
